<compile_context>
chip_gen: v7x
topology: tpu7x:2x2x1
jax: 0.10.0
libtpu: 0.0.40
codegen_flags: <defaults>
</compile_context>

<pallas_src>
import jax
import jax.numpy as jnp
from jax import lax
from jax.experimental import pallas as pl
from jax.experimental.pallas import tpu as pltpu

C = 16      # conv channel width (all conv layers are 16-wide; input is zero-padded to 16)


# --------------------------------- kernel -----------------------------------

def _cnn_kernel(x_ref,
                w1, b1, w2, b2, w3, b3, w4, b4, w5, b5, w6, b6,
                se1, se2, g_ref, wfc_ref, bfc_ref,
                out_ref):
    f32 = jnp.float32
    L = x_ref.shape[0]
    # hoisted row-index iotas (one per sequence length) used for conv edge masking
    rows = {n: lax.broadcasted_iota(jnp.int32, (n, 1), 0) for n in (L, L // 2, L // 4)}

    def conv(h, w_ref, b_ref):
        # h: (n, TB*C) f32 ; w_ref: (3*TB*C, TB*C) bf16 block-diagonal ; b_ref: (1, TB*C) f32
        n = h.shape[0]
        r = rows[n]
        prev = jnp.where(r == 0, 0.0, pltpu.roll(h, 1, axis=0))          # x[i-1], zero pad
        nxt = jnp.where(r == n - 1, 0.0, pltpu.roll(h, n - 1, axis=0))   # x[i+1], zero pad
        xcat = jnp.concatenate([prev, h, nxt], axis=1).astype(jnp.bfloat16)   # (n, 3*TB*C)
        return jnp.dot(xcat, w_ref[...], preferred_element_type=f32) + b_ref[...]

    def pool(h, se_ref):
        # MaxPool1d(2): pairwise max with the next row (XLU roll + VPU max, exact f32),
        # then a single even-row selection matmul with a 0/1 matrix (exact in f32).
        n = h.shape[0]
        pm = jnp.maximum(h, pltpu.roll(h, n - 1, axis=0))        # pm[i] = max(h[i], h[i+1])
        return jnp.dot(se_ref[...], pm, preferred_element_type=f32)   # (n/2, TB*C)

    relu = lambda v: jnp.maximum(v, 0.0)

    h = relu(conv(x_ref[...], w1, b1))       # conv_1 + relu              (L,   TB*C)
    h = conv(h, w2, b2)                      # conv_2
    h = relu(pool(h, se1))                   # pool + relu                (L/2, TB*C)
    h = relu(conv(h, w3, b3))                # conv_3 + relu
    h = relu(conv(h, w4, b4))                # conv_4 + relu
    h = conv(h, w5, b5)                      # conv_5
    h = relu(pool(h, se2))                   # pool + relu                (L/4, TB*C)
    h = relu(conv(h, w6, b6))                # conv_6 + relu              (L/4, TB*C)

    # channel mean per batch lane-group (constant (TB*C, TB) matrix, exact in f32), then fc_1
    m = jnp.dot(h, g_ref[...], preferred_element_type=f32)                     # (L/4, TB)
    out_ref[...] = jnp.dot(wfc_ref[...], m, preferred_element_type=f32) + bfc_ref[...]  # (8, TB)
    # NOTE: BatchNorm / Dropout / Sigmoid / Flatten exist in __init__ but are never
    # used in forward(), so they are intentionally omitted.


# -------------------------------- wrapper ------------------------------------

def _pick_tb(batch):
    """Generation-aware batch block: 1 fat step on single-TC chips, even grid on v7x."""
    try:
        kind = jax.devices()[0].device_kind.lower()
    except Exception:
        kind = ""
    two_tc = ("v7" in kind) or ("7x" in kind)
    if two_tc:
        # keep the 'parallel' grid length even so both TensorCores get work
        return 16 if batch >= 32 else 8
    # v5e/v6e: single TensorCore -> fewer, fatter serial steps (256 lanes on v6e MXU)
    return 16 if batch > 8 else 8


def cnn_network2_forward(x_ncl, params, tb=None):
    """x_ncl: (B, in_ch, L) float array (PyTorch NCL). Returns (B, 8)."""
    B, cin, L = x_ncl.shape
    assert L % 4 == 0 and L // 4 == 23, "Linear(23, 8) requires L == 92"
    assert cin <= C

    if tb is None:
        tb = _pick_tb(B)
    TBC = tb * C                      # 128 or 256 lanes (always a multiple of 128)
    nblk = -(-B // tb)
    Bp = nblk * tb

    # pad channels to C and batch to a multiple of tb; layout -> (L, Bp*C)
    xp = jnp.zeros((Bp, C, L), jnp.float32).at[:B, :cin, :].set(x_ncl.astype(jnp.float32))
    x2d = jnp.transpose(xp, (2, 0, 1)).reshape(L, Bp * C)

    eye = jnp.eye(tb, dtype=jnp.float32)
    inputs = [x2d]
    in_specs = [pl.BlockSpec((L, TBC), lambda b: (0, b))]

    for i in range(1, 7):
        w = params[f"conv{i}_w"].astype(jnp.float32)        # (C, cin_i, 3)
        cin_i = w.shape[1]
        taps = []
        for k in range(3):
            wk = jnp.zeros((C, C), jnp.float32).at[:cin_i, :].set(w[:, :, k].T)
            taps.append(jnp.kron(eye, wk))                  # (TBC, TBC) block-diag
        wcat = jnp.concatenate(taps, axis=0).astype(jnp.bfloat16)   # (3*TBC, TBC) bf16
        bias = jnp.tile(params[f"conv{i}_b"].astype(jnp.float32), tb).reshape(1, TBC)
        inputs += [wcat, bias]
        in_specs += [pl.BlockSpec(wcat.shape, lambda b: (0, 0)),
                     pl.BlockSpec(bias.shape, lambda b: (0, 0))]

    def even_mat(n):
        r = jnp.arange(n // 2)[:, None]
        c = jnp.arange(n)[None, :]
        return (c == 2 * r).astype(jnp.float32)             # exact 0/1 selection, f32

    se1 = even_mat(L)                                       # (L/2, L)
    se2 = even_mat(L // 2)                                  # (L/4, L/2)
    g = jnp.kron(eye, jnp.full((C, 1), 1.0 / C, jnp.float32))   # (TBC, tb) channel-mean
    wfc = params["fc_w"].astype(jnp.float32)                # (8, 23)
    bfc = params["fc_b"].astype(jnp.float32).reshape(-1, 1) # (8, 1)

    for arr in (se1, se2, g, wfc, bfc):
        inputs.append(arr)
        in_specs.append(pl.BlockSpec(arr.shape, lambda b: (0, 0)))

    # advisory cost estimate so XLA can overlap this tiny latency-bound call
    n_rows = (L, L, L // 2, L // 2, L // 2, L // 4)
    flops = nblk * (sum(2 * n * 3 * TBC * TBC for n in n_rows)            # 6 conv matmuls
                    + 2 * ((L // 2) * L + (L // 4) * (L // 2)) * TBC      # 2 pool selections
                    + 2 * (L // 4) * TBC * tb                             # channel mean
                    + 2 * 8 * (L // 4) * tb)                              # fc_1
    bytes_accessed = int(sum(int(a.size) * a.dtype.itemsize for a in inputs)
                         + nblk * 8 * tb * 4)

    out = pl.pallas_call(
        _cnn_kernel,
        out_shape=jax.ShapeDtypeStruct((nblk, 8, tb), jnp.float32),
        grid=(nblk,),
        in_specs=in_specs,
        out_specs=pl.BlockSpec((None, 8, tb), lambda b: (b, 0, 0)),
        compiler_params=pltpu.CompilerParams(dimension_semantics=("parallel",)),
        cost_estimate=pl.CostEstimate(flops=int(flops), transcendentals=0,
                                      bytes_accessed=bytes_accessed),
    )(*inputs)

    return jnp.transpose(out, (0, 2, 1)).reshape(Bp, 8)[:B]


# ---------------------------- pure-JAX reference -----------------------------

def ref_forward(x_ncl, params):
    def conv(h, w, bias):
        y = lax.conv_general_dilated(h, w, (1,), [(1, 1)],
                                     dimension_numbers=("NCH", "OIH", "NCH"))
        return y + bias[None, :, None]

    def pool(h):
        return lax.reduce_window(h, -jnp.inf, lax.max, (1, 1, 2), (1, 1, 2), "VALID")

    relu = lambda v: jnp.maximum(v, 0.0)
    h = relu(conv(x_ncl, params["conv1_w"], params["conv1_b"]))
    h = conv(h, params["conv2_w"], params["conv2_b"])
    h = relu(pool(h))
    h = relu(conv(h, params["conv3_w"], params["conv3_b"]))
    h = relu(conv(h, params["conv4_w"], params["conv4_b"]))
    h = conv(h, params["conv5_w"], params["conv5_b"])
    h = relu(pool(h))
    h = relu(conv(h, params["conv6_w"], params["conv6_b"]))
    m = h.mean(axis=1)                                      # (B, 23)
    return m @ params["fc_w"].T + params["fc_b"]


# ---------------------------------- main --------------------------------------

if __name__ == "__main__":
    B, IN_CH, L = 16, 4, 92       # L//4 must equal 23 for Linear(23, 8)

    key = jax.random.PRNGKey(0)
    keys = jax.random.split(key, 16)

    params = {}
    cin = IN_CH
    for i in range(1, 7):
        params[f"conv{i}_w"] = 0.2 * jax.random.normal(keys[2 * i - 2], (16, cin, 3), jnp.float32)
        params[f"conv{i}_b"] = 0.1 * jax.random.normal(keys[2 * i - 1], (16,), jnp.float32)
        cin = 16
    params["fc_w"] = 0.2 * jax.random.normal(keys[12], (8, 23), jnp.float32)
    params["fc_b"] = 0.1 * jax.random.normal(keys[13], (8,), jnp.float32)

    x = jax.random.normal(keys[14], (B, IN_CH, L), jnp.float32)

    out = jax.block_until_ready(cnn_network2_forward(x, params))
    ref = jax.block_until_ready(ref_forward(x, params))

    assert out.shape == (B, 8), out.shape
    # bf16 conv matmul operands (f32 accumulation); pooling/mean/fc are exact f32
    assert jnp.allclose(out, ref, atol=3e-2, rtol=3e-2), (out, ref)
    print("KERNEL_OK")
</pallas_src>

<mosaic_0001>
module attributes {stable_mosaic.version = 11 : i64} {
  func.func @_cnn_kernel(%arg0: i32, %arg1: memref<92x256xf32, #tpu.memory_space<vmem>>, %arg2: memref<768x256xbf16, #tpu.memory_space<vmem>>, %arg3: memref<1x256xf32, #tpu.memory_space<vmem>>, %arg4: memref<768x256xbf16, #tpu.memory_space<vmem>>, %arg5: memref<1x256xf32, #tpu.memory_space<vmem>>, %arg6: memref<768x256xbf16, #tpu.memory_space<vmem>>, %arg7: memref<1x256xf32, #tpu.memory_space<vmem>>, %arg8: memref<768x256xbf16, #tpu.memory_space<vmem>>, %arg9: memref<1x256xf32, #tpu.memory_space<vmem>>, %arg10: memref<768x256xbf16, #tpu.memory_space<vmem>>, %arg11: memref<1x256xf32, #tpu.memory_space<vmem>>, %arg12: memref<768x256xbf16, #tpu.memory_space<vmem>>, %arg13: memref<1x256xf32, #tpu.memory_space<vmem>>, %arg14: memref<46x92xf32, #tpu.memory_space<vmem>>, %arg15: memref<23x46xf32, #tpu.memory_space<vmem>>, %arg16: memref<256x16xf32, #tpu.memory_space<vmem>>, %arg17: memref<8x23xf32, #tpu.memory_space<vmem>>, %arg18: memref<8x1xf32, #tpu.memory_space<vmem>>, %arg19: memref<1x8x16xf32, #tpu.memory_space<vmem>>) attributes {dimension_semantics = [#tpu.dimension_semantics<parallel>], iteration_bounds = array<i64: 1>, scalar_prefetch = 0 : i64, scratch_operands = 0 : i64, tpu.core_type = #tpu.core_type<tc>, window_params = [{transform_indices = @transform_0, window_bounds = array<i64: 92, 256>}, {pipeline_mode = #tpu.pipeline_mode<synchronous>, transform_indices = @transform_1, window_bounds = array<i64: 768, 256>}, {pipeline_mode = #tpu.pipeline_mode<synchronous>, transform_indices = @transform_2, window_bounds = array<i64: 1, 256>}, {pipeline_mode = #tpu.pipeline_mode<synchronous>, transform_indices = @transform_3, window_bounds = array<i64: 768, 256>}, {pipeline_mode = #tpu.pipeline_mode<synchronous>, transform_indices = @transform_4, window_bounds = array<i64: 1, 256>}, {pipeline_mode = #tpu.pipeline_mode<synchronous>, transform_indices = @transform_5, window_bounds = array<i64: 768, 256>}, {pipeline_mode = #tpu.pipeline_mode<synchronous>, transform_indices = @transform_6, window_bounds = array<i64: 1, 256>}, {pipeline_mode = #tpu.pipeline_mode<synchronous>, transform_indices = @transform_7, window_bounds = array<i64: 768, 256>}, {pipeline_mode = #tpu.pipeline_mode<synchronous>, transform_indices = @transform_8, window_bounds = array<i64: 1, 256>}, {pipeline_mode = #tpu.pipeline_mode<synchronous>, transform_indices = @transform_9, window_bounds = array<i64: 768, 256>}, {pipeline_mode = #tpu.pipeline_mode<synchronous>, transform_indices = @transform_10, window_bounds = array<i64: 1, 256>}, {pipeline_mode = #tpu.pipeline_mode<synchronous>, transform_indices = @transform_11, window_bounds = array<i64: 768, 256>}, {pipeline_mode = #tpu.pipeline_mode<synchronous>, transform_indices = @transform_12, window_bounds = array<i64: 1, 256>}, {pipeline_mode = #tpu.pipeline_mode<synchronous>, transform_indices = @transform_13, window_bounds = array<i64: 46, 92>}, {pipeline_mode = #tpu.pipeline_mode<synchronous>, transform_indices = @transform_14, window_bounds = array<i64: 23, 46>}, {pipeline_mode = #tpu.pipeline_mode<synchronous>, transform_indices = @transform_15, window_bounds = array<i64: 256, 16>}, {pipeline_mode = #tpu.pipeline_mode<synchronous>, transform_indices = @transform_16, window_bounds = array<i64: 8, 23>}, {pipeline_mode = #tpu.pipeline_mode<synchronous>, transform_indices = @transform_17, window_bounds = array<i64: 8, 1>}, {transform_indices = @transform_18, window_bounds = array<i64: 1, 8, 16>}]} {
    %0 = tpu.iota {dimensions = array<i32: 0>} : vector<92x1xi32>
    %1 = tpu.iota {dimensions = array<i32: 0>} : vector<46x1xi32>
    %2 = tpu.iota {dimensions = array<i32: 0>} : vector<23x1xi32>
    %c0 = arith.constant 0 : index
    %c0_0 = arith.constant 0 : index
    %3 = vector.load %arg1[%c0, %c0_0] : memref<92x256xf32, #tpu.memory_space<vmem>>, vector<92x256xf32>
    %c0_i32 = arith.constant 0 : i32
    %4 = vector.broadcast %c0_i32 : i32 to vector<92x1xi32>
    %5 = arith.cmpi eq, %0, %4 : vector<92x1xi32>
    %c1_i32 = arith.constant 1 : i32
    %6 = tpu.dynamic_rotate %3 by %c1_i32 dim 0 : vector<92x256xf32>, i32 -> vector<92x256xf32>
    %cst = arith.constant 0.000000e+00 : f32
    %7 = vector.shape_cast %5 : vector<92x1xi1> to vector<92x1xi1>
    %8 = vector.broadcast %7 : vector<92x1xi1> to vector<92x256xi1>
    %9 = vector.broadcast %cst : f32 to vector<92x256xf32>
    %10 = arith.select %8, %9, %6 : vector<92x256xi1>, vector<92x256xf32>
    %c91_i32 = arith.constant 91 : i32
    %11 = vector.broadcast %c91_i32 : i32 to vector<92x1xi32>
    %12 = arith.cmpi eq, %0, %11 : vector<92x1xi32>
    %c91_i32_1 = arith.constant 91 : i32
    %13 = tpu.dynamic_rotate %3 by %c91_i32_1 dim 0 : vector<92x256xf32>, i32 -> vector<92x256xf32>
    %cst_2 = arith.constant 0.000000e+00 : f32
    %14 = vector.shape_cast %12 : vector<92x1xi1> to vector<92x1xi1>
    %15 = vector.broadcast %14 : vector<92x1xi1> to vector<92x256xi1>
    %16 = vector.broadcast %cst_2 : f32 to vector<92x256xf32>
    %17 = arith.select %15, %16, %13 : vector<92x256xi1>, vector<92x256xf32>
    %18 = tpu.concatenate %10, %3, %17 in 1 : vector<92x256xf32>, vector<92x256xf32>, vector<92x256xf32> -> vector<92x768xf32>
    %19 = arith.truncf %18 : vector<92x768xf32> to vector<92x768xbf16>
    %c0_3 = arith.constant 0 : index
    %c0_4 = arith.constant 0 : index
    %20 = vector.load %arg2[%c0_3, %c0_4] : memref<768x256xbf16, #tpu.memory_space<vmem>>, vector<768x256xbf16>
    %cst_5 = arith.constant dense<0.000000e+00> : vector<92x256xf32>
    %21 = tpu.matmul %19, %20, %cst_5 {dimension_numbers = #tpu.dot_dimension_numbers<[1], [0], [0], [1], [0, 0, 1, 1], [], []>} : vector<92x768xbf16>, vector<768x256xbf16>, vector<92x256xf32> -> vector<92x256xf32>
    %c0_6 = arith.constant 0 : index
    %c0_7 = arith.constant 0 : index
    %22 = vector.load %arg3[%c0_6, %c0_7] : memref<1x256xf32, #tpu.memory_space<vmem>>, vector<1x256xf32>
    %23 = vector.broadcast %22 : vector<1x256xf32> to vector<92x256xf32>
    %24 = arith.addf %21, %23 : vector<92x256xf32>
    %cst_8 = arith.constant 0.000000e+00 : f32
    %25 = vector.broadcast %cst_8 : f32 to vector<92x256xf32>
    %26 = arith.maximumf %24, %25 : vector<92x256xf32>
    %c0_i32_9 = arith.constant 0 : i32
    %27 = vector.broadcast %c0_i32_9 : i32 to vector<92x1xi32>
    %28 = arith.cmpi eq, %0, %27 : vector<92x1xi32>
    %c1_i32_10 = arith.constant 1 : i32
    %29 = tpu.dynamic_rotate %26 by %c1_i32_10 dim 0 : vector<92x256xf32>, i32 -> vector<92x256xf32>
    %cst_11 = arith.constant 0.000000e+00 : f32
    %30 = vector.shape_cast %28 : vector<92x1xi1> to vector<92x1xi1>
    %31 = vector.broadcast %30 : vector<92x1xi1> to vector<92x256xi1>
    %32 = vector.broadcast %cst_11 : f32 to vector<92x256xf32>
    %33 = arith.select %31, %32, %29 : vector<92x256xi1>, vector<92x256xf32>
    %c91_i32_12 = arith.constant 91 : i32
    %34 = vector.broadcast %c91_i32_12 : i32 to vector<92x1xi32>
    %35 = arith.cmpi eq, %0, %34 : vector<92x1xi32>
    %c91_i32_13 = arith.constant 91 : i32
    %36 = tpu.dynamic_rotate %26 by %c91_i32_13 dim 0 : vector<92x256xf32>, i32 -> vector<92x256xf32>
    %cst_14 = arith.constant 0.000000e+00 : f32
    %37 = vector.shape_cast %35 : vector<92x1xi1> to vector<92x1xi1>
    %38 = vector.broadcast %37 : vector<92x1xi1> to vector<92x256xi1>
    %39 = vector.broadcast %cst_14 : f32 to vector<92x256xf32>
    %40 = arith.select %38, %39, %36 : vector<92x256xi1>, vector<92x256xf32>
    %41 = tpu.concatenate %33, %26, %40 in 1 : vector<92x256xf32>, vector<92x256xf32>, vector<92x256xf32> -> vector<92x768xf32>
    %42 = arith.truncf %41 : vector<92x768xf32> to vector<92x768xbf16>
    %c0_15 = arith.constant 0 : index
    %c0_16 = arith.constant 0 : index
    %43 = vector.load %arg4[%c0_15, %c0_16] : memref<768x256xbf16, #tpu.memory_space<vmem>>, vector<768x256xbf16>
    %cst_17 = arith.constant dense<0.000000e+00> : vector<92x256xf32>
    %44 = tpu.matmul %42, %43, %cst_17 {dimension_numbers = #tpu.dot_dimension_numbers<[1], [0], [0], [1], [0, 0, 1, 1], [], []>} : vector<92x768xbf16>, vector<768x256xbf16>, vector<92x256xf32> -> vector<92x256xf32>
    %c0_18 = arith.constant 0 : index
    %c0_19 = arith.constant 0 : index
    %45 = vector.load %arg5[%c0_18, %c0_19] : memref<1x256xf32, #tpu.memory_space<vmem>>, vector<1x256xf32>
    %46 = vector.broadcast %45 : vector<1x256xf32> to vector<92x256xf32>
    %47 = arith.addf %44, %46 : vector<92x256xf32>
    %c91_i32_20 = arith.constant 91 : i32
    %48 = tpu.dynamic_rotate %47 by %c91_i32_20 dim 0 : vector<92x256xf32>, i32 -> vector<92x256xf32>
    %49 = arith.maximumf %47, %48 : vector<92x256xf32>
    %c0_21 = arith.constant 0 : index
    %c0_22 = arith.constant 0 : index
    %50 = vector.load %arg14[%c0_21, %c0_22] : memref<46x92xf32, #tpu.memory_space<vmem>>, vector<46x92xf32>
    %cst_23 = arith.constant dense<0.000000e+00> : vector<46x256xf32>
    %51 = tpu.matmul %50, %49, %cst_23 {dimension_numbers = #tpu.dot_dimension_numbers<[1], [0], [0], [1], [0, 0, 1, 1], [], []>} : vector<46x92xf32>, vector<92x256xf32>, vector<46x256xf32> -> vector<46x256xf32>
    %cst_24 = arith.constant 0.000000e+00 : f32
    %52 = vector.broadcast %cst_24 : f32 to vector<46x256xf32>
    %53 = arith.maximumf %51, %52 : vector<46x256xf32>
    %c0_i32_25 = arith.constant 0 : i32
    %54 = vector.broadcast %c0_i32_25 : i32 to vector<46x1xi32>
    %55 = arith.cmpi eq, %1, %54 : vector<46x1xi32>
    %c1_i32_26 = arith.constant 1 : i32
    %56 = tpu.dynamic_rotate %53 by %c1_i32_26 dim 0 : vector<46x256xf32>, i32 -> vector<46x256xf32>
    %cst_27 = arith.constant 0.000000e+00 : f32
    %57 = vector.shape_cast %55 : vector<46x1xi1> to vector<46x1xi1>
    %58 = vector.broadcast %57 : vector<46x1xi1> to vector<46x256xi1>
    %59 = vector.broadcast %cst_27 : f32 to vector<46x256xf32>
    %60 = arith.select %58, %59, %56 : vector<46x256xi1>, vector<46x256xf32>
    %c45_i32 = arith.constant 45 : i32
    %61 = vector.broadcast %c45_i32 : i32 to vector<46x1xi32>
    %62 = arith.cmpi eq, %1, %61 : vector<46x1xi32>
    %c45_i32_28 = arith.constant 45 : i32
    %63 = tpu.dynamic_rotate %53 by %c45_i32_28 dim 0 : vector<46x256xf32>, i32 -> vector<46x256xf32>
    %cst_29 = arith.constant 0.000000e+00 : f32
    %64 = vector.shape_cast %62 : vector<46x1xi1> to vector<46x1xi1>
    %65 = vector.broadcast %64 : vector<46x1xi1> to vector<46x256xi1>
    %66 = vector.broadcast %cst_29 : f32 to vector<46x256xf32>
    %67 = arith.select %65, %66, %63 : vector<46x256xi1>, vector<46x256xf32>
    %68 = tpu.concatenate %60, %53, %67 in 1 : vector<46x256xf32>, vector<46x256xf32>, vector<46x256xf32> -> vector<46x768xf32>
    %69 = arith.truncf %68 : vector<46x768xf32> to vector<46x768xbf16>
    %c0_30 = arith.constant 0 : index
    %c0_31 = arith.constant 0 : index
    %70 = vector.load %arg6[%c0_30, %c0_31] : memref<768x256xbf16, #tpu.memory_space<vmem>>, vector<768x256xbf16>
    %cst_32 = arith.constant dense<0.000000e+00> : vector<46x256xf32>
    %71 = tpu.matmul %69, %70, %cst_32 {dimension_numbers = #tpu.dot_dimension_numbers<[1], [0], [0], [1], [0, 0, 1, 1], [], []>} : vector<46x768xbf16>, vector<768x256xbf16>, vector<46x256xf32> -> vector<46x256xf32>
    %c0_33 = arith.constant 0 : index
    %c0_34 = arith.constant 0 : index
    %72 = vector.load %arg7[%c0_33, %c0_34] : memref<1x256xf32, #tpu.memory_space<vmem>>, vector<1x256xf32>
    %73 = vector.broadcast %72 : vector<1x256xf32> to vector<46x256xf32>
    %74 = arith.addf %71, %73 : vector<46x256xf32>
    %cst_35 = arith.constant 0.000000e+00 : f32
    %75 = vector.broadcast %cst_35 : f32 to vector<46x256xf32>
    %76 = arith.maximumf %74, %75 : vector<46x256xf32>
    %c0_i32_36 = arith.constant 0 : i32
    %77 = vector.broadcast %c0_i32_36 : i32 to vector<46x1xi32>
    %78 = arith.cmpi eq, %1, %77 : vector<46x1xi32>
    %c1_i32_37 = arith.constant 1 : i32
    %79 = tpu.dynamic_rotate %76 by %c1_i32_37 dim 0 : vector<46x256xf32>, i32 -> vector<46x256xf32>
    %cst_38 = arith.constant 0.000000e+00 : f32
    %80 = vector.shape_cast %78 : vector<46x1xi1> to vector<46x1xi1>
    %81 = vector.broadcast %80 : vector<46x1xi1> to vector<46x256xi1>
    %82 = vector.broadcast %cst_38 : f32 to vector<46x256xf32>
    %83 = arith.select %81, %82, %79 : vector<46x256xi1>, vector<46x256xf32>
    %c45_i32_39 = arith.constant 45 : i32
    %84 = vector.broadcast %c45_i32_39 : i32 to vector<46x1xi32>
    %85 = arith.cmpi eq, %1, %84 : vector<46x1xi32>
    %c45_i32_40 = arith.constant 45 : i32
    %86 = tpu.dynamic_rotate %76 by %c45_i32_40 dim 0 : vector<46x256xf32>, i32 -> vector<46x256xf32>
    %cst_41 = arith.constant 0.000000e+00 : f32
    %87 = vector.shape_cast %85 : vector<46x1xi1> to vector<46x1xi1>
    %88 = vector.broadcast %87 : vector<46x1xi1> to vector<46x256xi1>
    %89 = vector.broadcast %cst_41 : f32 to vector<46x256xf32>
    %90 = arith.select %88, %89, %86 : vector<46x256xi1>, vector<46x256xf32>
    %91 = tpu.concatenate %83, %76, %90 in 1 : vector<46x256xf32>, vector<46x256xf32>, vector<46x256xf32> -> vector<46x768xf32>
    %92 = arith.truncf %91 : vector<46x768xf32> to vector<46x768xbf16>
    %c0_42 = arith.constant 0 : index
    %c0_43 = arith.constant 0 : index
    %93 = vector.load %arg8[%c0_42, %c0_43] : memref<768x256xbf16, #tpu.memory_space<vmem>>, vector<768x256xbf16>
    %cst_44 = arith.constant dense<0.000000e+00> : vector<46x256xf32>
    %94 = tpu.matmul %92, %93, %cst_44 {dimension_numbers = #tpu.dot_dimension_numbers<[1], [0], [0], [1], [0, 0, 1, 1], [], []>} : vector<46x768xbf16>, vector<768x256xbf16>, vector<46x256xf32> -> vector<46x256xf32>
    %c0_45 = arith.constant 0 : index
    %c0_46 = arith.constant 0 : index
    %95 = vector.load %arg9[%c0_45, %c0_46] : memref<1x256xf32, #tpu.memory_space<vmem>>, vector<1x256xf32>
    %96 = vector.broadcast %95 : vector<1x256xf32> to vector<46x256xf32>
    %97 = arith.addf %94, %96 : vector<46x256xf32>
    %cst_47 = arith.constant 0.000000e+00 : f32
    %98 = vector.broadcast %cst_47 : f32 to vector<46x256xf32>
    %99 = arith.maximumf %97, %98 : vector<46x256xf32>
    %c0_i32_48 = arith.constant 0 : i32
    %100 = vector.broadcast %c0_i32_48 : i32 to vector<46x1xi32>
    %101 = arith.cmpi eq, %1, %100 : vector<46x1xi32>
    %c1_i32_49 = arith.constant 1 : i32
    %102 = tpu.dynamic_rotate %99 by %c1_i32_49 dim 0 : vector<46x256xf32>, i32 -> vector<46x256xf32>
    %cst_50 = arith.constant 0.000000e+00 : f32
    %103 = vector.shape_cast %101 : vector<46x1xi1> to vector<46x1xi1>
    %104 = vector.broadcast %103 : vector<46x1xi1> to vector<46x256xi1>
    %105 = vector.broadcast %cst_50 : f32 to vector<46x256xf32>
    %106 = arith.select %104, %105, %102 : vector<46x256xi1>, vector<46x256xf32>
    %c45_i32_51 = arith.constant 45 : i32
    %107 = vector.broadcast %c45_i32_51 : i32 to vector<46x1xi32>
    %108 = arith.cmpi eq, %1, %107 : vector<46x1xi32>
    %c45_i32_52 = arith.constant 45 : i32
    %109 = tpu.dynamic_rotate %99 by %c45_i32_52 dim 0 : vector<46x256xf32>, i32 -> vector<46x256xf32>
    %cst_53 = arith.constant 0.000000e+00 : f32
    %110 = vector.shape_cast %108 : vector<46x1xi1> to vector<46x1xi1>
    %111 = vector.broadcast %110 : vector<46x1xi1> to vector<46x256xi1>
    %112 = vector.broadcast %cst_53 : f32 to vector<46x256xf32>
    %113 = arith.select %111, %112, %109 : vector<46x256xi1>, vector<46x256xf32>
    %114 = tpu.concatenate %106, %99, %113 in 1 : vector<46x256xf32>, vector<46x256xf32>, vector<46x256xf32> -> vector<46x768xf32>
    %115 = arith.truncf %114 : vector<46x768xf32> to vector<46x768xbf16>
    %c0_54 = arith.constant 0 : index
    %c0_55 = arith.constant 0 : index
    %116 = vector.load %arg10[%c0_54, %c0_55] : memref<768x256xbf16, #tpu.memory_space<vmem>>, vector<768x256xbf16>
    %cst_56 = arith.constant dense<0.000000e+00> : vector<46x256xf32>
    %117 = tpu.matmul %115, %116, %cst_56 {dimension_numbers = #tpu.dot_dimension_numbers<[1], [0], [0], [1], [0, 0, 1, 1], [], []>} : vector<46x768xbf16>, vector<768x256xbf16>, vector<46x256xf32> -> vector<46x256xf32>
    %c0_57 = arith.constant 0 : index
    %c0_58 = arith.constant 0 : index
    %118 = vector.load %arg11[%c0_57, %c0_58] : memref<1x256xf32, #tpu.memory_space<vmem>>, vector<1x256xf32>
    %119 = vector.broadcast %118 : vector<1x256xf32> to vector<46x256xf32>
    %120 = arith.addf %117, %119 : vector<46x256xf32>
    %c45_i32_59 = arith.constant 45 : i32
    %121 = tpu.dynamic_rotate %120 by %c45_i32_59 dim 0 : vector<46x256xf32>, i32 -> vector<46x256xf32>
    %122 = arith.maximumf %120, %121 : vector<46x256xf32>
    %c0_60 = arith.constant 0 : index
    %c0_61 = arith.constant 0 : index
    %123 = vector.load %arg15[%c0_60, %c0_61] : memref<23x46xf32, #tpu.memory_space<vmem>>, vector<23x46xf32>
    %cst_62 = arith.constant dense<0.000000e+00> : vector<23x256xf32>
    %124 = tpu.matmul %123, %122, %cst_62 {dimension_numbers = #tpu.dot_dimension_numbers<[1], [0], [0], [1], [0, 0, 1, 1], [], []>} : vector<23x46xf32>, vector<46x256xf32>, vector<23x256xf32> -> vector<23x256xf32>
    %cst_63 = arith.constant 0.000000e+00 : f32
    %125 = vector.broadcast %cst_63 : f32 to vector<23x256xf32>
    %126 = arith.maximumf %124, %125 : vector<23x256xf32>
    %c0_i32_64 = arith.constant 0 : i32
    %127 = vector.broadcast %c0_i32_64 : i32 to vector<23x1xi32>
    %128 = arith.cmpi eq, %2, %127 : vector<23x1xi32>
    %c1_i32_65 = arith.constant 1 : i32
    %129 = tpu.dynamic_rotate %126 by %c1_i32_65 dim 0 : vector<23x256xf32>, i32 -> vector<23x256xf32>
    %cst_66 = arith.constant 0.000000e+00 : f32
    %130 = vector.shape_cast %128 : vector<23x1xi1> to vector<23x1xi1>
    %131 = vector.broadcast %130 : vector<23x1xi1> to vector<23x256xi1>
    %132 = vector.broadcast %cst_66 : f32 to vector<23x256xf32>
    %133 = arith.select %131, %132, %129 : vector<23x256xi1>, vector<23x256xf32>
    %c22_i32 = arith.constant 22 : i32
    %134 = vector.broadcast %c22_i32 : i32 to vector<23x1xi32>
    %135 = arith.cmpi eq, %2, %134 : vector<23x1xi32>
    %c22_i32_67 = arith.constant 22 : i32
    %136 = tpu.dynamic_rotate %126 by %c22_i32_67 dim 0 : vector<23x256xf32>, i32 -> vector<23x256xf32>
    %cst_68 = arith.constant 0.000000e+00 : f32
    %137 = vector.shape_cast %135 : vector<23x1xi1> to vector<23x1xi1>
    %138 = vector.broadcast %137 : vector<23x1xi1> to vector<23x256xi1>
    %139 = vector.broadcast %cst_68 : f32 to vector<23x256xf32>
    %140 = arith.select %138, %139, %136 : vector<23x256xi1>, vector<23x256xf32>
    %141 = tpu.concatenate %133, %126, %140 in 1 : vector<23x256xf32>, vector<23x256xf32>, vector<23x256xf32> -> vector<23x768xf32>
    %142 = arith.truncf %141 : vector<23x768xf32> to vector<23x768xbf16>
    %c0_69 = arith.constant 0 : index
    %c0_70 = arith.constant 0 : index
    %143 = vector.load %arg12[%c0_69, %c0_70] : memref<768x256xbf16, #tpu.memory_space<vmem>>, vector<768x256xbf16>
    %cst_71 = arith.constant dense<0.000000e+00> : vector<23x256xf32>
    %144 = tpu.matmul %142, %143, %cst_71 {dimension_numbers = #tpu.dot_dimension_numbers<[1], [0], [0], [1], [0, 0, 1, 1], [], []>} : vector<23x768xbf16>, vector<768x256xbf16>, vector<23x256xf32> -> vector<23x256xf32>
    %c0_72 = arith.constant 0 : index
    %c0_73 = arith.constant 0 : index
    %145 = vector.load %arg13[%c0_72, %c0_73] : memref<1x256xf32, #tpu.memory_space<vmem>>, vector<1x256xf32>
    %146 = vector.broadcast %145 : vector<1x256xf32> to vector<23x256xf32>
    %147 = arith.addf %144, %146 : vector<23x256xf32>
    %cst_74 = arith.constant 0.000000e+00 : f32
    %148 = vector.broadcast %cst_74 : f32 to vector<23x256xf32>
    %149 = arith.maximumf %147, %148 : vector<23x256xf32>
    %c0_75 = arith.constant 0 : index
    %c0_76 = arith.constant 0 : index
    %150 = vector.load %arg16[%c0_75, %c0_76] : memref<256x16xf32, #tpu.memory_space<vmem>>, vector<256x16xf32>
    %cst_77 = arith.constant dense<0.000000e+00> : vector<23x16xf32>
    %151 = tpu.matmul %149, %150, %cst_77 {dimension_numbers = #tpu.dot_dimension_numbers<[1], [0], [0], [1], [0, 0, 1, 1], [], []>} : vector<23x256xf32>, vector<256x16xf32>, vector<23x16xf32> -> vector<23x16xf32>
    %c0_78 = arith.constant 0 : index
    %c0_79 = arith.constant 0 : index
    %152 = vector.load %arg17[%c0_78, %c0_79] : memref<8x23xf32, #tpu.memory_space<vmem>>, vector<8x23xf32>
    %cst_80 = arith.constant dense<0.000000e+00> : vector<8x16xf32>
    %153 = tpu.matmul %152, %151, %cst_80 {dimension_numbers = #tpu.dot_dimension_numbers<[1], [0], [0], [1], [0, 0, 1, 1], [], []>} : vector<8x23xf32>, vector<23x16xf32>, vector<8x16xf32> -> vector<8x16xf32>
    %c0_81 = arith.constant 0 : index
    %c0_82 = arith.constant 0 : index
    %154 = vector.load %arg18[%c0_81, %c0_82] : memref<8x1xf32, #tpu.memory_space<vmem>>, vector<8x1xf32>
    %155 = vector.broadcast %154 : vector<8x1xf32> to vector<8x16xf32>
    %156 = arith.addf %153, %155 : vector<8x16xf32>
    %c0_83 = arith.constant 0 : index
    %c0_84 = arith.constant 0 : index
    %c0_85 = arith.constant 0 : index
    %157 = vector.load %arg19[%c0_83, %c0_84, %c0_85] : memref<1x8x16xf32, #tpu.memory_space<vmem>>, vector<1x8x16xf32>
    %158 = vector.shape_cast %157 : vector<1x8x16xf32> to vector<8x16xf32>
    %159 = vector.shape_cast %156 : vector<8x16xf32> to vector<1x8x16xf32>
    tpu.vector_store %arg19[%c0_83, %c0_84, %c0_85], %159 {strides = array<i32>} : memref<1x8x16xf32, #tpu.memory_space<vmem>>, vector<1x8x16xf32>,
    return
  }
  func.func @transform_0(%arg0: i32) -> (i32, i32) {
    %c0_i32 = arith.constant 0 : i32
    %c0_i32_0 = arith.constant 0 : i32
    return %c0_i32, %arg0 : i32, i32
  }
  func.func @transform_1(%arg0: i32) -> (i32, i32) {
    %c0_i32 = arith.constant 0 : i32
    %c0_i32_0 = arith.constant 0 : i32
    %c0_i32_1 = arith.constant 0 : i32
    return %c0_i32, %c0_i32_0 : i32, i32
  }
  func.func @transform_2(%arg0: i32) -> (i32, i32) {
    %c0_i32 = arith.constant 0 : i32
    %c0_i32_0 = arith.constant 0 : i32
    %c0_i32_1 = arith.constant 0 : i32
    return %c0_i32, %c0_i32_0 : i32, i32
  }
  func.func @transform_3(%arg0: i32) -> (i32, i32) {
    %c0_i32 = arith.constant 0 : i32
    %c0_i32_0 = arith.constant 0 : i32
    %c0_i32_1 = arith.constant 0 : i32
    return %c0_i32, %c0_i32_0 : i32, i32
  }
  func.func @transform_4(%arg0: i32) -> (i32, i32) {
    %c0_i32 = arith.constant 0 : i32
    %c0_i32_0 = arith.constant 0 : i32
    %c0_i32_1 = arith.constant 0 : i32
    return %c0_i32, %c0_i32_0 : i32, i32
  }
  func.func @transform_5(%arg0: i32) -> (i32, i32) {
    %c0_i32 = arith.constant 0 : i32
    %c0_i32_0 = arith.constant 0 : i32
    %c0_i32_1 = arith.constant 0 : i32
    return %c0_i32, %c0_i32_0 : i32, i32
  }
  func.func @transform_6(%arg0: i32) -> (i32, i32) {
    %c0_i32 = arith.constant 0 : i32
    %c0_i32_0 = arith.constant 0 : i32
    %c0_i32_1 = arith.constant 0 : i32
    return %c0_i32, %c0_i32_0 : i32, i32
  }
  func.func @transform_7(%arg0: i32) -> (i32, i32) {
    %c0_i32 = arith.constant 0 : i32
    %c0_i32_0 = arith.constant 0 : i32
    %c0_i32_1 = arith.constant 0 : i32
    return %c0_i32, %c0_i32_0 : i32, i32
  }
  func.func @transform_8(%arg0: i32) -> (i32, i32) {
    %c0_i32 = arith.constant 0 : i32
    %c0_i32_0 = arith.constant 0 : i32
    %c0_i32_1 = arith.constant 0 : i32
    return %c0_i32, %c0_i32_0 : i32, i32
  }
  func.func @transform_9(%arg0: i32) -> (i32, i32) {
    %c0_i32 = arith.constant 0 : i32
    %c0_i32_0 = arith.constant 0 : i32
    %c0_i32_1 = arith.constant 0 : i32
    return %c0_i32, %c0_i32_0 : i32, i32
  }
  func.func @transform_10(%arg0: i32) -> (i32, i32) {
    %c0_i32 = arith.constant 0 : i32
    %c0_i32_0 = arith.constant 0 : i32
    %c0_i32_1 = arith.constant 0 : i32
    return %c0_i32, %c0_i32_0 : i32, i32
  }
  func.func @transform_11(%arg0: i32) -> (i32, i32) {
    %c0_i32 = arith.constant 0 : i32
    %c0_i32_0 = arith.constant 0 : i32
    %c0_i32_1 = arith.constant 0 : i32
    return %c0_i32, %c0_i32_0 : i32, i32
  }
  func.func @transform_12(%arg0: i32) -> (i32, i32) {
    %c0_i32 = arith.constant 0 : i32
    %c0_i32_0 = arith.constant 0 : i32
    %c0_i32_1 = arith.constant 0 : i32
    return %c0_i32, %c0_i32_0 : i32, i32
  }
  func.func @transform_13(%arg0: i32) -> (i32, i32) {
    %c0_i32 = arith.constant 0 : i32
    %c0_i32_0 = arith.constant 0 : i32
    %c0_i32_1 = arith.constant 0 : i32
    return %c0_i32, %c0_i32_0 : i32, i32
  }
  func.func @transform_14(%arg0: i32) -> (i32, i32) {
    %c0_i32 = arith.constant 0 : i32
    %c0_i32_0 = arith.constant 0 : i32
    %c0_i32_1 = arith.constant 0 : i32
    return %c0_i32, %c0_i32_0 : i32, i32
  }
  func.func @transform_15(%arg0: i32) -> (i32, i32) {
    %c0_i32 = arith.constant 0 : i32
    %c0_i32_0 = arith.constant 0 : i32
    %c0_i32_1 = arith.constant 0 : i32
    return %c0_i32, %c0_i32_0 : i32, i32
  }
  func.func @transform_16(%arg0: i32) -> (i32, i32) {
    %c0_i32 = arith.constant 0 : i32
    %c0_i32_0 = arith.constant 0 : i32
    %c0_i32_1 = arith.constant 0 : i32
    return %c0_i32, %c0_i32_0 : i32, i32
  }
  func.func @transform_17(%arg0: i32) -> (i32, i32) {
    %c0_i32 = arith.constant 0 : i32
    %c0_i32_0 = arith.constant 0 : i32
    %c0_i32_1 = arith.constant 0 : i32
    return %c0_i32, %c0_i32_0 : i32, i32
  }
  func.func @transform_18(%arg0: i32) -> (i32, i32, i32) {
    %c0_i32 = arith.constant 0 : i32
    %c0_i32_0 = arith.constant 0 : i32
    %c0_i32_1 = arith.constant 0 : i32
    return %arg0, %c0_i32, %c0_i32_0 : i32, i32, i32
  }
}

</mosaic_0001>

<llo_original>
// kernel: tpu_custom_call.1
$region0: #{tpu_custom_call.1}
  #allocation0 [shape = 'u32[]', space=smem, size = 0x4, offset = 0x4, fixed_abs, tag = 'smem constant byte address 0x4 - core index']
  #allocation1 [shape = 'u32[144,128]{1,0:T(1,128)}', space=vmem, size = 0x12000, scoped, tag = 'internal scratch']
  %s0 = inlined_call_operand.vmem [shape: f32[92,256], index: 0, kind: input, shape index: {}]
  %s1 = inlined_call_operand.hbm [shape: bf16[768,256], index: 1, kind: input, shape index: {}]
  %s2 = inlined_call_operand.vmem [shape: f32[1,256], index: 2, kind: input, shape index: {}]
  %s3 = inlined_call_operand.hbm [shape: bf16[768,256], index: 3, kind: input, shape index: {}]
  %s4 = inlined_call_operand.vmem [shape: f32[1,256], index: 4, kind: input, shape index: {}]
  %s5 = inlined_call_operand.hbm [shape: bf16[768,256], index: 5, kind: input, shape index: {}]
  %s6 = inlined_call_operand.vmem [shape: f32[1,256], index: 6, kind: input, shape index: {}]
  %s7 = inlined_call_operand.hbm [shape: bf16[768,256], index: 7, kind: input, shape index: {}]
  %s8 = inlined_call_operand.vmem [shape: f32[1,256], index: 8, kind: input, shape index: {}]
  %s9 = inlined_call_operand.hbm [shape: bf16[768,256], index: 9, kind: input, shape index: {}]
  %s10 = inlined_call_operand.vmem [shape: f32[1,256], index: 10, kind: input, shape index: {}]
  %s11 = inlined_call_operand.hbm [shape: bf16[768,256], index: 11, kind: input, shape index: {}]
  %s12 = inlined_call_operand.vmem [shape: f32[1,256], index: 12, kind: input, shape index: {}]
  %s13 = inlined_call_operand.vmem [shape: f32[46,92], index: 13, kind: input, shape index: {}]
  %s14 = inlined_call_operand.vmem [shape: f32[23,46], index: 14, kind: input, shape index: {}]
  %s15 = inlined_call_operand.vmem [shape: f32[256,16], index: 15, kind: input, shape index: {}]
  %s16 = inlined_call_operand.vmem [shape: f32[8,23], index: 16, kind: input, shape index: {}]
  %s17 = inlined_call_operand.vmem [shape: f32[8,1], index: 17, kind: input, shape index: {}]
  %s18 = inlined_call_operand.hbm [shape: f32[1,8,16], index: 18, kind: output, shape index: {}]
  %s19 = sld [smem:[#allocation0]]
  $region106: #{tpu_custom_call.1} parent=0
    _
  %s21 = ssub.s32 1, %s19
  %s22 = scalar_select 0, %s21, %s19
  $region1: #{tpu_custom_call.1} parent=0
    #allocation2 [shape = 'u8[393216]{0}', space=vmem, size = 0x60000, scoped, tag = 'input window, operand 1, single buffered']
    #allocation3 [shape = 's32[1]{0}', space=sflag, size = 0x4, scoped, tag = 'scoped memory for tpu_custom_call.1']
    #allocation4 [shape = 's32[1]{0}', space=sflag, size = 0x4, scoped, tag = 'scoped memory for tpu_custom_call.1']
    #allocation5 [shape = 'u8[393216]{0}', space=vmem, size = 0x60000, scoped, tag = 'input window, operand 3, single buffered']
    #allocation6 [shape = 's32[1]{0}', space=sflag, size = 0x4, scoped, tag = 'scoped memory for tpu_custom_call.1']
    #allocation7 [shape = 'u8[393216]{0}', space=vmem, size = 0x60000, scoped, tag = 'input window, operand 5, single buffered']
    #allocation8 [shape = 'u8[393216]{0}', space=vmem, size = 0x60000, scoped, tag = 'input window, operand 7, single buffered']
    #allocation9 [shape = 's32[1]{0}', space=sflag, size = 0x4, scoped, tag = 'scoped memory for tpu_custom_call.1']
    #allocation10 [shape = 'u8[393216]{0}', space=vmem, size = 0x60000, scoped, tag = 'input window, operand 9, single buffered']
    #allocation11 [shape = 'u8[393216]{0}', space=vmem, size = 0x60000, scoped, tag = 'input window, operand 11, single buffered']
    #allocation12 [shape = 's32[1]{0}', space=sflag, size = 0x4, scoped, tag = 'scoped memory for tpu_custom_call.1']
    #allocation13 [shape = 'u8[4096]{0}', space=vmem, size = 0x1000, scoped, tag = 'output window, operand 0, single buffered']
    %23 = vsyncpa [#allocation3], 0
    %24 = vsyncpa [#allocation6], 0
    %25 = vsyncpa [#allocation9], 0
    %26 = vsyncpa [#allocation12], 0
    %27 = vsyncpa [#allocation4], 0
    // Predicated region
    $region2: #{tpu_custom_call.1} parent=1 // pred_check
      _
    $region3: #{tpu_custom_call.1} parent=1 // pred_check_branch
      %29 = sbr.rel (0) target = $region5
    $region4: #{tpu_custom_call.1} parent=1 // pred_region
      _
    $region5: #{tpu_custom_call.1} parent=1 // pred_fallthru
      _
    // Predicated region
    $region6: #{tpu_custom_call.1} parent=1 // pred_check
      _
    $region7: #{tpu_custom_call.1} parent=1 // pred_check_branch
      %31 = sbr.rel (0) target = $region9
    $region8: #{tpu_custom_call.1} parent=1 // pred_region
      %s33 = ssub.s32 12288, 12288
      %34 = vsyncadd [#allocation3], %s33
      %s35 = sshll.u32 [#allocation2], 4
      %s36 = int_to_ptr.vmem [resolvable:$true] %s35
      %41 = dma.hbm_to_vmem [thread:$0]  %s1, 12288, %s36, [#allocation3], 128, 128, 8
    $region9: #{tpu_custom_call.1} parent=1 // pred_fallthru
      _
    // Predicated region
    $region10: #{tpu_custom_call.1} parent=1 // pred_check
      _
    $region11: #{tpu_custom_call.1} parent=1 // pred_check_branch
      %43 = sbr.rel (0) target = $region13
    $region12: #{tpu_custom_call.1} parent=1 // pred_region
      _
    $region13: #{tpu_custom_call.1} parent=1 // pred_fallthru
      _
    // Predicated region
    $region14: #{tpu_custom_call.1} parent=1 // pred_check
      _
    $region15: #{tpu_custom_call.1} parent=1 // pred_check_branch
      %45 = sbr.rel (0) target = $region17
    $region16: #{tpu_custom_call.1} parent=1 // pred_region
      %s47 = ssub.s32 12288, 12288
      %48 = vsyncadd [#allocation6], %s47
      %s49 = sshll.u32 [#allocation5], 4
      %s50 = int_to_ptr.vmem [resolvable:$true] %s49
      %55 = dma.hbm_to_vmem [thread:$0]  %s3, 12288, %s50, [#allocation6], 128, 128, 8
    $region17: #{tpu_custom_call.1} parent=1 // pred_fallthru
      _
    // Predicated region
    $region18: #{tpu_custom_call.1} parent=1 // pred_check
      _
    $region19: #{tpu_custom_call.1} parent=1 // pred_check_branch
      %57 = sbr.rel (0) target = $region21
    $region20: #{tpu_custom_call.1} parent=1 // pred_region
      _
    $region21: #{tpu_custom_call.1} parent=1 // pred_fallthru
      _
    // Predicated region
    $region22: #{tpu_custom_call.1} parent=1 // pred_check
      _
    $region23: #{tpu_custom_call.1} parent=1 // pred_check_branch
      %59 = sbr.rel (0) target = $region25
    $region24: #{tpu_custom_call.1} parent=1 // pred_region
      %s61 = ssub.s32 12288, 12288
      %62 = vsyncadd [#allocation6], %s61
      %s63 = sshll.u32 [#allocation7], 4
      %s64 = int_to_ptr.vmem [resolvable:$true] %s63
      %69 = dma.hbm_to_vmem [thread:$0]  %s5, 12288, %s64, [#allocation6], 128, 128, 8
    $region25: #{tpu_custom_call.1} parent=1 // pred_fallthru
      _
    // Predicated region
    $region26: #{tpu_custom_call.1} parent=1 // pred_check
      _
    $region27: #{tpu_custom_call.1} parent=1 // pred_check_branch
      %71 = sbr.rel (0) target = $region29
    $region28: #{tpu_custom_call.1} parent=1 // pred_region
      _
    $region29: #{tpu_custom_call.1} parent=1 // pred_fallthru
      _
    // Predicated region
    $region30: #{tpu_custom_call.1} parent=1 // pred_check
      _
    $region31: #{tpu_custom_call.1} parent=1 // pred_check_branch
      %73 = sbr.rel (0) target = $region33
    $region32: #{tpu_custom_call.1} parent=1 // pred_region
      %s75 = ssub.s32 12288, 12288
      %76 = vsyncadd [#allocation9], %s75
      %s77 = sshll.u32 [#allocation8], 4
      %s78 = int_to_ptr.vmem [resolvable:$true] %s77
      %83 = dma.hbm_to_vmem [thread:$0]  %s7, 12288, %s78, [#allocation9], 128, 128, 8
    $region33: #{tpu_custom_call.1} parent=1 // pred_fallthru
      _
    // Predicated region
    $region34: #{tpu_custom_call.1} parent=1 // pred_check
      _
    $region35: #{tpu_custom_call.1} parent=1 // pred_check_branch
      %85 = sbr.rel (0) target = $region37
    $region36: #{tpu_custom_call.1} parent=1 // pred_region
      _
    $region37: #{tpu_custom_call.1} parent=1 // pred_fallthru
      _
    // Predicated region
    $region38: #{tpu_custom_call.1} parent=1 // pred_check
      _
    $region39: #{tpu_custom_call.1} parent=1 // pred_check_branch
      %87 = sbr.rel (0) target = $region41
    $region40: #{tpu_custom_call.1} parent=1 // pred_region
      %s89 = ssub.s32 12288, 12288
      %90 = vsyncadd [#allocation9], %s89
      %s91 = sshll.u32 [#allocation10], 4
      %s92 = int_to_ptr.vmem [resolvable:$true] %s91
      %97 = dma.hbm_to_vmem [thread:$0]  %s9, 12288, %s92, [#allocation9], 128, 128, 8
    $region41: #{tpu_custom_call.1} parent=1 // pred_fallthru
      _
    // Predicated region
    $region42: #{tpu_custom_call.1} parent=1 // pred_check
      _
    $region43: #{tpu_custom_call.1} parent=1 // pred_check_branch
      %99 = sbr.rel (0) target = $region45
    $region44: #{tpu_custom_call.1} parent=1 // pred_region
      _
    $region45: #{tpu_custom_call.1} parent=1 // pred_fallthru
      _
    // Predicated region
    $region46: #{tpu_custom_call.1} parent=1 // pred_check
      _
    $region47: #{tpu_custom_call.1} parent=1 // pred_check_branch
      %101 = sbr.rel (0) target = $region49
    $region48: #{tpu_custom_call.1} parent=1 // pred_region
      %s103 = ssub.s32 12288, 12288
      %104 = vsyncadd [#allocation12], %s103
      %s105 = sshll.u32 [#allocation11], 4
      %s106 = int_to_ptr.vmem [resolvable:$true] %s105
      %111 = dma.hbm_to_vmem [thread:$0]  %s11, 12288, %s106, [#allocation12], 128, 128, 8
    $region49: #{tpu_custom_call.1} parent=1 // pred_fallthru
      _
    // Predicated region
    $region50: #{tpu_custom_call.1} parent=1 // pred_check
      _
    $region51: #{tpu_custom_call.1} parent=1 // pred_check_branch
      %113 = sbr.rel (0) target = $region53
    $region52: #{tpu_custom_call.1} parent=1 // pred_region
      _
    $region53: #{tpu_custom_call.1} parent=1 // pred_fallthru
      _
    // Predicated region
    $region54: #{tpu_custom_call.1} parent=1 // pred_check
      _
    $region55: #{tpu_custom_call.1} parent=1 // pred_check_branch
      %115 = sbr.rel (0) target = $region57
    $region56: #{tpu_custom_call.1} parent=1 // pred_region
      _
    $region57: #{tpu_custom_call.1} parent=1 // pred_fallthru
      _
    // Predicated region
    $region58: #{tpu_custom_call.1} parent=1 // pred_check
      _
    $region59: #{tpu_custom_call.1} parent=1 // pred_check_branch
      %117 = sbr.rel (0) target = $region61
    $region60: #{tpu_custom_call.1} parent=1 // pred_region
      _
    $region61: #{tpu_custom_call.1} parent=1 // pred_fallthru
      _
    // Predicated region
    $region62: #{tpu_custom_call.1} parent=1 // pred_check
      _
    $region63: #{tpu_custom_call.1} parent=1 // pred_check_branch
      %119 = sbr.rel (0) target = $region65
    $region64: #{tpu_custom_call.1} parent=1 // pred_region
      _
    $region65: #{tpu_custom_call.1} parent=1 // pred_fallthru
      _
    // Predicated region
    $region66: #{tpu_custom_call.1} parent=1 // pred_check
      _
    $region67: #{tpu_custom_call.1} parent=1 // pred_check_branch
      %121 = sbr.rel (0) target = $region69
    $region68: #{tpu_custom_call.1} parent=1 // pred_region
      _
    $region69: #{tpu_custom_call.1} parent=1 // pred_fallthru
      _
    // Predicated region
    $region70: #{tpu_custom_call.1} parent=1 // pred_check
      _
    $region71: #{tpu_custom_call.1} parent=1 // pred_check_branch
      %123 = sbr.rel (0) target = $region73
    $region72: #{tpu_custom_call.1} parent=1 // pred_region
      _
    $region73: #{tpu_custom_call.1} parent=1 // pred_fallthru
      _
    // Predicated region
    $region74: #{tpu_custom_call.1} parent=1 // pred_check
      _
    $region75: #{tpu_custom_call.1} parent=1 // pred_check_branch
      %125 = sbr.rel (0) target = $region77
    $region76: #{tpu_custom_call.1} parent=1 // pred_region
      %126 = dma.done [#allocation3], 12288
    $region77: #{tpu_custom_call.1} parent=1 // pred_fallthru
      _
    // Predicated region
    $region78: #{tpu_custom_call.1} parent=1 // pred_check
      _
    $region79: #{tpu_custom_call.1} parent=1 // pred_check_branch
      %128 = sbr.rel (0) target = $region81
    $region80: #{tpu_custom_call.1} parent=1 // pred_region
      %129 = dma.done [#allocation6], 12288
    $region81: #{tpu_custom_call.1} parent=1 // pred_fallthru
      _
    // Predicated region
    $region82: #{tpu_custom_call.1} parent=1 // pred_check
      _
    $region83: #{tpu_custom_call.1} parent=1 // pred_check_branch
      %131 = sbr.rel (0) target = $region85
    $region84: #{tpu_custom_call.1} parent=1 // pred_region
      %132 = dma.done [#allocation6], 12288
    $region85: #{tpu_custom_call.1} parent=1 // pred_fallthru
      _
    // Predicated region
    $region86: #{tpu_custom_call.1} parent=1 // pred_check
      _
    $region87: #{tpu_custom_call.1} parent=1 // pred_check_branch
      %134 = sbr.rel (0) target = $region89
    $region88: #{tpu_custom_call.1} parent=1 // pred_region
      %135 = dma.done [#allocation9], 12288
    $region89: #{tpu_custom_call.1} parent=1 // pred_fallthru
      _
    // Predicated region
    $region90: #{tpu_custom_call.1} parent=1 // pred_check
      _
    $region91: #{tpu_custom_call.1} parent=1 // pred_check_branch
      %137 = sbr.rel (0) target = $region93
    $region92: #{tpu_custom_call.1} parent=1 // pred_region
      %138 = dma.done [#allocation9], 12288
    $region93: #{tpu_custom_call.1} parent=1 // pred_fallthru
      _
    // Predicated region
    $region94: #{tpu_custom_call.1} parent=1 // pred_check
      _
    $region95: #{tpu_custom_call.1} parent=1 // pred_check_branch
      %140 = sbr.rel (0) target = $region97
    $region96: #{tpu_custom_call.1} parent=1 // pred_region
      %141 = dma.done [#allocation12], 12288
    $region97: #{tpu_custom_call.1} parent=1 // pred_fallthru
      _
    %v142 = vlaneseq
    %v143 = vshrl.u32 %v142, 7
    %v144 = vadd.s32 %v143, 8
    %v145 = vadd.s32 %v143, 16
    %v146 = vadd.s32 %v143, 24
    %v147 = vadd.s32 %v143, 32
    %v148 = vadd.s32 %v143, 40
    %v149 = vadd.s32 %v143, 48
    %v150 = vadd.s32 %v143, 56
    %v151 = vadd.s32 %v143, 64
    %v152 = vadd.s32 %v143, 72
    %v153 = vadd.s32 %v143, 80
    %v154 = vadd.s32 %v143, 88
    %v155 = vld [vmem:[%s0] sm:$0xff]
    %v156 = vld [vmem:[%s0 + $0x8] sm:$0xff]
    %v157 = vld [vmem:[%s0 + $0x10] sm:$0xff]
    %v158 = vld [vmem:[%s0 + $0x18] sm:$0xff]
    %v159 = vld [vmem:[%s0 + $0x20] sm:$0xff]
    %v160 = vld [vmem:[%s0 + $0x28] sm:$0xff]
    %v161 = vld [vmem:[%s0 + $0x30] sm:$0xff]
    %v162 = vld [vmem:[%s0 + $0x38] sm:$0xff]
    %v163 = vld [vmem:[%s0 + $0x40] sm:$0xff]
    %v164 = vld [vmem:[%s0 + $0x48] sm:$0xff]
    %v165 = vld [vmem:[%s0 + $0x50] sm:$0xff]
    %v166 = vld [vmem:[%s0 + $0x58] sm:$0xff]
    %v167 = vld [vmem:[%s0 + $0x60] sm:$0xff]
    %v168 = vld [vmem:[%s0 + $0x68] sm:$0xff]
    %v169 = vld [vmem:[%s0 + $0x70] sm:$0xff]
    %v170 = vld [vmem:[%s0 + $0x78] sm:$0xff]
    %v171 = vld [vmem:[%s0 + $0x80] sm:$0xff]
    %v172 = vld [vmem:[%s0 + $0x88] sm:$0xff]
    %v173 = vld [vmem:[%s0 + $0x90] sm:$0xff]
    %v174 = vld [vmem:[%s0 + $0x98] sm:$0xff]
    %v175 = vld [vmem:[%s0 + $0xa0] sm:$0xff]
    %v176 = vld [vmem:[%s0 + $0xa8] sm:$0xff]
    %v177 = vld [vmem:[%s0 + $0xb0] sm:$0xf]
    %v178 = vld [vmem:[%s0 + $0xb8] sm:$0xf]
    %vm179 = vcmp.eq.s32.totalorder %v143, 0
    %vm180 = vcmp.eq.s32.totalorder %v144, 0
    %vm181 = vcmp.eq.s32.totalorder %v145, 0
    %vm182 = vcmp.eq.s32.totalorder %v146, 0
    %vm183 = vcmp.eq.s32.totalorder %v147, 0
    %vm184 = vcmp.eq.s32.totalorder %v148, 0
    %vm185 = vcmp.eq.s32.totalorder %v149, 0
    %vm186 = vcmp.eq.s32.totalorder %v150, 0
    %vm187 = vcmp.eq.s32.totalorder %v151, 0
    %vm188 = vcmp.eq.s32.totalorder %v152, 0
    %vm189 = vcmp.eq.s32.totalorder %v153, 0
    %vm190 = vcmp.eq.s32.totalorder %v154, 0
    %vm191 = vcmask 1047556
    %v192 = vrot.slane %v155, 4
    %v193 = vsel %vm191, %v192, %v177
    %v194 = vrot.slane %v156, 4
    %v195 = vsel %vm191, %v194, %v178
    %v196 = vrot.slane %v157, 4
    %v197 = vrot.slane %v158, 4
    %v198 = vrot.slane %v159, 4
    %v199 = vrot.slane %v160, 4
    %v200 = vrot.slane %v161, 4
    %v201 = vrot.slane %v162, 4
    %v202 = vrot.slane %v163, 4
    %v203 = vrot.slane %v164, 4
    %v204 = vrot.slane %v165, 4
    %v205 = vrot.slane %v166, 4
    %v206 = vrot.slane %v167, 4
    %v207 = vrot.slane %v168, 4
    %v208 = vrot.slane %v169, 4
    %v209 = vrot.slane %v170, 4
    %v210 = vrot.slane %v171, 4
    %v211 = vrot.slane %v172, 4
    %v212 = vrot.slane %v173, 4
    %v213 = vrot.slane %v174, 4
    %v214 = vrot.slane %v175, 4
    %v215 = vrot.slane %v176, 4
    %v216 = vrot.slane %v193, 4
    %v217 = vrot.slane %v195, 4
    %v218 = vsel %vm191, %v196, %v192
    %v219 = vsel %vm191, %v197, %v194
    %v220 = vsel %vm191, %v198, %v196
    %v221 = vsel %vm191, %v199, %v197
    %v222 = vsel %vm191, %v200, %v198
    %v223 = vsel %vm191, %v201, %v199
    %v224 = vsel %vm191, %v202, %v200
    %v225 = vsel %vm191, %v203, %v201
    %v226 = vsel %vm191, %v204, %v202
    %v227 = vsel %vm191, %v205, %v203
    %v228 = vsel %vm191, %v206, %v204
    %v229 = vsel %vm191, %v207, %v205
    %v230 = vsel %vm191, %v208, %v206
    %v231 = vsel %vm191, %v209, %v207
    %v232 = vsel %vm191, %v210, %v208
    %v233 = vsel %vm191, %v211, %v209
    %v234 = vsel %vm191, %v212, %v210
    %v235 = vsel %vm191, %v213, %v211
    %v236 = vsel %vm191, %v214, %v212
    %v237 = vsel %vm191, %v215, %v213
    %v238 = vsel %vm191, %v216, %v214
    %v239 = vsel %vm191, %v217, %v215
    %v240 = vsel %vm179, 1, 0
    %v241 = vsel %vm180, 1, 0
    %v242 = vsel %vm181, 1, 0
    %v243 = vsel %vm182, 1, 0
    %v244 = vsel %vm183, 1, 0
    %v245 = vsel %vm184, 1, 0
    %v246 = vsel %vm185, 1, 0
    %v247 = vsel %vm186, 1, 0
    %v248 = vsel %vm187, 1, 0
    %v249 = vsel %vm188, 1, 0
    %v250 = vsel %vm189, 1, 0
    %v251 = vsel %vm190, 1, 0
    %vm252 = vcmp.eq.s32.totalorder %v240, 1
    %vm253 = vcmp.eq.s32.totalorder %v241, 1
    %vm254 = vcmp.eq.s32.totalorder %v242, 1
    %vm255 = vcmp.eq.s32.totalorder %v243, 1
    %vm256 = vcmp.eq.s32.totalorder %v244, 1
    %vm257 = vcmp.eq.s32.totalorder %v245, 1
    %vm258 = vcmp.eq.s32.totalorder %v246, 1
    %vm259 = vcmp.eq.s32.totalorder %v247, 1
    %vm260 = vcmp.eq.s32.totalorder %v248, 1
    %vm261 = vcmp.eq.s32.totalorder %v249, 1
    %vm262 = vcmp.eq.s32.totalorder %v250, 1
    %vm263 = vcmp.eq.s32.totalorder %v251, 1
    %vm288 = vcmask 1044480
    %v289 = vrot.slane %v193, 3
    %v290 = vrot.slane %v218, 3
    %v291 = vsel %vm288, %v289, %v290
    %v292 = vrot.slane %v195, 3
    %v293 = vrot.slane %v219, 3
    %v294 = vsel %vm288, %v292, %v293
    %v295 = vrot.slane %v220, 3
    %v296 = vsel %vm288, %v290, %v295
    %v297 = vrot.slane %v221, 3
    %v298 = vsel %vm288, %v293, %v297
    %v299 = vrot.slane %v222, 3
    %v300 = vsel %vm288, %v295, %v299
    %v301 = vrot.slane %v223, 3
    %v302 = vsel %vm288, %v297, %v301
    %v303 = vrot.slane %v224, 3
    %v304 = vsel %vm288, %v299, %v303
    %v305 = vrot.slane %v225, 3
    %v306 = vsel %vm288, %v301, %v305
    %v307 = vrot.slane %v226, 3
    %v308 = vsel %vm288, %v303, %v307
    %v309 = vrot.slane %v227, 3
    %v310 = vsel %vm288, %v305, %v309
    %v311 = vrot.slane %v228, 3
    %v312 = vsel %vm288, %v307, %v311
    %v313 = vrot.slane %v229, 3
    %v314 = vsel %vm288, %v309, %v313
    %v315 = vrot.slane %v230, 3
    %v316 = vsel %vm288, %v311, %v315
    %v317 = vrot.slane %v231, 3
    %v318 = vsel %vm288, %v313, %v317
    %v319 = vrot.slane %v232, 3
    %v320 = vsel %vm288, %v315, %v319
    %v321 = vrot.slane %v233, 3
    %v322 = vsel %vm288, %v317, %v321
    %v323 = vrot.slane %v234, 3
    %v324 = vsel %vm288, %v319, %v323
    %v325 = vrot.slane %v235, 3
    %v326 = vsel %vm288, %v321, %v325
    %v327 = vrot.slane %v236, 3
    %v328 = vsel %vm288, %v323, %v327
    %v329 = vrot.slane %v237, 3
    %v330 = vsel %vm288, %v325, %v329
    %v331 = vrot.slane %v238, 3
    %v332 = vsel %vm288, %v327, %v331
    %v333 = vrot.slane %v239, 3
    %v334 = vsel %vm288, %v329, %v333
    %v359 = vsel %vm252, 0.0, %v291
    %v360 = vsel %vm252, 0.0, %v294
    %v361 = vsel %vm253, 0.0, %v296
    %v362 = vsel %vm253, 0.0, %v298
    %v363 = vsel %vm254, 0.0, %v300
    %v364 = vsel %vm254, 0.0, %v302
    %v365 = vsel %vm255, 0.0, %v304
    %v366 = vsel %vm255, 0.0, %v306
    %v367 = vsel %vm256, 0.0, %v308
    %v368 = vsel %vm256, 0.0, %v310
    %v369 = vsel %vm257, 0.0, %v312
    %v370 = vsel %vm257, 0.0, %v314
    %v371 = vsel %vm258, 0.0, %v316
    %v372 = vsel %vm258, 0.0, %v318
    %v373 = vsel %vm259, 0.0, %v320
    %v374 = vsel %vm259, 0.0, %v322
    %v375 = vsel %vm260, 0.0, %v324
    %v376 = vsel %vm260, 0.0, %v326
    %v377 = vsel %vm261, 0.0, %v328
    %v378 = vsel %vm261, 0.0, %v330
    %v379 = vsel %vm262, 0.0, %v332
    %v380 = vsel %vm262, 0.0, %v334
    %v381 = vsel %vm263, 0.0, %v331
    %v382 = vsel %vm263, 0.0, %v333
    %vm383 = vcmp.eq.s32.totalorder %v143, 91
    %vm384 = vcmp.eq.s32.totalorder %v144, 91
    %vm385 = vcmp.eq.s32.totalorder %v145, 91
    %vm386 = vcmp.eq.s32.totalorder %v146, 91
    %vm387 = vcmp.eq.s32.totalorder %v147, 91
    %vm388 = vcmp.eq.s32.totalorder %v148, 91
    %vm389 = vcmp.eq.s32.totalorder %v149, 91
    %vm390 = vcmp.eq.s32.totalorder %v150, 91
    %vm391 = vcmp.eq.s32.totalorder %v151, 91
    %vm392 = vcmp.eq.s32.totalorder %v152, 91
    %vm393 = vcmp.eq.s32.totalorder %v153, 91
    %vm394 = vcmp.eq.s32.totalorder %v154, 91
    %v395 = vsel %vm383, 1, 0
    %v396 = vsel %vm384, 1, 0
    %v397 = vsel %vm385, 1, 0
    %v398 = vsel %vm386, 1, 0
    %v399 = vsel %vm387, 1, 0
    %v400 = vsel %vm388, 1, 0
    %v401 = vsel %vm389, 1, 0
    %v402 = vsel %vm390, 1, 0
    %v403 = vsel %vm391, 1, 0
    %v404 = vsel %vm392, 1, 0
    %v405 = vsel %vm393, 1, 0
    %v406 = vsel %vm394, 1, 0
    %vm407 = vcmp.eq.s32.totalorder %v395, 1
    %vm408 = vcmp.eq.s32.totalorder %v396, 1
    %vm409 = vcmp.eq.s32.totalorder %v397, 1
    %vm410 = vcmp.eq.s32.totalorder %v398, 1
    %vm411 = vcmp.eq.s32.totalorder %v399, 1
    %vm412 = vcmp.eq.s32.totalorder %v400, 1
    %vm413 = vcmp.eq.s32.totalorder %v401, 1
    %vm414 = vcmp.eq.s32.totalorder %v402, 1
    %vm415 = vcmp.eq.s32.totalorder %v403, 1
    %vm416 = vcmp.eq.s32.totalorder %v404, 1
    %vm417 = vcmp.eq.s32.totalorder %v405, 1
    %vm418 = vcmp.eq.s32.totalorder %v406, 1
    %vm441 = vcmask 1046528
    %v442 = vrot.slane %v155, 1
    %v443 = vrot.slane %v157, 1
    %v444 = vsel %vm441, %v442, %v443
    %v445 = vrot.slane %v156, 1
    %v446 = vrot.slane %v158, 1
    %v447 = vsel %vm441, %v445, %v446
    %v448 = vrot.slane %v159, 1
    %v449 = vsel %vm441, %v443, %v448
    %v450 = vrot.slane %v160, 1
    %v451 = vsel %vm441, %v446, %v450
    %v452 = vrot.slane %v161, 1
    %v453 = vsel %vm441, %v448, %v452
    %v454 = vrot.slane %v162, 1
    %v455 = vsel %vm441, %v450, %v454
    %v456 = vrot.slane %v163, 1
    %v457 = vsel %vm441, %v452, %v456
    %v458 = vrot.slane %v164, 1
    %v459 = vsel %vm441, %v454, %v458
    %v460 = vrot.slane %v165, 1
    %v461 = vsel %vm441, %v456, %v460
    %v462 = vrot.slane %v166, 1
    %v463 = vsel %vm441, %v458, %v462
    %v464 = vrot.slane %v167, 1
    %v465 = vsel %vm441, %v460, %v464
    %v466 = vrot.slane %v168, 1
    %v467 = vsel %vm441, %v462, %v466
    %v468 = vrot.slane %v169, 1
    %v469 = vsel %vm441, %v464, %v468
    %v470 = vrot.slane %v170, 1
    %v471 = vsel %vm441, %v466, %v470
    %v472 = vrot.slane %v171, 1
    %v473 = vsel %vm441, %v468, %v472
    %v474 = vrot.slane %v172, 1
    %v475 = vsel %vm441, %v470, %v474
    %v476 = vrot.slane %v173, 1
    %v477 = vsel %vm441, %v472, %v476
    %v478 = vrot.slane %v174, 1
    %v479 = vsel %vm441, %v474, %v478
    %v480 = vrot.slane %v175, 1
    %v481 = vsel %vm441, %v476, %v480
    %v482 = vrot.slane %v176, 1
    %v483 = vsel %vm441, %v478, %v482
    %v484 = vrot.slane %v193, 1
    %v485 = vsel %vm441, %v480, %v484
    %v486 = vrot.slane %v195, 1
    %v487 = vsel %vm441, %v482, %v486
    %v512 = vsel %vm407, 0.0, %v444
    %v513 = vsel %vm407, 0.0, %v447
    %v514 = vsel %vm408, 0.0, %v449
    %v515 = vsel %vm408, 0.0, %v451
    %v516 = vsel %vm409, 0.0, %v453
    %v517 = vsel %vm409, 0.0, %v455
    %v518 = vsel %vm410, 0.0, %v457
    %v519 = vsel %vm410, 0.0, %v459
    %v520 = vsel %vm411, 0.0, %v461
    %v521 = vsel %vm411, 0.0, %v463
    %v522 = vsel %vm412, 0.0, %v465
    %v523 = vsel %vm412, 0.0, %v467
    %v524 = vsel %vm413, 0.0, %v469
    %v525 = vsel %vm413, 0.0, %v471
    %v526 = vsel %vm414, 0.0, %v473
    %v527 = vsel %vm414, 0.0, %v475
    %v528 = vsel %vm415, 0.0, %v477
    %v529 = vsel %vm415, 0.0, %v479
    %v530 = vsel %vm416, 0.0, %v481
    %v531 = vsel %vm416, 0.0, %v483
    %v532 = vsel %vm417, 0.0, %v485
    %v533 = vsel %vm417, 0.0, %v487
    %v534 = vsel %vm418, 0.0, %v484
    %v535 = vsel %vm418, 0.0, %v486
    %v536 = vpack.c.bf16 %v361, %v359
    %v537 = vpack.c.bf16 %v362, %v360
    %v538 = vpack.c.bf16 %v157, %v155
    %v539 = vpack.c.bf16 %v158, %v156
    %v540 = vpack.c.bf16 %v514, %v512
    %v541 = vpack.c.bf16 %v515, %v513
    %v542 = vpack.c.bf16 %v365, %v363
    %v543 = vpack.c.bf16 %v366, %v364
    %v544 = vpack.c.bf16 %v161, %v159
    %v545 = vpack.c.bf16 %v162, %v160
    %v546 = vpack.c.bf16 %v518, %v516
    %v547 = vpack.c.bf16 %v519, %v517
    %v548 = vpack.c.bf16 %v369, %v367
    %v549 = vpack.c.bf16 %v370, %v368
    %v550 = vpack.c.bf16 %v165, %v163
    %v551 = vpack.c.bf16 %v166, %v164
    %v552 = vpack.c.bf16 %v522, %v520
    %v553 = vpack.c.bf16 %v523, %v521
    %v554 = vpack.c.bf16 %v373, %v371
    %v555 = vpack.c.bf16 %v374, %v372
    %v556 = vpack.c.bf16 %v169, %v167
    %v557 = vpack.c.bf16 %v170, %v168
    %v558 = vpack.c.bf16 %v526, %v524
    %v559 = vpack.c.bf16 %v527, %v525
    %v560 = vpack.c.bf16 %v377, %v375
    %v561 = vpack.c.bf16 %v378, %v376
    %v562 = vpack.c.bf16 %v173, %v171
    %v563 = vpack.c.bf16 %v174, %v172
    %v564 = vpack.c.bf16 %v530, %v528
    %v565 = vpack.c.bf16 %v531, %v529
    %v566 = vpack.c.bf16 %v381, %v379
    %v567 = vpack.c.bf16 %v382, %v380
    %v568 = vpack.c.bf16 %v177, %v175
    %v569 = vpack.c.bf16 %v178, %v176
    %v570 = vpack.c.bf16 %v534, %v532
    %v571 = vpack.c.bf16 %v535, %v533
    %v572 = vld [vmem:[#allocation2] sm:$0xff]
    %v573 = vld [vmem:[#allocation2 + $0x8] sm:$0xff]
    %v574 = vld [vmem:[#allocation2 + $0x10] sm:$0xff]
    %v575 = vld [vmem:[#allocation2 + $0x18] sm:$0xff]
    %v576 = vld [vmem:[#allocation2 + $0x20] sm:$0xff]
    %v577 = vld [vmem:[#allocation2 + $0x28] sm:$0xff]
    %v578 = vld [vmem:[#allocation2 + $0x30] sm:$0xff]
    %v579 = vld [vmem:[#allocation2 + $0x38] sm:$0xff]
    %v580 = vld [vmem:[#allocation2 + $0x40] sm:$0xff]
    %v581 = vld [vmem:[#allocation2 + $0x48] sm:$0xff]
    %v582 = vld [vmem:[#allocation2 + $0x50] sm:$0xff]
    %v583 = vld [vmem:[#allocation2 + $0x58] sm:$0xff]
    %v584 = vld [vmem:[#allocation2 + $0x60] sm:$0xff]
    %v585 = vld [vmem:[#allocation2 + $0x68] sm:$0xff]
    %v586 = vld [vmem:[#allocation2 + $0x70] sm:$0xff]
    %v587 = vld [vmem:[#allocation2 + $0x78] sm:$0xff]
    %v588 = vld [vmem:[#allocation2 + $0x80] sm:$0xff]
    %v589 = vld [vmem:[#allocation2 + $0x88] sm:$0xff]
    %v590 = vld [vmem:[#allocation2 + $0x90] sm:$0xff]
    %v591 = vld [vmem:[#allocation2 + $0x98] sm:$0xff]
    %v592 = vld [vmem:[#allocation2 + $0xa0] sm:$0xff]
    %v593 = vld [vmem:[#allocation2 + $0xa8] sm:$0xff]
    %v594 = vld [vmem:[#allocation2 + $0xb0] sm:$0xff]
    %v595 = vld [vmem:[#allocation2 + $0xb8] sm:$0xff]
    %v596 = vld [vmem:[#allocation2 + $0xc0] sm:$0xff]
    %v597 = vld [vmem:[#allocation2 + $0xc8] sm:$0xff]
    %v598 = vld [vmem:[#allocation2 + $0xd0] sm:$0xff]
    %v599 = vld [vmem:[#allocation2 + $0xd8] sm:$0xff]
    %v600 = vld [vmem:[#allocation2 + $0xe0] sm:$0xff]
    %v601 = vld [vmem:[#allocation2 + $0xe8] sm:$0xff]
    %v602 = vld [vmem:[#allocation2 + $0xf0] sm:$0xff]
    %v603 = vld [vmem:[#allocation2 + $0xf8] sm:$0xff]
    %v604 = vld [vmem:[#allocation2 + $0x100] sm:$0xff]
    %v605 = vld [vmem:[#allocation2 + $0x108] sm:$0xff]
    %v606 = vld [vmem:[#allocation2 + $0x110] sm:$0xff]
    %v607 = vld [vmem:[#allocation2 + $0x118] sm:$0xff]
    %v608 = vld [vmem:[#allocation2 + $0x120] sm:$0xff]
    %v609 = vld [vmem:[#allocation2 + $0x128] sm:$0xff]
    %v610 = vld [vmem:[#allocation2 + $0x130] sm:$0xff]
    %v611 = vld [vmem:[#allocation2 + $0x138] sm:$0xff]
    %v612 = vld [vmem:[#allocation2 + $0x140] sm:$0xff]
    %v613 = vld [vmem:[#allocation2 + $0x148] sm:$0xff]
    %v614 = vld [vmem:[#allocation2 + $0x150] sm:$0xff]
    %v615 = vld [vmem:[#allocation2 + $0x158] sm:$0xff]
    %v616 = vld [vmem:[#allocation2 + $0x160] sm:$0xff]
    %v617 = vld [vmem:[#allocation2 + $0x168] sm:$0xff]
    %v618 = vld [vmem:[#allocation2 + $0x170] sm:$0xff]
    %v619 = vld [vmem:[#allocation2 + $0x178] sm:$0xff]
    %v620 = vld [vmem:[#allocation2 + $0x180] sm:$0xff]
    %v621 = vld [vmem:[#allocation2 + $0x188] sm:$0xff]
    %v622 = vld [vmem:[#allocation2 + $0x190] sm:$0xff]
    %v623 = vld [vmem:[#allocation2 + $0x198] sm:$0xff]
    %v624 = vld [vmem:[#allocation2 + $0x1a0] sm:$0xff]
    %v625 = vld [vmem:[#allocation2 + $0x1a8] sm:$0xff]
    %v626 = vld [vmem:[#allocation2 + $0x1b0] sm:$0xff]
    %v627 = vld [vmem:[#allocation2 + $0x1b8] sm:$0xff]
    %v628 = vld [vmem:[#allocation2 + $0x1c0] sm:$0xff]
    %v629 = vld [vmem:[#allocation2 + $0x1c8] sm:$0xff]
    %v630 = vld [vmem:[#allocation2 + $0x1d0] sm:$0xff]
    %v631 = vld [vmem:[#allocation2 + $0x1d8] sm:$0xff]
    %v632 = vld [vmem:[#allocation2 + $0x1e0] sm:$0xff]
    %v633 = vld [vmem:[#allocation2 + $0x1e8] sm:$0xff]
    %v634 = vld [vmem:[#allocation2 + $0x1f0] sm:$0xff]
    %v635 = vld [vmem:[#allocation2 + $0x1f8] sm:$0xff]
    %v636 = vld [vmem:[#allocation2 + $0x200] sm:$0xff]
    %v637 = vld [vmem:[#allocation2 + $0x208] sm:$0xff]
    %v638 = vld [vmem:[#allocation2 + $0x210] sm:$0xff]
    %v639 = vld [vmem:[#allocation2 + $0x218] sm:$0xff]
    %v640 = vld [vmem:[#allocation2 + $0x220] sm:$0xff]
    %v641 = vld [vmem:[#allocation2 + $0x228] sm:$0xff]
    %v642 = vld [vmem:[#allocation2 + $0x230] sm:$0xff]
    %v643 = vld [vmem:[#allocation2 + $0x238] sm:$0xff]
    %v644 = vld [vmem:[#allocation2 + $0x240] sm:$0xff]
    %v645 = vld [vmem:[#allocation2 + $0x248] sm:$0xff]
    %v646 = vld [vmem:[#allocation2 + $0x250] sm:$0xff]
    %v647 = vld [vmem:[#allocation2 + $0x258] sm:$0xff]
    %v648 = vld [vmem:[#allocation2 + $0x260] sm:$0xff]
    %v649 = vld [vmem:[#allocation2 + $0x268] sm:$0xff]
    %v650 = vld [vmem:[#allocation2 + $0x270] sm:$0xff]
    %v651 = vld [vmem:[#allocation2 + $0x278] sm:$0xff]
    %v652 = vld [vmem:[#allocation2 + $0x280] sm:$0xff]
    %v653 = vld [vmem:[#allocation2 + $0x288] sm:$0xff]
    %v654 = vld [vmem:[#allocation2 + $0x290] sm:$0xff]
    %v655 = vld [vmem:[#allocation2 + $0x298] sm:$0xff]
    %v656 = vld [vmem:[#allocation2 + $0x2a0] sm:$0xff]
    %v657 = vld [vmem:[#allocation2 + $0x2a8] sm:$0xff]
    %v658 = vld [vmem:[#allocation2 + $0x2b0] sm:$0xff]
    %v659 = vld [vmem:[#allocation2 + $0x2b8] sm:$0xff]
    %v660 = vld [vmem:[#allocation2 + $0x2c0] sm:$0xff]
    %v661 = vld [vmem:[#allocation2 + $0x2c8] sm:$0xff]
    %v662 = vld [vmem:[#allocation2 + $0x2d0] sm:$0xff]
    %v663 = vld [vmem:[#allocation2 + $0x2d8] sm:$0xff]
    %v664 = vld [vmem:[#allocation2 + $0x2e0] sm:$0xff]
    %v665 = vld [vmem:[#allocation2 + $0x2e8] sm:$0xff]
    %v666 = vld [vmem:[#allocation2 + $0x2f0] sm:$0xff]
    %v667 = vld [vmem:[#allocation2 + $0x2f8] sm:$0xff]
    %v668 = vld [vmem:[%s2] sm:$0x3]
    %v670 = vlaneseq
    %v671 = vshrl.u32 %v670, 7
    %v672 = vsub.s32 0, %v671
    %v673 = vrot.slane %v668, %v672
    %v674 = vlaneseq
    %v675 = vshrl.u32 %v674, 7
    %v676 = vsub.s32 1, %v675
    %v677 = vrot.slane %v668, %v676
    %v776 = vunpack.c.l.b16 %v572
    %v777 = vunpack.c.h.b16 %v572
    %v778 = vunpack.c.l.b16 %v573
    %v779 = vunpack.c.h.b16 %v573
    %v780 = vunpack.c.l.b16 %v574
    %v781 = vunpack.c.h.b16 %v574
    %v782 = vunpack.c.l.b16 %v575
    %v783 = vunpack.c.h.b16 %v575
    %v784 = vunpack.c.l.b16 %v576
    %v785 = vunpack.c.h.b16 %v576
    %v786 = vunpack.c.l.b16 %v577
    %v787 = vunpack.c.h.b16 %v577
    %v788 = vunpack.c.l.b16 %v578
    %v789 = vunpack.c.h.b16 %v578
    %v790 = vunpack.c.l.b16 %v579
    %v791 = vunpack.c.h.b16 %v579
    %v792 = vunpack.c.l.b16 %v580
    %v793 = vunpack.c.h.b16 %v580
    %v794 = vunpack.c.l.b16 %v581
    %v795 = vunpack.c.h.b16 %v581
    %v796 = vunpack.c.l.b16 %v582
    %v797 = vunpack.c.h.b16 %v582
    %v798 = vunpack.c.l.b16 %v583
    %v799 = vunpack.c.h.b16 %v583
    %v800 = vunpack.c.l.b16 %v584
    %v801 = vunpack.c.h.b16 %v584
    %v802 = vunpack.c.l.b16 %v585
    %v803 = vunpack.c.h.b16 %v585
    %v804 = vunpack.c.l.b16 %v586
    %v805 = vunpack.c.h.b16 %v586
    %v806 = vunpack.c.l.b16 %v587
    %v807 = vunpack.c.h.b16 %v587
    %v808 = vunpack.c.l.b16 %v588
    %v809 = vunpack.c.h.b16 %v588
    %v810 = vunpack.c.l.b16 %v589
    %v811 = vunpack.c.h.b16 %v589
    %v812 = vunpack.c.l.b16 %v590
    %v813 = vunpack.c.h.b16 %v590
    %v814 = vunpack.c.l.b16 %v591
    %v815 = vunpack.c.h.b16 %v591
    %v816 = vunpack.c.l.b16 %v592
    %v817 = vunpack.c.h.b16 %v592
    %v818 = vunpack.c.l.b16 %v593
    %v819 = vunpack.c.h.b16 %v593
    %v820 = vunpack.c.l.b16 %v594
    %v821 = vunpack.c.h.b16 %v594
    %v822 = vunpack.c.l.b16 %v595
    %v823 = vunpack.c.h.b16 %v595
    %v824 = vunpack.c.l.b16 %v596
    %v825 = vunpack.c.h.b16 %v596
    %v826 = vunpack.c.l.b16 %v597
    %v827 = vunpack.c.h.b16 %v597
    %v828 = vunpack.c.l.b16 %v598
    %v829 = vunpack.c.h.b16 %v598
    %v830 = vunpack.c.l.b16 %v599
    %v831 = vunpack.c.h.b16 %v599
    %v832 = vunpack.c.l.b16 %v600
    %v833 = vunpack.c.h.b16 %v600
    %v834 = vunpack.c.l.b16 %v601
    %v835 = vunpack.c.h.b16 %v601
    %v836 = vunpack.c.l.b16 %v602
    %v837 = vunpack.c.h.b16 %v602
    %v838 = vunpack.c.l.b16 %v603
    %v839 = vunpack.c.h.b16 %v603
    %v840 = vunpack.c.l.b16 %v604
    %v841 = vunpack.c.h.b16 %v604
    %v842 = vunpack.c.l.b16 %v605
    %v843 = vunpack.c.h.b16 %v605
    %v844 = vunpack.c.l.b16 %v606
    %v845 = vunpack.c.h.b16 %v606
    %v846 = vunpack.c.l.b16 %v607
    %v847 = vunpack.c.h.b16 %v607
    %v848 = vunpack.c.l.b16 %v608
    %v849 = vunpack.c.h.b16 %v608
    %v850 = vunpack.c.l.b16 %v609
    %v851 = vunpack.c.h.b16 %v609
    %v852 = vunpack.c.l.b16 %v610
    %v853 = vunpack.c.h.b16 %v610
    %v854 = vunpack.c.l.b16 %v611
    %v855 = vunpack.c.h.b16 %v611
    %v856 = vunpack.c.l.b16 %v612
    %v857 = vunpack.c.h.b16 %v612
    %v858 = vunpack.c.l.b16 %v613
    %v859 = vunpack.c.h.b16 %v613
    %v860 = vunpack.c.l.b16 %v614
    %v861 = vunpack.c.h.b16 %v614
    %v862 = vunpack.c.l.b16 %v615
    %v863 = vunpack.c.h.b16 %v615
    %v864 = vunpack.c.l.b16 %v616
    %v865 = vunpack.c.h.b16 %v616
    %v866 = vunpack.c.l.b16 %v617
    %v867 = vunpack.c.h.b16 %v617
    %v868 = vunpack.c.l.b16 %v618
    %v869 = vunpack.c.h.b16 %v618
    %v870 = vunpack.c.l.b16 %v619
    %v871 = vunpack.c.h.b16 %v619
    %v872 = vunpack.c.l.b16 %v620
    %v873 = vunpack.c.h.b16 %v620
    %v874 = vunpack.c.l.b16 %v621
    %v875 = vunpack.c.h.b16 %v621
    %v876 = vunpack.c.l.b16 %v622
    %v877 = vunpack.c.h.b16 %v622
    %v878 = vunpack.c.l.b16 %v623
    %v879 = vunpack.c.h.b16 %v623
    %v880 = vunpack.c.l.b16 %v624
    %v881 = vunpack.c.h.b16 %v624
    %v882 = vunpack.c.l.b16 %v625
    %v883 = vunpack.c.h.b16 %v625
    %v884 = vunpack.c.l.b16 %v626
    %v885 = vunpack.c.h.b16 %v626
    %v886 = vunpack.c.l.b16 %v627
    %v887 = vunpack.c.h.b16 %v627
    %v888 = vunpack.c.l.b16 %v628
    %v889 = vunpack.c.h.b16 %v628
    %v890 = vunpack.c.l.b16 %v629
    %v891 = vunpack.c.h.b16 %v629
    %v892 = vunpack.c.l.b16 %v630
    %v893 = vunpack.c.h.b16 %v630
    %v894 = vunpack.c.l.b16 %v631
    %v895 = vunpack.c.h.b16 %v631
    %v896 = vunpack.c.l.b16 %v632
    %v897 = vunpack.c.h.b16 %v632
    %v898 = vunpack.c.l.b16 %v633
    %v899 = vunpack.c.h.b16 %v633
    %v900 = vunpack.c.l.b16 %v634
    %v901 = vunpack.c.h.b16 %v634
    %v902 = vunpack.c.l.b16 %v635
    %v903 = vunpack.c.h.b16 %v635
    %v904 = vunpack.c.l.b16 %v636
    %v905 = vunpack.c.h.b16 %v636
    %v906 = vunpack.c.l.b16 %v637
    %v907 = vunpack.c.h.b16 %v637
    %v908 = vunpack.c.l.b16 %v638
    %v909 = vunpack.c.h.b16 %v638
    %v910 = vunpack.c.l.b16 %v639
    %v911 = vunpack.c.h.b16 %v639
    %v912 = vunpack.c.l.b16 %v640
    %v913 = vunpack.c.h.b16 %v640
    %v914 = vunpack.c.l.b16 %v641
    %v915 = vunpack.c.h.b16 %v641
    %v916 = vunpack.c.l.b16 %v642
    %v917 = vunpack.c.h.b16 %v642
    %v918 = vunpack.c.l.b16 %v643
    %v919 = vunpack.c.h.b16 %v643
    %v920 = vunpack.c.l.b16 %v644
    %v921 = vunpack.c.h.b16 %v644
    %v922 = vunpack.c.l.b16 %v645
    %v923 = vunpack.c.h.b16 %v645
    %v924 = vunpack.c.l.b16 %v646
    %v925 = vunpack.c.h.b16 %v646
    %v926 = vunpack.c.l.b16 %v647
    %v927 = vunpack.c.h.b16 %v647
    %v928 = vunpack.c.l.b16 %v648
    %v929 = vunpack.c.h.b16 %v648
    %v930 = vunpack.c.l.b16 %v649
    %v931 = vunpack.c.h.b16 %v649
    %v932 = vunpack.c.l.b16 %v650
    %v933 = vunpack.c.h.b16 %v650
    %v934 = vunpack.c.l.b16 %v651
    %v935 = vunpack.c.h.b16 %v651
    %v936 = vunpack.c.l.b16 %v652
    %v937 = vunpack.c.h.b16 %v652
    %v938 = vunpack.c.l.b16 %v653
    %v939 = vunpack.c.h.b16 %v653
    %v940 = vunpack.c.l.b16 %v654
    %v941 = vunpack.c.h.b16 %v654
    %v942 = vunpack.c.l.b16 %v655
    %v943 = vunpack.c.h.b16 %v655
    %v944 = vunpack.c.l.b16 %v656
    %v945 = vunpack.c.h.b16 %v656
    %v946 = vunpack.c.l.b16 %v657
    %v947 = vunpack.c.h.b16 %v657
    %v948 = vunpack.c.l.b16 %v658
    %v949 = vunpack.c.h.b16 %v658
    %v950 = vunpack.c.l.b16 %v659
    %v951 = vunpack.c.h.b16 %v659
    %v952 = vunpack.c.l.b16 %v660
    %v953 = vunpack.c.h.b16 %v660
    %v954 = vunpack.c.l.b16 %v661
    %v955 = vunpack.c.h.b16 %v661
    %v956 = vunpack.c.l.b16 %v662
    %v957 = vunpack.c.h.b16 %v662
    %v958 = vunpack.c.l.b16 %v663
    %v959 = vunpack.c.h.b16 %v663
    %v960 = vunpack.c.l.b16 %v664
    %v961 = vunpack.c.h.b16 %v664
    %v962 = vunpack.c.l.b16 %v665
    %v963 = vunpack.c.h.b16 %v665
    %v964 = vunpack.c.l.b16 %v666
    %v965 = vunpack.c.h.b16 %v666
    %v966 = vunpack.c.l.b16 %v667
    %v967 = vunpack.c.h.b16 %v667
    %v968 = vpack.c.b16 %v778, %v776
    %v969 = vpack.c.b16 %v779, %v777
    %v970 = vpack.c.b16 %v782, %v780
    %v971 = vpack.c.b16 %v783, %v781
    %v972 = vpack.c.b16 %v786, %v784
    %v973 = vpack.c.b16 %v787, %v785
    %v974 = vpack.c.b16 %v790, %v788
    %v975 = vpack.c.b16 %v791, %v789
    %v976 = vpack.c.b16 %v794, %v792
    %v977 = vpack.c.b16 %v795, %v793
    %v978 = vpack.c.b16 %v798, %v796
    %v979 = vpack.c.b16 %v799, %v797
    %v980 = vpack.c.b16 %v802, %v800
    %v981 = vpack.c.b16 %v803, %v801
    %v982 = vpack.c.b16 %v806, %v804
    %v983 = vpack.c.b16 %v807, %v805
    %v984 = vpack.c.b16 %v810, %v808
    %v985 = vpack.c.b16 %v811, %v809
    %v986 = vpack.c.b16 %v814, %v812
    %v987 = vpack.c.b16 %v815, %v813
    %v988 = vpack.c.b16 %v818, %v816
    %v989 = vpack.c.b16 %v819, %v817
    %v990 = vpack.c.b16 %v822, %v820
    %v991 = vpack.c.b16 %v823, %v821
    %v992 = vpack.c.b16 %v826, %v824
    %v993 = vpack.c.b16 %v827, %v825
    %v994 = vpack.c.b16 %v830, %v828
    %v995 = vpack.c.b16 %v831, %v829
    %v996 = vpack.c.b16 %v834, %v832
    %v997 = vpack.c.b16 %v835, %v833
    %v998 = vpack.c.b16 %v838, %v836
    %v999 = vpack.c.b16 %v839, %v837
    %v1000 = vpack.c.b16 %v842, %v840
    %v1001 = vpack.c.b16 %v843, %v841
    %v1002 = vpack.c.b16 %v846, %v844
    %v1003 = vpack.c.b16 %v847, %v845
    %v1004 = vpack.c.b16 %v850, %v848
    %v1005 = vpack.c.b16 %v851, %v849
    %v1006 = vpack.c.b16 %v854, %v852
    %v1007 = vpack.c.b16 %v855, %v853
    %v1008 = vpack.c.b16 %v858, %v856
    %v1009 = vpack.c.b16 %v859, %v857
    %v1010 = vpack.c.b16 %v862, %v860
    %v1011 = vpack.c.b16 %v863, %v861
    %v1012 = vpack.c.b16 %v866, %v864
    %v1013 = vpack.c.b16 %v867, %v865
    %v1014 = vpack.c.b16 %v870, %v868
    %v1015 = vpack.c.b16 %v871, %v869
    %v1016 = vpack.c.b16 %v874, %v872
    %v1017 = vpack.c.b16 %v875, %v873
    %v1018 = vpack.c.b16 %v878, %v876
    %v1019 = vpack.c.b16 %v879, %v877
    %v1020 = vpack.c.b16 %v882, %v880
    %v1021 = vpack.c.b16 %v883, %v881
    %v1022 = vpack.c.b16 %v886, %v884
    %v1023 = vpack.c.b16 %v887, %v885
    %v1024 = vpack.c.b16 %v890, %v888
    %v1025 = vpack.c.b16 %v891, %v889
    %v1026 = vpack.c.b16 %v894, %v892
    %v1027 = vpack.c.b16 %v895, %v893
    %v1028 = vpack.c.b16 %v898, %v896
    %v1029 = vpack.c.b16 %v899, %v897
    %v1030 = vpack.c.b16 %v902, %v900
    %v1031 = vpack.c.b16 %v903, %v901
    %v1032 = vpack.c.b16 %v906, %v904
    %v1033 = vpack.c.b16 %v907, %v905
    %v1034 = vpack.c.b16 %v910, %v908
    %v1035 = vpack.c.b16 %v911, %v909
    %v1036 = vpack.c.b16 %v914, %v912
    %v1037 = vpack.c.b16 %v915, %v913
    %v1038 = vpack.c.b16 %v918, %v916
    %v1039 = vpack.c.b16 %v919, %v917
    %v1040 = vpack.c.b16 %v922, %v920
    %v1041 = vpack.c.b16 %v923, %v921
    %v1042 = vpack.c.b16 %v926, %v924
    %v1043 = vpack.c.b16 %v927, %v925
    %v1044 = vpack.c.b16 %v930, %v928
    %v1045 = vpack.c.b16 %v931, %v929
    %v1046 = vpack.c.b16 %v934, %v932
    %v1047 = vpack.c.b16 %v935, %v933
    %v1048 = vpack.c.b16 %v938, %v936
    %v1049 = vpack.c.b16 %v939, %v937
    %v1050 = vpack.c.b16 %v942, %v940
    %v1051 = vpack.c.b16 %v943, %v941
    %v1052 = vpack.c.b16 %v946, %v944
    %v1053 = vpack.c.b16 %v947, %v945
    %v1054 = vpack.c.b16 %v950, %v948
    %v1055 = vpack.c.b16 %v951, %v949
    %v1056 = vpack.c.b16 %v954, %v952
    %v1057 = vpack.c.b16 %v955, %v953
    %v1058 = vpack.c.b16 %v958, %v956
    %v1059 = vpack.c.b16 %v959, %v957
    %v1060 = vpack.c.b16 %v962, %v960
    %v1061 = vpack.c.b16 %v963, %v961
    %v1062 = vpack.c.b16 %v966, %v964
    %v1063 = vpack.c.b16 %v967, %v965
    %1160 = vmatprep.subr.bf16.mxu0 %v969
    %1161 = vmatpush1.bf16.msra.mxu0 %v968
    %1162 = vmatprep.subr.bf16.mxu0 %v971
    %1163 = vmatpush1.bf16.msra.mxu0 %v970
    %1164 = vmatprep.subr.bf16.mxu0 %v973
    %1165 = vmatpush1.bf16.msra.mxu0 %v972
    %1166 = vmatprep.subr.bf16.mxu0 %v975
    %1167 = vmatpush1.bf16.msra.mxu0 %v974
    %1168 = vmatprep.subr.bf16.mxu0 %v977
    %1169 = vmatpush1.bf16.msra.mxu0 %v976
    %1170 = vmatprep.subr.bf16.mxu0 %v979
    %1171 = vmatpush1.bf16.msra.mxu0 %v978
    %1172 = vmatprep.subr.bf16.mxu0 %v981
    %1173 = vmatpush1.bf16.msra.mxu0 %v980
    %1174 = vmatprep.subr.bf16.mxu0 %v983
    %1175 = vmatpush1.bf16.msra.mxu0 %v982
    %1176 = vmatprep.subr.bf16.mxu0 %v985
    %1177 = vmatpush1.bf16.msra.mxu0 %v984
    %1178 = vmatprep.subr.bf16.mxu0 %v987
    %1179 = vmatpush1.bf16.msra.mxu0 %v986
    %1180 = vmatprep.subr.bf16.mxu0 %v989
    %1181 = vmatpush1.bf16.msra.mxu0 %v988
    %1182 = vmatprep.subr.bf16.mxu0 %v991
    %1183 = vmatpush1.bf16.msra.mxu0 %v990
    %1184 = vmatprep.subr.bf16.mxu0 %v993
    %1185 = vmatpush1.bf16.msra.mxu0 %v992
    %1186 = vmatprep.subr.bf16.mxu0 %v995
    %1187 = vmatpush1.bf16.msra.mxu0 %v994
    %1188 = vmatprep.subr.bf16.mxu0 %v997
    %1189 = vmatpush1.bf16.msra.mxu0 %v996
    %1190 = vmatprep.subr.bf16.mxu0 %v999
    %1191 = vmatpush1.bf16.msra.mxu0 %v998
    %1192 = vmatprep.mubr.bf16.mxu0 %v537
    %1193 = vmatmul.mubr.bf16.gmra.mrb[0].mxu0 %v536
    %v1194 = vpop.f32.mrb[0].mxu0
    %v1195 = vadd.f32 %v673, %v1194
    %v1196 = vpop.f32.mrb[0].mxu0
    %v1197 = vadd.f32 %v677, %v1196
    %v1198 = vpop.f32.mrb[0].mxu0
    %v1199 = vadd.f32 %v673, %v1198
    %v1200 = vpop.f32.mrb[0].mxu0
    %v1201 = vadd.f32 %v677, %v1200
    %1202 = vmatprep.mubr.bf16.mxu0 %v543
    %1203 = vmatmul.mubr.bf16.gmra.mrb[0].mxu0 %v542
    %v1204 = vpop.f32.mrb[0].mxu0
    %v1205 = vadd.f32 %v673, %v1204
    %v1206 = vpop.f32.mrb[0].mxu0
    %v1207 = vadd.f32 %v677, %v1206
    %v1208 = vpop.f32.mrb[0].mxu0
    %v1209 = vadd.f32 %v673, %v1208
    %v1210 = vpop.f32.mrb[0].mxu0
    %v1211 = vadd.f32 %v677, %v1210
    %1212 = vmatprep.mubr.bf16.mxu0 %v549
    %1213 = vmatmul.mubr.bf16.gmra.mrb[0].mxu0 %v548
    %v1214 = vpop.f32.mrb[0].mxu0
    %v1215 = vadd.f32 %v673, %v1214
    %v1216 = vpop.f32.mrb[0].mxu0
    %v1217 = vadd.f32 %v677, %v1216
    %v1218 = vpop.f32.mrb[0].mxu0
    %v1219 = vadd.f32 %v673, %v1218
    %v1220 = vpop.f32.mrb[0].mxu0
    %v1221 = vadd.f32 %v677, %v1220
    %1222 = vmatprep.mubr.bf16.mxu0 %v555
    %1223 = vmatmul.mubr.bf16.gmra.mrb[0].mxu0 %v554
    %v1224 = vpop.f32.mrb[0].mxu0
    %v1225 = vadd.f32 %v673, %v1224
    %v1226 = vpop.f32.mrb[0].mxu0
    %v1227 = vadd.f32 %v677, %v1226
    %v1228 = vpop.f32.mrb[0].mxu0
    %v1229 = vadd.f32 %v673, %v1228
    %v1230 = vpop.f32.mrb[0].mxu0
    %v1231 = vadd.f32 %v677, %v1230
    %1232 = vmatprep.mubr.bf16.mxu0 %v561
    %1233 = vmatmul.mubr.bf16.gmra.mrb[0].mxu0 %v560
    %v1234 = vpop.f32.mrb[0].mxu0
    %v1235 = vadd.f32 %v673, %v1234
    %v1236 = vpop.f32.mrb[0].mxu0
    %v1237 = vadd.f32 %v677, %v1236
    %v1238 = vpop.f32.mrb[0].mxu0
    %v1239 = vadd.f32 %v673, %v1238
    %v1240 = vpop.f32.mrb[0].mxu0
    %v1241 = vadd.f32 %v677, %v1240
    %1242 = vmatprep.mubr.bf16.mxu0 %v567
    %1243 = vmatmul.mubr.bf16.gmra.mrb[0].mxu0 %v566
    %v1244 = vpop.f32.mrb[0].mxu0
    %v1245 = vadd.f32 %v673, %v1244
    %v1246 = vpop.f32.mrb[0].mxu0
    %v1247 = vadd.f32 %v677, %v1246
    %v1248 = vpop.f32.mrb[0].mxu0
    %v1249 = vadd.f32 %v673, %v1248
    %v1250 = vpop.f32.mrb[0].mxu0
    %v1251 = vadd.f32 %v677, %v1250
    %1252 = vdwg.mxu0
    %1253 = vmatprep.subr.bf16.mxu0 %v1001
    %1254 = vmatpush1.bf16.msra.mxu0 %v1000
    %1255 = vmatprep.subr.bf16.mxu0 %v1003
    %1256 = vmatpush1.bf16.msra.mxu0 %v1002
    %1257 = vmatprep.subr.bf16.mxu0 %v1005
    %1258 = vmatpush1.bf16.msra.mxu0 %v1004
    %1259 = vmatprep.subr.bf16.mxu0 %v1007
    %1260 = vmatpush1.bf16.msra.mxu0 %v1006
    %1261 = vmatprep.subr.bf16.mxu0 %v1009
    %1262 = vmatpush1.bf16.msra.mxu0 %v1008
    %1263 = vmatprep.subr.bf16.mxu0 %v1011
    %1264 = vmatpush1.bf16.msra.mxu0 %v1010
    %1265 = vmatprep.subr.bf16.mxu0 %v1013
    %1266 = vmatpush1.bf16.msra.mxu0 %v1012
    %1267 = vmatprep.subr.bf16.mxu0 %v1015
    %1268 = vmatpush1.bf16.msra.mxu0 %v1014
    %1269 = vmatprep.subr.bf16.mxu0 %v1017
    %1270 = vmatpush1.bf16.msra.mxu0 %v1016
    %1271 = vmatprep.subr.bf16.mxu0 %v1019
    %1272 = vmatpush1.bf16.msra.mxu0 %v1018
    %1273 = vmatprep.subr.bf16.mxu0 %v1021
    %1274 = vmatpush1.bf16.msra.mxu0 %v1020
    %1275 = vmatprep.subr.bf16.mxu0 %v1023
    %1276 = vmatpush1.bf16.msra.mxu0 %v1022
    %1277 = vmatprep.subr.bf16.mxu0 %v1025
    %1278 = vmatpush1.bf16.msra.mxu0 %v1024
    %1279 = vmatprep.subr.bf16.mxu0 %v1027
    %1280 = vmatpush1.bf16.msra.mxu0 %v1026
    %1281 = vmatprep.subr.bf16.mxu0 %v1029
    %1282 = vmatpush1.bf16.msra.mxu0 %v1028
    %1283 = vmatprep.subr.bf16.mxu0 %v1031
    %1284 = vmatpush1.bf16.msra.mxu0 %v1030
    %1285 = vmatprep.mubr.bf16.mxu0 %v539
    %1286 = vmatmul.mubr.bf16.gmra.mrb[0].mxu0 %v538
    %v1287 = vpop.f32.mrb[0].mxu0
    %v1288 = vadd.f32 %v1195, %v1287
    %v1289 = vpop.f32.mrb[0].mxu0
    %v1290 = vadd.f32 %v1197, %v1289
    %v1291 = vpop.f32.mrb[0].mxu0
    %v1292 = vadd.f32 %v1199, %v1291
    %v1293 = vpop.f32.mrb[0].mxu0
    %v1294 = vadd.f32 %v1201, %v1293
    %1295 = vmatprep.mubr.bf16.mxu0 %v545
    %1296 = vmatmul.mubr.bf16.gmra.mrb[0].mxu0 %v544
    %v1297 = vpop.f32.mrb[0].mxu0
    %v1298 = vadd.f32 %v1205, %v1297
    %v1299 = vpop.f32.mrb[0].mxu0
    %v1300 = vadd.f32 %v1207, %v1299
    %v1301 = vpop.f32.mrb[0].mxu0
    %v1302 = vadd.f32 %v1209, %v1301
    %v1303 = vpop.f32.mrb[0].mxu0
    %v1304 = vadd.f32 %v1211, %v1303
    %1305 = vmatprep.mubr.bf16.mxu0 %v551
    %1306 = vmatmul.mubr.bf16.gmra.mrb[0].mxu0 %v550
    %v1307 = vpop.f32.mrb[0].mxu0
    %v1308 = vadd.f32 %v1215, %v1307
    %v1309 = vpop.f32.mrb[0].mxu0
    %v1310 = vadd.f32 %v1217, %v1309
    %v1311 = vpop.f32.mrb[0].mxu0
    %v1312 = vadd.f32 %v1219, %v1311
    %v1313 = vpop.f32.mrb[0].mxu0
    %v1314 = vadd.f32 %v1221, %v1313
    %1315 = vmatprep.mubr.bf16.mxu0 %v557
    %1316 = vmatmul.mubr.bf16.gmra.mrb[0].mxu0 %v556
    %v1317 = vpop.f32.mrb[0].mxu0
    %v1318 = vadd.f32 %v1225, %v1317
    %v1319 = vpop.f32.mrb[0].mxu0
    %v1320 = vadd.f32 %v1227, %v1319
    %v1321 = vpop.f32.mrb[0].mxu0
    %v1322 = vadd.f32 %v1229, %v1321
    %v1323 = vpop.f32.mrb[0].mxu0
    %v1324 = vadd.f32 %v1231, %v1323
    %1325 = vmatprep.mubr.bf16.mxu0 %v563
    %1326 = vmatmul.mubr.bf16.gmra.mrb[0].mxu0 %v562
    %v1327 = vpop.f32.mrb[0].mxu0
    %v1328 = vadd.f32 %v1235, %v1327
    %v1329 = vpop.f32.mrb[0].mxu0
    %v1330 = vadd.f32 %v1237, %v1329
    %v1331 = vpop.f32.mrb[0].mxu0
    %v1332 = vadd.f32 %v1239, %v1331
    %v1333 = vpop.f32.mrb[0].mxu0
    %v1334 = vadd.f32 %v1241, %v1333
    %1335 = vmatprep.mubr.bf16.mxu0 %v569
    %1336 = vmatmul.mubr.bf16.gmra.mrb[0].mxu0 %v568
    %v1337 = vpop.f32.mrb[0].mxu0
    %v1338 = vadd.f32 %v1245, %v1337
    %v1339 = vpop.f32.mrb[0].mxu0
    %v1340 = vadd.f32 %v1247, %v1339
    %v1341 = vpop.f32.mrb[0].mxu0
    %v1342 = vadd.f32 %v1249, %v1341
    %v1343 = vpop.f32.mrb[0].mxu0
    %v1344 = vadd.f32 %v1251, %v1343
    %1345 = vdwg.mxu0
    %1346 = vmatprep.subr.bf16.mxu0 %v1033
    %1347 = vmatpush1.bf16.msra.mxu0 %v1032
    %1348 = vmatprep.subr.bf16.mxu0 %v1035
    %1349 = vmatpush1.bf16.msra.mxu0 %v1034
    %1350 = vmatprep.subr.bf16.mxu0 %v1037
    %1351 = vmatpush1.bf16.msra.mxu0 %v1036
    %1352 = vmatprep.subr.bf16.mxu0 %v1039
    %1353 = vmatpush1.bf16.msra.mxu0 %v1038
    %1354 = vmatprep.subr.bf16.mxu0 %v1041
    %1355 = vmatpush1.bf16.msra.mxu0 %v1040
    %1356 = vmatprep.subr.bf16.mxu0 %v1043
    %1357 = vmatpush1.bf16.msra.mxu0 %v1042
    %1358 = vmatprep.subr.bf16.mxu0 %v1045
    %1359 = vmatpush1.bf16.msra.mxu0 %v1044
    %1360 = vmatprep.subr.bf16.mxu0 %v1047
    %1361 = vmatpush1.bf16.msra.mxu0 %v1046
    %1362 = vmatprep.subr.bf16.mxu0 %v1049
    %1363 = vmatpush1.bf16.msra.mxu0 %v1048
    %1364 = vmatprep.subr.bf16.mxu0 %v1051
    %1365 = vmatpush1.bf16.msra.mxu0 %v1050
    %1366 = vmatprep.subr.bf16.mxu0 %v1053
    %1367 = vmatpush1.bf16.msra.mxu0 %v1052
    %1368 = vmatprep.subr.bf16.mxu0 %v1055
    %1369 = vmatpush1.bf16.msra.mxu0 %v1054
    %1370 = vmatprep.subr.bf16.mxu0 %v1057
    %1371 = vmatpush1.bf16.msra.mxu0 %v1056
    %1372 = vmatprep.subr.bf16.mxu0 %v1059
    %1373 = vmatpush1.bf16.msra.mxu0 %v1058
    %1374 = vmatprep.subr.bf16.mxu0 %v1061
    %1375 = vmatpush1.bf16.msra.mxu0 %v1060
    %1376 = vmatprep.subr.bf16.mxu0 %v1063
    %1377 = vmatpush1.bf16.msra.mxu0 %v1062
    %1378 = vmatprep.mubr.bf16.mxu0 %v541
    %1379 = vmatmul.mubr.bf16.gmra.mrb[0].mxu0 %v540
    %v1380 = vpop.f32.mrb[0].mxu0
    %v1381 = vadd.f32 %v1288, %v1380
    %v1382 = vpop.f32.mrb[0].mxu0
    %v1383 = vadd.f32 %v1290, %v1382
    %v1384 = vpop.f32.mrb[0].mxu0
    %v1385 = vadd.f32 %v1292, %v1384
    %v1386 = vpop.f32.mrb[0].mxu0
    %v1387 = vadd.f32 %v1294, %v1386
    %1388 = vmatprep.mubr.bf16.mxu0 %v547
    %1389 = vmatmul.mubr.bf16.gmra.mrb[0].mxu0 %v546
    %v1390 = vpop.f32.mrb[0].mxu0
    %v1391 = vadd.f32 %v1298, %v1390
    %v1392 = vpop.f32.mrb[0].mxu0
    %v1393 = vadd.f32 %v1300, %v1392
    %v1394 = vpop.f32.mrb[0].mxu0
    %v1395 = vadd.f32 %v1302, %v1394
    %v1396 = vpop.f32.mrb[0].mxu0
    %v1397 = vadd.f32 %v1304, %v1396
    %1398 = vmatprep.mubr.bf16.mxu0 %v553
    %1399 = vmatmul.mubr.bf16.gmra.mrb[0].mxu0 %v552
    %v1400 = vpop.f32.mrb[0].mxu0
    %v1401 = vadd.f32 %v1308, %v1400
    %v1402 = vpop.f32.mrb[0].mxu0
    %v1403 = vadd.f32 %v1310, %v1402
    %v1404 = vpop.f32.mrb[0].mxu0
    %v1405 = vadd.f32 %v1312, %v1404
    %v1406 = vpop.f32.mrb[0].mxu0
    %v1407 = vadd.f32 %v1314, %v1406
    %1408 = vmatprep.mubr.bf16.mxu0 %v559
    %1409 = vmatmul.mubr.bf16.gmra.mrb[0].mxu0 %v558
    %v1410 = vpop.f32.mrb[0].mxu0
    %v1411 = vadd.f32 %v1318, %v1410
    %v1412 = vpop.f32.mrb[0].mxu0
    %v1413 = vadd.f32 %v1320, %v1412
    %v1414 = vpop.f32.mrb[0].mxu0
    %v1415 = vadd.f32 %v1322, %v1414
    %v1416 = vpop.f32.mrb[0].mxu0
    %v1417 = vadd.f32 %v1324, %v1416
    %1418 = vmatprep.mubr.bf16.mxu0 %v565
    %1419 = vmatmul.mubr.bf16.gmra.mrb[0].mxu0 %v564
    %v1420 = vpop.f32.mrb[0].mxu0
    %v1421 = vadd.f32 %v1328, %v1420
    %v1422 = vpop.f32.mrb[0].mxu0
    %v1423 = vadd.f32 %v1330, %v1422
    %v1424 = vpop.f32.mrb[0].mxu0
    %v1425 = vadd.f32 %v1332, %v1424
    %v1426 = vpop.f32.mrb[0].mxu0
    %v1427 = vadd.f32 %v1334, %v1426
    %1428 = vmatprep.mubr.bf16.mxu0 %v571
    %1429 = vmatmul.mubr.bf16.gmra.mrb[0].mxu0 %v570
    %v1430 = vpop.f32.mrb[0].mxu0
    %v1431 = vadd.f32 %v1338, %v1430
    %v1432 = vpop.f32.mrb[0].mxu0
    %v1433 = vadd.f32 %v1340, %v1432
    %v1434 = vpop.f32.mrb[0].mxu0
    %v1435 = vadd.f32 %v1342, %v1434
    %v1436 = vpop.f32.mrb[0].mxu0
    %v1437 = vadd.f32 %v1344, %v1436
    %1438 = vdwg.mxu0
    %v1439 = vmax.f32 %v1381, 0.0
    %v1440 = vmax.f32 %v1383, 0.0
    %v1441 = vmax.f32 %v1385, 0.0
    %v1442 = vmax.f32 %v1387, 0.0
    %v1443 = vmax.f32 %v1391, 0.0
    %v1444 = vmax.f32 %v1393, 0.0
    %v1445 = vmax.f32 %v1395, 0.0
    %v1446 = vmax.f32 %v1397, 0.0
    %v1447 = vmax.f32 %v1401, 0.0
    %v1448 = vmax.f32 %v1403, 0.0
    %v1449 = vmax.f32 %v1405, 0.0
    %v1450 = vmax.f32 %v1407, 0.0
    %v1451 = vmax.f32 %v1411, 0.0
    %v1452 = vmax.f32 %v1413, 0.0
    %v1453 = vmax.f32 %v1415, 0.0
    %v1454 = vmax.f32 %v1417, 0.0
    %v1455 = vmax.f32 %v1421, 0.0
    %v1456 = vmax.f32 %v1423, 0.0
    %v1457 = vmax.f32 %v1425, 0.0
    %v1458 = vmax.f32 %v1427, 0.0
    %v1459 = vmax.f32 %v1431, 0.0
    %v1460 = vmax.f32 %v1433, 0.0
    %v1461 = vmax.f32 %v1435, 0.0
    %v1462 = vmax.f32 %v1437, 0.0
    %v1463 = vrot.slane %v1439, 4
    %v1464 = vsel %vm191, %v1463, %v1461
    %v1465 = vrot.slane %v1440, 4
    %v1466 = vsel %vm191, %v1465, %v1462
    %v1467 = vrot.slane %v1441, 4
    %v1468 = vrot.slane %v1442, 4
    %v1469 = vrot.slane %v1443, 4
    %v1470 = vrot.slane %v1444, 4
    %v1471 = vrot.slane %v1445, 4
    %v1472 = vrot.slane %v1446, 4
    %v1473 = vrot.slane %v1447, 4
    %v1474 = vrot.slane %v1448, 4
    %v1475 = vrot.slane %v1449, 4
    %v1476 = vrot.slane %v1450, 4
    %v1477 = vrot.slane %v1451, 4
    %v1478 = vrot.slane %v1452, 4
    %v1479 = vrot.slane %v1453, 4
    %v1480 = vrot.slane %v1454, 4
    %v1481 = vrot.slane %v1455, 4
    %v1482 = vrot.slane %v1456, 4
    %v1483 = vrot.slane %v1457, 4
    %v1484 = vrot.slane %v1458, 4
    %v1485 = vrot.slane %v1459, 4
    %v1486 = vrot.slane %v1460, 4
    %v1487 = vrot.slane %v1464, 4
    %v1488 = vrot.slane %v1466, 4
    %v1489 = vsel %vm191, %v1467, %v1463
    %v1490 = vsel %vm191, %v1468, %v1465
    %v1491 = vsel %vm191, %v1469, %v1467
    %v1492 = vsel %vm191, %v1470, %v1468
    %v1493 = vsel %vm191, %v1471, %v1469
    %v1494 = vsel %vm191, %v1472, %v1470
    %v1495 = vsel %vm191, %v1473, %v1471
    %v1496 = vsel %vm191, %v1474, %v1472
    %v1497 = vsel %vm191, %v1475, %v1473
    %v1498 = vsel %vm191, %v1476, %v1474
    %v1499 = vsel %vm191, %v1477, %v1475
    %v1500 = vsel %vm191, %v1478, %v1476
    %v1501 = vsel %vm191, %v1479, %v1477
    %v1502 = vsel %vm191, %v1480, %v1478
    %v1503 = vsel %vm191, %v1481, %v1479
    %v1504 = vsel %vm191, %v1482, %v1480
    %v1505 = vsel %vm191, %v1483, %v1481
    %v1506 = vsel %vm191, %v1484, %v1482
    %v1507 = vsel %vm191, %v1485, %v1483
    %v1508 = vsel %vm191, %v1486, %v1484
    %v1509 = vsel %vm191, %v1487, %v1485
    %v1510 = vsel %vm191, %v1488, %v1486
    %v1535 = vrot.slane %v1464, 3
    %v1536 = vrot.slane %v1489, 3
    %v1537 = vsel %vm288, %v1535, %v1536
    %v1538 = vrot.slane %v1466, 3
    %v1539 = vrot.slane %v1490, 3
    %v1540 = vsel %vm288, %v1538, %v1539
    %v1541 = vrot.slane %v1491, 3
    %v1542 = vsel %vm288, %v1536, %v1541
    %v1543 = vrot.slane %v1492, 3
    %v1544 = vsel %vm288, %v1539, %v1543
    %v1545 = vrot.slane %v1493, 3
    %v1546 = vsel %vm288, %v1541, %v1545
    %v1547 = vrot.slane %v1494, 3
    %v1548 = vsel %vm288, %v1543, %v1547
    %v1549 = vrot.slane %v1495, 3
    %v1550 = vsel %vm288, %v1545, %v1549
    %v1551 = vrot.slane %v1496, 3
    %v1552 = vsel %vm288, %v1547, %v1551
    %v1553 = vrot.slane %v1497, 3
    %v1554 = vsel %vm288, %v1549, %v1553
    %v1555 = vrot.slane %v1498, 3
    %v1556 = vsel %vm288, %v1551, %v1555
    %v1557 = vrot.slane %v1499, 3
    %v1558 = vsel %vm288, %v1553, %v1557
    %v1559 = vrot.slane %v1500, 3
    %v1560 = vsel %vm288, %v1555, %v1559
    %v1561 = vrot.slane %v1501, 3
    %v1562 = vsel %vm288, %v1557, %v1561
    %v1563 = vrot.slane %v1502, 3
    %v1564 = vsel %vm288, %v1559, %v1563
    %v1565 = vrot.slane %v1503, 3
    %v1566 = vsel %vm288, %v1561, %v1565
    %v1567 = vrot.slane %v1504, 3
    %v1568 = vsel %vm288, %v1563, %v1567
    %v1569 = vrot.slane %v1505, 3
    %v1570 = vsel %vm288, %v1565, %v1569
    %v1571 = vrot.slane %v1506, 3
    %v1572 = vsel %vm288, %v1567, %v1571
    %v1573 = vrot.slane %v1507, 3
    %v1574 = vsel %vm288, %v1569, %v1573
    %v1575 = vrot.slane %v1508, 3
    %v1576 = vsel %vm288, %v1571, %v1575
    %v1577 = vrot.slane %v1509, 3
    %v1578 = vsel %vm288, %v1573, %v1577
    %v1579 = vrot.slane %v1510, 3
    %v1580 = vsel %vm288, %v1575, %v1579
    %v1605 = vsel %vm252, 0.0, %v1537
    %v1606 = vsel %vm252, 0.0, %v1540
    %v1607 = vsel %vm253, 0.0, %v1542
    %v1608 = vsel %vm253, 0.0, %v1544
    %v1609 = vsel %vm254, 0.0, %v1546
    %v1610 = vsel %vm254, 0.0, %v1548
    %v1611 = vsel %vm255, 0.0, %v1550
    %v1612 = vsel %vm255, 0.0, %v1552
    %v1613 = vsel %vm256, 0.0, %v1554
    %v1614 = vsel %vm256, 0.0, %v1556
    %v1615 = vsel %vm257, 0.0, %v1558
    %v1616 = vsel %vm257, 0.0, %v1560
    %v1617 = vsel %vm258, 0.0, %v1562
    %v1618 = vsel %vm258, 0.0, %v1564
    %v1619 = vsel %vm259, 0.0, %v1566
    %v1620 = vsel %vm259, 0.0, %v1568
    %v1621 = vsel %vm260, 0.0, %v1570
    %v1622 = vsel %vm260, 0.0, %v1572
    %v1623 = vsel %vm261, 0.0, %v1574
    %v1624 = vsel %vm261, 0.0, %v1576
    %v1625 = vsel %vm262, 0.0, %v1578
    %v1626 = vsel %vm262, 0.0, %v1580
    %v1627 = vsel %vm263, 0.0, %v1577
    %v1628 = vsel %vm263, 0.0, %v1579
    %v1651 = vrot.slane %v1439, 1
    %v1652 = vrot.slane %v1441, 1
    %v1653 = vsel %vm441, %v1651, %v1652
    %v1654 = vrot.slane %v1440, 1
    %v1655 = vrot.slane %v1442, 1
    %v1656 = vsel %vm441, %v1654, %v1655
    %v1657 = vrot.slane %v1443, 1
    %v1658 = vsel %vm441, %v1652, %v1657
    %v1659 = vrot.slane %v1444, 1
    %v1660 = vsel %vm441, %v1655, %v1659
    %v1661 = vrot.slane %v1445, 1
    %v1662 = vsel %vm441, %v1657, %v1661
    %v1663 = vrot.slane %v1446, 1
    %v1664 = vsel %vm441, %v1659, %v1663
    %v1665 = vrot.slane %v1447, 1
    %v1666 = vsel %vm441, %v1661, %v1665
    %v1667 = vrot.slane %v1448, 1
    %v1668 = vsel %vm441, %v1663, %v1667
    %v1669 = vrot.slane %v1449, 1
    %v1670 = vsel %vm441, %v1665, %v1669
    %v1671 = vrot.slane %v1450, 1
    %v1672 = vsel %vm441, %v1667, %v1671
    %v1673 = vrot.slane %v1451, 1
    %v1674 = vsel %vm441, %v1669, %v1673
    %v1675 = vrot.slane %v1452, 1
    %v1676 = vsel %vm441, %v1671, %v1675
    %v1677 = vrot.slane %v1453, 1
    %v1678 = vsel %vm441, %v1673, %v1677
    %v1679 = vrot.slane %v1454, 1
    %v1680 = vsel %vm441, %v1675, %v1679
    %v1681 = vrot.slane %v1455, 1
    %v1682 = vsel %vm441, %v1677, %v1681
    %v1683 = vrot.slane %v1456, 1
    %v1684 = vsel %vm441, %v1679, %v1683
    %v1685 = vrot.slane %v1457, 1
    %v1686 = vsel %vm441, %v1681, %v1685
    %v1687 = vrot.slane %v1458, 1
    %v1688 = vsel %vm441, %v1683, %v1687
    %v1689 = vrot.slane %v1459, 1
    %v1690 = vsel %vm441, %v1685, %v1689
    %v1691 = vrot.slane %v1460, 1
    %v1692 = vsel %vm441, %v1687, %v1691
    %v1693 = vrot.slane %v1464, 1
    %v1694 = vsel %vm441, %v1689, %v1693
    %v1695 = vrot.slane %v1466, 1
    %v1696 = vsel %vm441, %v1691, %v1695
    %v1721 = vsel %vm407, 0.0, %v1653
    %v1722 = vsel %vm407, 0.0, %v1656
    %v1723 = vsel %vm408, 0.0, %v1658
    %v1724 = vsel %vm408, 0.0, %v1660
    %v1725 = vsel %vm409, 0.0, %v1662
    %v1726 = vsel %vm409, 0.0, %v1664
    %v1727 = vsel %vm410, 0.0, %v1666
    %v1728 = vsel %vm410, 0.0, %v1668
    %v1729 = vsel %vm411, 0.0, %v1670
    %v1730 = vsel %vm411, 0.0, %v1672
    %v1731 = vsel %vm412, 0.0, %v1674
    %v1732 = vsel %vm412, 0.0, %v1676
    %v1733 = vsel %vm413, 0.0, %v1678
    %v1734 = vsel %vm413, 0.0, %v1680
    %v1735 = vsel %vm414, 0.0, %v1682
    %v1736 = vsel %vm414, 0.0, %v1684
    %v1737 = vsel %vm415, 0.0, %v1686
    %v1738 = vsel %vm415, 0.0, %v1688
    %v1739 = vsel %vm416, 0.0, %v1690
    %v1740 = vsel %vm416, 0.0, %v1692
    %v1741 = vsel %vm417, 0.0, %v1694
    %v1742 = vsel %vm417, 0.0, %v1696
    %v1743 = vsel %vm418, 0.0, %v1693
    %v1744 = vsel %vm418, 0.0, %v1695
    %v1745 = vpack.c.bf16 %v1607, %v1605
    %v1746 = vpack.c.bf16 %v1608, %v1606
    %v1747 = vpack.c.bf16 %v1441, %v1439
    %v1748 = vpack.c.bf16 %v1442, %v1440
    %v1749 = vpack.c.bf16 %v1723, %v1721
    %v1750 = vpack.c.bf16 %v1724, %v1722
    %v1751 = vpack.c.bf16 %v1611, %v1609
    %v1752 = vpack.c.bf16 %v1612, %v1610
    %v1753 = vpack.c.bf16 %v1445, %v1443
    %v1754 = vpack.c.bf16 %v1446, %v1444
    %v1755 = vpack.c.bf16 %v1727, %v1725
    %v1756 = vpack.c.bf16 %v1728, %v1726
    %v1757 = vpack.c.bf16 %v1615, %v1613
    %v1758 = vpack.c.bf16 %v1616, %v1614
    %v1759 = vpack.c.bf16 %v1449, %v1447
    %v1760 = vpack.c.bf16 %v1450, %v1448
    %v1761 = vpack.c.bf16 %v1731, %v1729
    %v1762 = vpack.c.bf16 %v1732, %v1730
    %v1763 = vpack.c.bf16 %v1619, %v1617
    %v1764 = vpack.c.bf16 %v1620, %v1618
    %v1765 = vpack.c.bf16 %v1453, %v1451
    %v1766 = vpack.c.bf16 %v1454, %v1452
    %v1767 = vpack.c.bf16 %v1735, %v1733
    %v1768 = vpack.c.bf16 %v1736, %v1734
    %v1769 = vpack.c.bf16 %v1623, %v1621
    %v1770 = vpack.c.bf16 %v1624, %v1622
    %v1771 = vpack.c.bf16 %v1457, %v1455
    %v1772 = vpack.c.bf16 %v1458, %v1456
    %v1773 = vpack.c.bf16 %v1739, %v1737
    %v1774 = vpack.c.bf16 %v1740, %v1738
    %v1775 = vpack.c.bf16 %v1627, %v1625
    %v1776 = vpack.c.bf16 %v1628, %v1626
    %v1777 = vpack.c.bf16 %v1461, %v1459
    %v1778 = vpack.c.bf16 %v1462, %v1460
    %v1779 = vpack.c.bf16 %v1743, %v1741
    %v1780 = vpack.c.bf16 %v1744, %v1742
    %v1781 = vld [vmem:[#allocation5] sm:$0xff]
    %v1782 = vld [vmem:[#allocation5 + $0x8] sm:$0xff]
    %v1783 = vld [vmem:[#allocation5 + $0x10] sm:$0xff]
    %v1784 = vld [vmem:[#allocation5 + $0x18] sm:$0xff]
    %v1785 = vld [vmem:[#allocation5 + $0x20] sm:$0xff]
    %v1786 = vld [vmem:[#allocation5 + $0x28] sm:$0xff]
    %v1787 = vld [vmem:[#allocation5 + $0x30] sm:$0xff]
    %v1788 = vld [vmem:[#allocation5 + $0x38] sm:$0xff]
    %v1789 = vld [vmem:[#allocation5 + $0x40] sm:$0xff]
    %v1790 = vld [vmem:[#allocation5 + $0x48] sm:$0xff]
    %v1791 = vld [vmem:[#allocation5 + $0x50] sm:$0xff]
    %v1792 = vld [vmem:[#allocation5 + $0x58] sm:$0xff]
    %v1793 = vld [vmem:[#allocation5 + $0x60] sm:$0xff]
    %v1794 = vld [vmem:[#allocation5 + $0x68] sm:$0xff]
    %v1795 = vld [vmem:[#allocation5 + $0x70] sm:$0xff]
    %v1796 = vld [vmem:[#allocation5 + $0x78] sm:$0xff]
    %v1797 = vld [vmem:[#allocation5 + $0x80] sm:$0xff]
    %v1798 = vld [vmem:[#allocation5 + $0x88] sm:$0xff]
    %v1799 = vld [vmem:[#allocation5 + $0x90] sm:$0xff]
    %v1800 = vld [vmem:[#allocation5 + $0x98] sm:$0xff]
    %v1801 = vld [vmem:[#allocation5 + $0xa0] sm:$0xff]
    %v1802 = vld [vmem:[#allocation5 + $0xa8] sm:$0xff]
    %v1803 = vld [vmem:[#allocation5 + $0xb0] sm:$0xff]
    %v1804 = vld [vmem:[#allocation5 + $0xb8] sm:$0xff]
    %v1805 = vld [vmem:[#allocation5 + $0xc0] sm:$0xff]
    %v1806 = vld [vmem:[#allocation5 + $0xc8] sm:$0xff]
    %v1807 = vld [vmem:[#allocation5 + $0xd0] sm:$0xff]
    %v1808 = vld [vmem:[#allocation5 + $0xd8] sm:$0xff]
    %v1809 = vld [vmem:[#allocation5 + $0xe0] sm:$0xff]
    %v1810 = vld [vmem:[#allocation5 + $0xe8] sm:$0xff]
    %v1811 = vld [vmem:[#allocation5 + $0xf0] sm:$0xff]
    %v1812 = vld [vmem:[#allocation5 + $0xf8] sm:$0xff]
    %v1813 = vld [vmem:[#allocation5 + $0x100] sm:$0xff]
    %v1814 = vld [vmem:[#allocation5 + $0x108] sm:$0xff]
    %v1815 = vld [vmem:[#allocation5 + $0x110] sm:$0xff]
    %v1816 = vld [vmem:[#allocation5 + $0x118] sm:$0xff]
    %v1817 = vld [vmem:[#allocation5 + $0x120] sm:$0xff]
    %v1818 = vld [vmem:[#allocation5 + $0x128] sm:$0xff]
    %v1819 = vld [vmem:[#allocation5 + $0x130] sm:$0xff]
    %v1820 = vld [vmem:[#allocation5 + $0x138] sm:$0xff]
    %v1821 = vld [vmem:[#allocation5 + $0x140] sm:$0xff]
    %v1822 = vld [vmem:[#allocation5 + $0x148] sm:$0xff]
    %v1823 = vld [vmem:[#allocation5 + $0x150] sm:$0xff]
    %v1824 = vld [vmem:[#allocation5 + $0x158] sm:$0xff]
    %v1825 = vld [vmem:[#allocation5 + $0x160] sm:$0xff]
    %v1826 = vld [vmem:[#allocation5 + $0x168] sm:$0xff]
    %v1827 = vld [vmem:[#allocation5 + $0x170] sm:$0xff]
    %v1828 = vld [vmem:[#allocation5 + $0x178] sm:$0xff]
    %v1829 = vld [vmem:[#allocation5 + $0x180] sm:$0xff]
    %v1830 = vld [vmem:[#allocation5 + $0x188] sm:$0xff]
    %v1831 = vld [vmem:[#allocation5 + $0x190] sm:$0xff]
    %v1832 = vld [vmem:[#allocation5 + $0x198] sm:$0xff]
    %v1833 = vld [vmem:[#allocation5 + $0x1a0] sm:$0xff]
    %v1834 = vld [vmem:[#allocation5 + $0x1a8] sm:$0xff]
    %v1835 = vld [vmem:[#allocation5 + $0x1b0] sm:$0xff]
    %v1836 = vld [vmem:[#allocation5 + $0x1b8] sm:$0xff]
    %v1837 = vld [vmem:[#allocation5 + $0x1c0] sm:$0xff]
    %v1838 = vld [vmem:[#allocation5 + $0x1c8] sm:$0xff]
    %v1839 = vld [vmem:[#allocation5 + $0x1d0] sm:$0xff]
    %v1840 = vld [vmem:[#allocation5 + $0x1d8] sm:$0xff]
    %v1841 = vld [vmem:[#allocation5 + $0x1e0] sm:$0xff]
    %v1842 = vld [vmem:[#allocation5 + $0x1e8] sm:$0xff]
    %v1843 = vld [vmem:[#allocation5 + $0x1f0] sm:$0xff]
    %v1844 = vld [vmem:[#allocation5 + $0x1f8] sm:$0xff]
    %v1845 = vld [vmem:[#allocation5 + $0x200] sm:$0xff]
    %v1846 = vld [vmem:[#allocation5 + $0x208] sm:$0xff]
    %v1847 = vld [vmem:[#allocation5 + $0x210] sm:$0xff]
    %v1848 = vld [vmem:[#allocation5 + $0x218] sm:$0xff]
    %v1849 = vld [vmem:[#allocation5 + $0x220] sm:$0xff]
    %v1850 = vld [vmem:[#allocation5 + $0x228] sm:$0xff]
    %v1851 = vld [vmem:[#allocation5 + $0x230] sm:$0xff]
    %v1852 = vld [vmem:[#allocation5 + $0x238] sm:$0xff]
    %v1853 = vld [vmem:[#allocation5 + $0x240] sm:$0xff]
    %v1854 = vld [vmem:[#allocation5 + $0x248] sm:$0xff]
    %v1855 = vld [vmem:[#allocation5 + $0x250] sm:$0xff]
    %v1856 = vld [vmem:[#allocation5 + $0x258] sm:$0xff]
    %v1857 = vld [vmem:[#allocation5 + $0x260] sm:$0xff]
    %v1858 = vld [vmem:[#allocation5 + $0x268] sm:$0xff]
    %v1859 = vld [vmem:[#allocation5 + $0x270] sm:$0xff]
    %v1860 = vld [vmem:[#allocation5 + $0x278] sm:$0xff]
    %v1861 = vld [vmem:[#allocation5 + $0x280] sm:$0xff]
    %v1862 = vld [vmem:[#allocation5 + $0x288] sm:$0xff]
    %v1863 = vld [vmem:[#allocation5 + $0x290] sm:$0xff]
    %v1864 = vld [vmem:[#allocation5 + $0x298] sm:$0xff]
    %v1865 = vld [vmem:[#allocation5 + $0x2a0] sm:$0xff]
    %v1866 = vld [vmem:[#allocation5 + $0x2a8] sm:$0xff]
    %v1867 = vld [vmem:[#allocation5 + $0x2b0] sm:$0xff]
    %v1868 = vld [vmem:[#allocation5 + $0x2b8] sm:$0xff]
    %v1869 = vld [vmem:[#allocation5 + $0x2c0] sm:$0xff]
    %v1870 = vld [vmem:[#allocation5 + $0x2c8] sm:$0xff]
    %v1871 = vld [vmem:[#allocation5 + $0x2d0] sm:$0xff]
    %v1872 = vld [vmem:[#allocation5 + $0x2d8] sm:$0xff]
    %v1873 = vld [vmem:[#allocation5 + $0x2e0] sm:$0xff]
    %v1874 = vld [vmem:[#allocation5 + $0x2e8] sm:$0xff]
    %v1875 = vld [vmem:[#allocation5 + $0x2f0] sm:$0xff]
    %v1876 = vld [vmem:[#allocation5 + $0x2f8] sm:$0xff]
    %v1877 = vld [vmem:[%s4] sm:$0x3]
    %v1879 = vlaneseq
    %v1880 = vshrl.u32 %v1879, 7
    %v1881 = vsub.s32 0, %v1880
    %v1882 = vrot.slane %v1877, %v1881
    %v1883 = vlaneseq
    %v1884 = vshrl.u32 %v1883, 7
    %v1885 = vsub.s32 1, %v1884
    %v1886 = vrot.slane %v1877, %v1885
    %v1985 = vunpack.c.l.b16 %v1781
    %v1986 = vunpack.c.h.b16 %v1781
    %v1987 = vunpack.c.l.b16 %v1782
    %v1988 = vunpack.c.h.b16 %v1782
    %v1989 = vunpack.c.l.b16 %v1783
    %v1990 = vunpack.c.h.b16 %v1783
    %v1991 = vunpack.c.l.b16 %v1784
    %v1992 = vunpack.c.h.b16 %v1784
    %v1993 = vunpack.c.l.b16 %v1785
    %v1994 = vunpack.c.h.b16 %v1785
    %v1995 = vunpack.c.l.b16 %v1786
    %v1996 = vunpack.c.h.b16 %v1786
    %v1997 = vunpack.c.l.b16 %v1787
    %v1998 = vunpack.c.h.b16 %v1787
    %v1999 = vunpack.c.l.b16 %v1788
    %v2000 = vunpack.c.h.b16 %v1788
    %v2001 = vunpack.c.l.b16 %v1789
    %v2002 = vunpack.c.h.b16 %v1789
    %v2003 = vunpack.c.l.b16 %v1790
    %v2004 = vunpack.c.h.b16 %v1790
    %v2005 = vunpack.c.l.b16 %v1791
    %v2006 = vunpack.c.h.b16 %v1791
    %v2007 = vunpack.c.l.b16 %v1792
    %v2008 = vunpack.c.h.b16 %v1792
    %v2009 = vunpack.c.l.b16 %v1793
    %v2010 = vunpack.c.h.b16 %v1793
    %v2011 = vunpack.c.l.b16 %v1794
    %v2012 = vunpack.c.h.b16 %v1794
    %v2013 = vunpack.c.l.b16 %v1795
    %v2014 = vunpack.c.h.b16 %v1795
    %v2015 = vunpack.c.l.b16 %v1796
    %v2016 = vunpack.c.h.b16 %v1796
    %v2017 = vunpack.c.l.b16 %v1797
    %v2018 = vunpack.c.h.b16 %v1797
    %v2019 = vunpack.c.l.b16 %v1798
    %v2020 = vunpack.c.h.b16 %v1798
    %v2021 = vunpack.c.l.b16 %v1799
    %v2022 = vunpack.c.h.b16 %v1799
    %v2023 = vunpack.c.l.b16 %v1800
    %v2024 = vunpack.c.h.b16 %v1800
    %v2025 = vunpack.c.l.b16 %v1801
    %v2026 = vunpack.c.h.b16 %v1801
    %v2027 = vunpack.c.l.b16 %v1802
    %v2028 = vunpack.c.h.b16 %v1802
    %v2029 = vunpack.c.l.b16 %v1803
    %v2030 = vunpack.c.h.b16 %v1803
    %v2031 = vunpack.c.l.b16 %v1804
    %v2032 = vunpack.c.h.b16 %v1804
    %v2033 = vunpack.c.l.b16 %v1805
    %v2034 = vunpack.c.h.b16 %v1805
    %v2035 = vunpack.c.l.b16 %v1806
    %v2036 = vunpack.c.h.b16 %v1806
    %v2037 = vunpack.c.l.b16 %v1807
    %v2038 = vunpack.c.h.b16 %v1807
    %v2039 = vunpack.c.l.b16 %v1808
    %v2040 = vunpack.c.h.b16 %v1808
    %v2041 = vunpack.c.l.b16 %v1809
    %v2042 = vunpack.c.h.b16 %v1809
    %v2043 = vunpack.c.l.b16 %v1810
    %v2044 = vunpack.c.h.b16 %v1810
    %v2045 = vunpack.c.l.b16 %v1811
    %v2046 = vunpack.c.h.b16 %v1811
    %v2047 = vunpack.c.l.b16 %v1812
    %v2048 = vunpack.c.h.b16 %v1812
    %v2049 = vunpack.c.l.b16 %v1813
    %v2050 = vunpack.c.h.b16 %v1813
    %v2051 = vunpack.c.l.b16 %v1814
    %v2052 = vunpack.c.h.b16 %v1814
    %v2053 = vunpack.c.l.b16 %v1815
    %v2054 = vunpack.c.h.b16 %v1815
    %v2055 = vunpack.c.l.b16 %v1816
    %v2056 = vunpack.c.h.b16 %v1816
    %v2057 = vunpack.c.l.b16 %v1817
    %v2058 = vunpack.c.h.b16 %v1817
    %v2059 = vunpack.c.l.b16 %v1818
    %v2060 = vunpack.c.h.b16 %v1818
    %v2061 = vunpack.c.l.b16 %v1819
    %v2062 = vunpack.c.h.b16 %v1819
    %v2063 = vunpack.c.l.b16 %v1820
    %v2064 = vunpack.c.h.b16 %v1820
    %v2065 = vunpack.c.l.b16 %v1821
    %v2066 = vunpack.c.h.b16 %v1821
    %v2067 = vunpack.c.l.b16 %v1822
    %v2068 = vunpack.c.h.b16 %v1822
    %v2069 = vunpack.c.l.b16 %v1823
    %v2070 = vunpack.c.h.b16 %v1823
    %v2071 = vunpack.c.l.b16 %v1824
    %v2072 = vunpack.c.h.b16 %v1824
    %v2073 = vunpack.c.l.b16 %v1825
    %v2074 = vunpack.c.h.b16 %v1825
    %v2075 = vunpack.c.l.b16 %v1826
    %v2076 = vunpack.c.h.b16 %v1826
    %v2077 = vunpack.c.l.b16 %v1827
    %v2078 = vunpack.c.h.b16 %v1827
    %v2079 = vunpack.c.l.b16 %v1828
    %v2080 = vunpack.c.h.b16 %v1828
    %v2081 = vunpack.c.l.b16 %v1829
    %v2082 = vunpack.c.h.b16 %v1829
    %v2083 = vunpack.c.l.b16 %v1830
    %v2084 = vunpack.c.h.b16 %v1830
    %v2085 = vunpack.c.l.b16 %v1831
    %v2086 = vunpack.c.h.b16 %v1831
    %v2087 = vunpack.c.l.b16 %v1832
    %v2088 = vunpack.c.h.b16 %v1832
    %v2089 = vunpack.c.l.b16 %v1833
    %v2090 = vunpack.c.h.b16 %v1833
    %v2091 = vunpack.c.l.b16 %v1834
    %v2092 = vunpack.c.h.b16 %v1834
    %v2093 = vunpack.c.l.b16 %v1835
    %v2094 = vunpack.c.h.b16 %v1835
    %v2095 = vunpack.c.l.b16 %v1836
    %v2096 = vunpack.c.h.b16 %v1836
    %v2097 = vunpack.c.l.b16 %v1837
    %v2098 = vunpack.c.h.b16 %v1837
    %v2099 = vunpack.c.l.b16 %v1838
    %v2100 = vunpack.c.h.b16 %v1838
    %v2101 = vunpack.c.l.b16 %v1839
    %v2102 = vunpack.c.h.b16 %v1839
    %v2103 = vunpack.c.l.b16 %v1840
    %v2104 = vunpack.c.h.b16 %v1840
    %v2105 = vunpack.c.l.b16 %v1841
    %v2106 = vunpack.c.h.b16 %v1841
    %v2107 = vunpack.c.l.b16 %v1842
    %v2108 = vunpack.c.h.b16 %v1842
    %v2109 = vunpack.c.l.b16 %v1843
    %v2110 = vunpack.c.h.b16 %v1843
    %v2111 = vunpack.c.l.b16 %v1844
    %v2112 = vunpack.c.h.b16 %v1844
    %v2113 = vunpack.c.l.b16 %v1845
    %v2114 = vunpack.c.h.b16 %v1845
    %v2115 = vunpack.c.l.b16 %v1846
    %v2116 = vunpack.c.h.b16 %v1846
    %v2117 = vunpack.c.l.b16 %v1847
    %v2118 = vunpack.c.h.b16 %v1847
    %v2119 = vunpack.c.l.b16 %v1848
    %v2120 = vunpack.c.h.b16 %v1848
    %v2121 = vunpack.c.l.b16 %v1849
    %v2122 = vunpack.c.h.b16 %v1849
    %v2123 = vunpack.c.l.b16 %v1850
    %v2124 = vunpack.c.h.b16 %v1850
    %v2125 = vunpack.c.l.b16 %v1851
    %v2126 = vunpack.c.h.b16 %v1851
    %v2127 = vunpack.c.l.b16 %v1852
    %v2128 = vunpack.c.h.b16 %v1852
    %v2129 = vunpack.c.l.b16 %v1853
    %v2130 = vunpack.c.h.b16 %v1853
    %v2131 = vunpack.c.l.b16 %v1854
    %v2132 = vunpack.c.h.b16 %v1854
    %v2133 = vunpack.c.l.b16 %v1855
    %v2134 = vunpack.c.h.b16 %v1855
    %v2135 = vunpack.c.l.b16 %v1856
    %v2136 = vunpack.c.h.b16 %v1856
    %v2137 = vunpack.c.l.b16 %v1857
    %v2138 = vunpack.c.h.b16 %v1857
    %v2139 = vunpack.c.l.b16 %v1858
    %v2140 = vunpack.c.h.b16 %v1858
    %v2141 = vunpack.c.l.b16 %v1859
    %v2142 = vunpack.c.h.b16 %v1859
    %v2143 = vunpack.c.l.b16 %v1860
    %v2144 = vunpack.c.h.b16 %v1860
    %v2145 = vunpack.c.l.b16 %v1861
    %v2146 = vunpack.c.h.b16 %v1861
    %v2147 = vunpack.c.l.b16 %v1862
    %v2148 = vunpack.c.h.b16 %v1862
    %v2149 = vunpack.c.l.b16 %v1863
    %v2150 = vunpack.c.h.b16 %v1863
    %v2151 = vunpack.c.l.b16 %v1864
    %v2152 = vunpack.c.h.b16 %v1864
    %v2153 = vunpack.c.l.b16 %v1865
    %v2154 = vunpack.c.h.b16 %v1865
    %v2155 = vunpack.c.l.b16 %v1866
    %v2156 = vunpack.c.h.b16 %v1866
    %v2157 = vunpack.c.l.b16 %v1867
    %v2158 = vunpack.c.h.b16 %v1867
    %v2159 = vunpack.c.l.b16 %v1868
    %v2160 = vunpack.c.h.b16 %v1868
    %v2161 = vunpack.c.l.b16 %v1869
    %v2162 = vunpack.c.h.b16 %v1869
    %v2163 = vunpack.c.l.b16 %v1870
    %v2164 = vunpack.c.h.b16 %v1870
    %v2165 = vunpack.c.l.b16 %v1871
    %v2166 = vunpack.c.h.b16 %v1871
    %v2167 = vunpack.c.l.b16 %v1872
    %v2168 = vunpack.c.h.b16 %v1872
    %v2169 = vunpack.c.l.b16 %v1873
    %v2170 = vunpack.c.h.b16 %v1873
    %v2171 = vunpack.c.l.b16 %v1874
    %v2172 = vunpack.c.h.b16 %v1874
    %v2173 = vunpack.c.l.b16 %v1875
    %v2174 = vunpack.c.h.b16 %v1875
    %v2175 = vunpack.c.l.b16 %v1876
    %v2176 = vunpack.c.h.b16 %v1876
    %v2177 = vpack.c.b16 %v1987, %v1985
    %v2178 = vpack.c.b16 %v1988, %v1986
    %v2179 = vpack.c.b16 %v1991, %v1989
    %v2180 = vpack.c.b16 %v1992, %v1990
    %v2181 = vpack.c.b16 %v1995, %v1993
    %v2182 = vpack.c.b16 %v1996, %v1994
    %v2183 = vpack.c.b16 %v1999, %v1997
    %v2184 = vpack.c.b16 %v2000, %v1998
    %v2185 = vpack.c.b16 %v2003, %v2001
    %v2186 = vpack.c.b16 %v2004, %v2002
    %v2187 = vpack.c.b16 %v2007, %v2005
    %v2188 = vpack.c.b16 %v2008, %v2006
    %v2189 = vpack.c.b16 %v2011, %v2009
    %v2190 = vpack.c.b16 %v2012, %v2010
    %v2191 = vpack.c.b16 %v2015, %v2013
    %v2192 = vpack.c.b16 %v2016, %v2014
    %v2193 = vpack.c.b16 %v2019, %v2017
    %v2194 = vpack.c.b16 %v2020, %v2018
    %v2195 = vpack.c.b16 %v2023, %v2021
    %v2196 = vpack.c.b16 %v2024, %v2022
    %v2197 = vpack.c.b16 %v2027, %v2025
    %v2198 = vpack.c.b16 %v2028, %v2026
    %v2199 = vpack.c.b16 %v2031, %v2029
    %v2200 = vpack.c.b16 %v2032, %v2030
    %v2201 = vpack.c.b16 %v2035, %v2033
    %v2202 = vpack.c.b16 %v2036, %v2034
    %v2203 = vpack.c.b16 %v2039, %v2037
    %v2204 = vpack.c.b16 %v2040, %v2038
    %v2205 = vpack.c.b16 %v2043, %v2041
    %v2206 = vpack.c.b16 %v2044, %v2042
    %v2207 = vpack.c.b16 %v2047, %v2045
    %v2208 = vpack.c.b16 %v2048, %v2046
    %v2209 = vpack.c.b16 %v2051, %v2049
    %v2210 = vpack.c.b16 %v2052, %v2050
    %v2211 = vpack.c.b16 %v2055, %v2053
    %v2212 = vpack.c.b16 %v2056, %v2054
    %v2213 = vpack.c.b16 %v2059, %v2057
    %v2214 = vpack.c.b16 %v2060, %v2058
    %v2215 = vpack.c.b16 %v2063, %v2061
    %v2216 = vpack.c.b16 %v2064, %v2062
    %v2217 = vpack.c.b16 %v2067, %v2065
    %v2218 = vpack.c.b16 %v2068, %v2066
    %v2219 = vpack.c.b16 %v2071, %v2069
    %v2220 = vpack.c.b16 %v2072, %v2070
    %v2221 = vpack.c.b16 %v2075, %v2073
    %v2222 = vpack.c.b16 %v2076, %v2074
    %v2223 = vpack.c.b16 %v2079, %v2077
    %v2224 = vpack.c.b16 %v2080, %v2078
    %v2225 = vpack.c.b16 %v2083, %v2081
    %v2226 = vpack.c.b16 %v2084, %v2082
    %v2227 = vpack.c.b16 %v2087, %v2085
    %v2228 = vpack.c.b16 %v2088, %v2086
    %v2229 = vpack.c.b16 %v2091, %v2089
    %v2230 = vpack.c.b16 %v2092, %v2090
    %v2231 = vpack.c.b16 %v2095, %v2093
    %v2232 = vpack.c.b16 %v2096, %v2094
    %v2233 = vpack.c.b16 %v2099, %v2097
    %v2234 = vpack.c.b16 %v2100, %v2098
    %v2235 = vpack.c.b16 %v2103, %v2101
    %v2236 = vpack.c.b16 %v2104, %v2102
    %v2237 = vpack.c.b16 %v2107, %v2105
    %v2238 = vpack.c.b16 %v2108, %v2106
    %v2239 = vpack.c.b16 %v2111, %v2109
    %v2240 = vpack.c.b16 %v2112, %v2110
    %v2241 = vpack.c.b16 %v2115, %v2113
    %v2242 = vpack.c.b16 %v2116, %v2114
    %v2243 = vpack.c.b16 %v2119, %v2117
    %v2244 = vpack.c.b16 %v2120, %v2118
    %v2245 = vpack.c.b16 %v2123, %v2121
    %v2246 = vpack.c.b16 %v2124, %v2122
    %v2247 = vpack.c.b16 %v2127, %v2125
    %v2248 = vpack.c.b16 %v2128, %v2126
    %v2249 = vpack.c.b16 %v2131, %v2129
    %v2250 = vpack.c.b16 %v2132, %v2130
    %v2251 = vpack.c.b16 %v2135, %v2133
    %v2252 = vpack.c.b16 %v2136, %v2134
    %v2253 = vpack.c.b16 %v2139, %v2137
    %v2254 = vpack.c.b16 %v2140, %v2138
    %v2255 = vpack.c.b16 %v2143, %v2141
    %v2256 = vpack.c.b16 %v2144, %v2142
    %v2257 = vpack.c.b16 %v2147, %v2145
    %v2258 = vpack.c.b16 %v2148, %v2146
    %v2259 = vpack.c.b16 %v2151, %v2149
    %v2260 = vpack.c.b16 %v2152, %v2150
    %v2261 = vpack.c.b16 %v2155, %v2153
    %v2262 = vpack.c.b16 %v2156, %v2154
    %v2263 = vpack.c.b16 %v2159, %v2157
    %v2264 = vpack.c.b16 %v2160, %v2158
    %v2265 = vpack.c.b16 %v2163, %v2161
    %v2266 = vpack.c.b16 %v2164, %v2162
    %v2267 = vpack.c.b16 %v2167, %v2165
    %v2268 = vpack.c.b16 %v2168, %v2166
    %v2269 = vpack.c.b16 %v2171, %v2169
    %v2270 = vpack.c.b16 %v2172, %v2170
    %v2271 = vpack.c.b16 %v2175, %v2173
    %v2272 = vpack.c.b16 %v2176, %v2174
    %2369 = vmatprep.subr.bf16.mxu0 %v2178
    %2370 = vmatpush1.bf16.msra.mxu0 %v2177
    %2371 = vmatprep.subr.bf16.mxu0 %v2180
    %2372 = vmatpush1.bf16.msra.mxu0 %v2179
    %2373 = vmatprep.subr.bf16.mxu0 %v2182
    %2374 = vmatpush1.bf16.msra.mxu0 %v2181
    %2375 = vmatprep.subr.bf16.mxu0 %v2184
    %2376 = vmatpush1.bf16.msra.mxu0 %v2183
    %2377 = vmatprep.subr.bf16.mxu0 %v2186
    %2378 = vmatpush1.bf16.msra.mxu0 %v2185
    %2379 = vmatprep.subr.bf16.mxu0 %v2188
    %2380 = vmatpush1.bf16.msra.mxu0 %v2187
    %2381 = vmatprep.subr.bf16.mxu0 %v2190
    %2382 = vmatpush1.bf16.msra.mxu0 %v2189
    %2383 = vmatprep.subr.bf16.mxu0 %v2192
    %2384 = vmatpush1.bf16.msra.mxu0 %v2191
    %2385 = vmatprep.subr.bf16.mxu0 %v2194
    %2386 = vmatpush1.bf16.msra.mxu0 %v2193
    %2387 = vmatprep.subr.bf16.mxu0 %v2196
    %2388 = vmatpush1.bf16.msra.mxu0 %v2195
    %2389 = vmatprep.subr.bf16.mxu0 %v2198
    %2390 = vmatpush1.bf16.msra.mxu0 %v2197
    %2391 = vmatprep.subr.bf16.mxu0 %v2200
    %2392 = vmatpush1.bf16.msra.mxu0 %v2199
    %2393 = vmatprep.subr.bf16.mxu0 %v2202
    %2394 = vmatpush1.bf16.msra.mxu0 %v2201
    %2395 = vmatprep.subr.bf16.mxu0 %v2204
    %2396 = vmatpush1.bf16.msra.mxu0 %v2203
    %2397 = vmatprep.subr.bf16.mxu0 %v2206
    %2398 = vmatpush1.bf16.msra.mxu0 %v2205
    %2399 = vmatprep.subr.bf16.mxu0 %v2208
    %2400 = vmatpush1.bf16.msra.mxu0 %v2207
    %2401 = vmatprep.mubr.bf16.mxu0 %v1746
    %2402 = vmatmul.mubr.bf16.gmra.mrb[0].mxu0 %v1745
    %v2403 = vpop.f32.mrb[0].mxu0
    %v2404 = vadd.f32 %v1882, %v2403
    %v2405 = vpop.f32.mrb[0].mxu0
    %v2406 = vadd.f32 %v1886, %v2405
    %v2407 = vpop.f32.mrb[0].mxu0
    %v2408 = vadd.f32 %v1882, %v2407
    %v2409 = vpop.f32.mrb[0].mxu0
    %v2410 = vadd.f32 %v1886, %v2409
    %2411 = vmatprep.mubr.bf16.mxu0 %v1752
    %2412 = vmatmul.mubr.bf16.gmra.mrb[0].mxu0 %v1751
    %v2413 = vpop.f32.mrb[0].mxu0
    %v2414 = vadd.f32 %v1882, %v2413
    %v2415 = vpop.f32.mrb[0].mxu0
    %v2416 = vadd.f32 %v1886, %v2415
    %v2417 = vpop.f32.mrb[0].mxu0
    %v2418 = vadd.f32 %v1882, %v2417
    %v2419 = vpop.f32.mrb[0].mxu0
    %v2420 = vadd.f32 %v1886, %v2419
    %2421 = vmatprep.mubr.bf16.mxu0 %v1758
    %2422 = vmatmul.mubr.bf16.gmra.mrb[0].mxu0 %v1757
    %v2423 = vpop.f32.mrb[0].mxu0
    %v2424 = vadd.f32 %v1882, %v2423
    %v2425 = vpop.f32.mrb[0].mxu0
    %v2426 = vadd.f32 %v1886, %v2425
    %v2427 = vpop.f32.mrb[0].mxu0
    %v2428 = vadd.f32 %v1882, %v2427
    %v2429 = vpop.f32.mrb[0].mxu0
    %v2430 = vadd.f32 %v1886, %v2429
    %2431 = vmatprep.mubr.bf16.mxu0 %v1764
    %2432 = vmatmul.mubr.bf16.gmra.mrb[0].mxu0 %v1763
    %v2433 = vpop.f32.mrb[0].mxu0
    %v2434 = vadd.f32 %v1882, %v2433
    %v2435 = vpop.f32.mrb[0].mxu0
    %v2436 = vadd.f32 %v1886, %v2435
    %v2437 = vpop.f32.mrb[0].mxu0
    %v2438 = vadd.f32 %v1882, %v2437
    %v2439 = vpop.f32.mrb[0].mxu0
    %v2440 = vadd.f32 %v1886, %v2439
    %2441 = vmatprep.mubr.bf16.mxu0 %v1770
    %2442 = vmatmul.mubr.bf16.gmra.mrb[0].mxu0 %v1769
    %v2443 = vpop.f32.mrb[0].mxu0
    %v2444 = vadd.f32 %v1882, %v2443
    %v2445 = vpop.f32.mrb[0].mxu0
    %v2446 = vadd.f32 %v1886, %v2445
    %v2447 = vpop.f32.mrb[0].mxu0
    %v2448 = vadd.f32 %v1882, %v2447
    %v2449 = vpop.f32.mrb[0].mxu0
    %v2450 = vadd.f32 %v1886, %v2449
    %2451 = vmatprep.mubr.bf16.mxu0 %v1776
    %2452 = vmatmul.mubr.bf16.gmra.mrb[0].mxu0 %v1775
    %v2453 = vpop.f32.mrb[0].mxu0
    %v2454 = vadd.f32 %v1882, %v2453
    %v2455 = vpop.f32.mrb[0].mxu0
    %v2456 = vadd.f32 %v1886, %v2455
    %v2457 = vpop.f32.mrb[0].mxu0
    %v2458 = vadd.f32 %v1882, %v2457
    %v2459 = vpop.f32.mrb[0].mxu0
    %v2460 = vadd.f32 %v1886, %v2459
    %2461 = vdwg.mxu0
    %2462 = vmatprep.subr.bf16.mxu0 %v2210
    %2463 = vmatpush1.bf16.msra.mxu0 %v2209
    %2464 = vmatprep.subr.bf16.mxu0 %v2212
    %2465 = vmatpush1.bf16.msra.mxu0 %v2211
    %2466 = vmatprep.subr.bf16.mxu0 %v2214
    %2467 = vmatpush1.bf16.msra.mxu0 %v2213
    %2468 = vmatprep.subr.bf16.mxu0 %v2216
    %2469 = vmatpush1.bf16.msra.mxu0 %v2215
    %2470 = vmatprep.subr.bf16.mxu0 %v2218
    %2471 = vmatpush1.bf16.msra.mxu0 %v2217
    %2472 = vmatprep.subr.bf16.mxu0 %v2220
    %2473 = vmatpush1.bf16.msra.mxu0 %v2219
    %2474 = vmatprep.subr.bf16.mxu0 %v2222
    %2475 = vmatpush1.bf16.msra.mxu0 %v2221
    %2476 = vmatprep.subr.bf16.mxu0 %v2224
    %2477 = vmatpush1.bf16.msra.mxu0 %v2223
    %2478 = vmatprep.subr.bf16.mxu0 %v2226
    %2479 = vmatpush1.bf16.msra.mxu0 %v2225
    %2480 = vmatprep.subr.bf16.mxu0 %v2228
    %2481 = vmatpush1.bf16.msra.mxu0 %v2227
    %2482 = vmatprep.subr.bf16.mxu0 %v2230
    %2483 = vmatpush1.bf16.msra.mxu0 %v2229
    %2484 = vmatprep.subr.bf16.mxu0 %v2232
    %2485 = vmatpush1.bf16.msra.mxu0 %v2231
    %2486 = vmatprep.subr.bf16.mxu0 %v2234
    %2487 = vmatpush1.bf16.msra.mxu0 %v2233
    %2488 = vmatprep.subr.bf16.mxu0 %v2236
    %2489 = vmatpush1.bf16.msra.mxu0 %v2235
    %2490 = vmatprep.subr.bf16.mxu0 %v2238
    %2491 = vmatpush1.bf16.msra.mxu0 %v2237
    %2492 = vmatprep.subr.bf16.mxu0 %v2240
    %2493 = vmatpush1.bf16.msra.mxu0 %v2239
    %2494 = vmatprep.mubr.bf16.mxu0 %v1748
    %2495 = vmatmul.mubr.bf16.gmra.mrb[0].mxu0 %v1747
    %v2496 = vpop.f32.mrb[0].mxu0
    %v2497 = vadd.f32 %v2404, %v2496
    %v2498 = vpop.f32.mrb[0].mxu0
    %v2499 = vadd.f32 %v2406, %v2498
    %v2500 = vpop.f32.mrb[0].mxu0
    %v2501 = vadd.f32 %v2408, %v2500
    %v2502 = vpop.f32.mrb[0].mxu0
    %v2503 = vadd.f32 %v2410, %v2502
    %2504 = vmatprep.mubr.bf16.mxu0 %v1754
    %2505 = vmatmul.mubr.bf16.gmra.mrb[0].mxu0 %v1753
    %v2506 = vpop.f32.mrb[0].mxu0
    %v2507 = vadd.f32 %v2414, %v2506
    %v2508 = vpop.f32.mrb[0].mxu0
    %v2509 = vadd.f32 %v2416, %v2508
    %v2510 = vpop.f32.mrb[0].mxu0
    %v2511 = vadd.f32 %v2418, %v2510
    %v2512 = vpop.f32.mrb[0].mxu0
    %v2513 = vadd.f32 %v2420, %v2512
    %2514 = vmatprep.mubr.bf16.mxu0 %v1760
    %2515 = vmatmul.mubr.bf16.gmra.mrb[0].mxu0 %v1759
    %v2516 = vpop.f32.mrb[0].mxu0
    %v2517 = vadd.f32 %v2424, %v2516
    %v2518 = vpop.f32.mrb[0].mxu0
    %v2519 = vadd.f32 %v2426, %v2518
    %v2520 = vpop.f32.mrb[0].mxu0
    %v2521 = vadd.f32 %v2428, %v2520
    %v2522 = vpop.f32.mrb[0].mxu0
    %v2523 = vadd.f32 %v2430, %v2522
    %2524 = vmatprep.mubr.bf16.mxu0 %v1766
    %2525 = vmatmul.mubr.bf16.gmra.mrb[0].mxu0 %v1765
    %v2526 = vpop.f32.mrb[0].mxu0
    %v2527 = vadd.f32 %v2434, %v2526
    %v2528 = vpop.f32.mrb[0].mxu0
    %v2529 = vadd.f32 %v2436, %v2528
    %v2530 = vpop.f32.mrb[0].mxu0
    %v2531 = vadd.f32 %v2438, %v2530
    %v2532 = vpop.f32.mrb[0].mxu0
    %v2533 = vadd.f32 %v2440, %v2532
    %2534 = vmatprep.mubr.bf16.mxu0 %v1772
    %2535 = vmatmul.mubr.bf16.gmra.mrb[0].mxu0 %v1771
    %v2536 = vpop.f32.mrb[0].mxu0
    %v2537 = vadd.f32 %v2444, %v2536
    %v2538 = vpop.f32.mrb[0].mxu0
    %v2539 = vadd.f32 %v2446, %v2538
    %v2540 = vpop.f32.mrb[0].mxu0
    %v2541 = vadd.f32 %v2448, %v2540
    %v2542 = vpop.f32.mrb[0].mxu0
    %v2543 = vadd.f32 %v2450, %v2542
    %2544 = vmatprep.mubr.bf16.mxu0 %v1778
    %2545 = vmatmul.mubr.bf16.gmra.mrb[0].mxu0 %v1777
    %v2546 = vpop.f32.mrb[0].mxu0
    %v2547 = vadd.f32 %v2454, %v2546
    %v2548 = vpop.f32.mrb[0].mxu0
    %v2549 = vadd.f32 %v2456, %v2548
    %v2550 = vpop.f32.mrb[0].mxu0
    %v2551 = vadd.f32 %v2458, %v2550
    %v2552 = vpop.f32.mrb[0].mxu0
    %v2553 = vadd.f32 %v2460, %v2552
    %2554 = vdwg.mxu0
    %2555 = vmatprep.subr.bf16.mxu0 %v2242
    %2556 = vmatpush1.bf16.msra.mxu0 %v2241
    %2557 = vmatprep.subr.bf16.mxu0 %v2244
    %2558 = vmatpush1.bf16.msra.mxu0 %v2243
    %2559 = vmatprep.subr.bf16.mxu0 %v2246
    %2560 = vmatpush1.bf16.msra.mxu0 %v2245
    %2561 = vmatprep.subr.bf16.mxu0 %v2248
    %2562 = vmatpush1.bf16.msra.mxu0 %v2247
    %2563 = vmatprep.subr.bf16.mxu0 %v2250
    %2564 = vmatpush1.bf16.msra.mxu0 %v2249
    %2565 = vmatprep.subr.bf16.mxu0 %v2252
    %2566 = vmatpush1.bf16.msra.mxu0 %v2251
    %2567 = vmatprep.subr.bf16.mxu0 %v2254
    %2568 = vmatpush1.bf16.msra.mxu0 %v2253
    %2569 = vmatprep.subr.bf16.mxu0 %v2256
    %2570 = vmatpush1.bf16.msra.mxu0 %v2255
    %2571 = vmatprep.subr.bf16.mxu0 %v2258
    %2572 = vmatpush1.bf16.msra.mxu0 %v2257
    %2573 = vmatprep.subr.bf16.mxu0 %v2260
    %2574 = vmatpush1.bf16.msra.mxu0 %v2259
    %2575 = vmatprep.subr.bf16.mxu0 %v2262
    %2576 = vmatpush1.bf16.msra.mxu0 %v2261
    %2577 = vmatprep.subr.bf16.mxu0 %v2264
    %2578 = vmatpush1.bf16.msra.mxu0 %v2263
    %2579 = vmatprep.subr.bf16.mxu0 %v2266
    %2580 = vmatpush1.bf16.msra.mxu0 %v2265
    %2581 = vmatprep.subr.bf16.mxu0 %v2268
    %2582 = vmatpush1.bf16.msra.mxu0 %v2267
    %2583 = vmatprep.subr.bf16.mxu0 %v2270
    %2584 = vmatpush1.bf16.msra.mxu0 %v2269
    %2585 = vmatprep.subr.bf16.mxu0 %v2272
    %2586 = vmatpush1.bf16.msra.mxu0 %v2271
    %2587 = vmatprep.mubr.bf16.mxu0 %v1750
    %2588 = vmatmul.mubr.bf16.gmra.mrb[0].mxu0 %v1749
    %v2589 = vpop.f32.mrb[0].mxu0
    %v2590 = vadd.f32 %v2497, %v2589
    %v2591 = vpop.f32.mrb[0].mxu0
    %v2592 = vadd.f32 %v2499, %v2591
    %v2593 = vpop.f32.mrb[0].mxu0
    %v2594 = vadd.f32 %v2501, %v2593
    %v2595 = vpop.f32.mrb[0].mxu0
    %v2596 = vadd.f32 %v2503, %v2595
    %2597 = vmatprep.mubr.bf16.mxu0 %v1756
    %2598 = vmatmul.mubr.bf16.gmra.mrb[0].mxu0 %v1755
    %v2599 = vpop.f32.mrb[0].mxu0
    %v2600 = vadd.f32 %v2507, %v2599
    %v2601 = vpop.f32.mrb[0].mxu0
    %v2602 = vadd.f32 %v2509, %v2601
    %v2603 = vpop.f32.mrb[0].mxu0
    %v2604 = vadd.f32 %v2511, %v2603
    %v2605 = vpop.f32.mrb[0].mxu0
    %v2606 = vadd.f32 %v2513, %v2605
    %2607 = vmatprep.mubr.bf16.mxu0 %v1762
    %2608 = vmatmul.mubr.bf16.gmra.mrb[0].mxu0 %v1761
    %v2609 = vpop.f32.mrb[0].mxu0
    %v2610 = vadd.f32 %v2517, %v2609
    %v2611 = vpop.f32.mrb[0].mxu0
    %v2612 = vadd.f32 %v2519, %v2611
    %v2613 = vpop.f32.mrb[0].mxu0
    %v2614 = vadd.f32 %v2521, %v2613
    %v2615 = vpop.f32.mrb[0].mxu0
    %v2616 = vadd.f32 %v2523, %v2615
    %2617 = vmatprep.mubr.bf16.mxu0 %v1768
    %2618 = vmatmul.mubr.bf16.gmra.mrb[0].mxu0 %v1767
    %v2619 = vpop.f32.mrb[0].mxu0
    %v2620 = vadd.f32 %v2527, %v2619
    %v2621 = vpop.f32.mrb[0].mxu0
    %v2622 = vadd.f32 %v2529, %v2621
    %v2623 = vpop.f32.mrb[0].mxu0
    %v2624 = vadd.f32 %v2531, %v2623
    %v2625 = vpop.f32.mrb[0].mxu0
    %v2626 = vadd.f32 %v2533, %v2625
    %2627 = vmatprep.mubr.bf16.mxu0 %v1774
    %2628 = vmatmul.mubr.bf16.gmra.mrb[0].mxu0 %v1773
    %v2629 = vpop.f32.mrb[0].mxu0
    %v2630 = vadd.f32 %v2537, %v2629
    %v2631 = vpop.f32.mrb[0].mxu0
    %v2632 = vadd.f32 %v2539, %v2631
    %v2633 = vpop.f32.mrb[0].mxu0
    %v2634 = vadd.f32 %v2541, %v2633
    %v2635 = vpop.f32.mrb[0].mxu0
    %v2636 = vadd.f32 %v2543, %v2635
    %2637 = vmatprep.mubr.bf16.mxu0 %v1780
    %2638 = vmatmul.mubr.bf16.gmra.mrb[0].mxu0 %v1779
    %v2639 = vpop.f32.mrb[0].mxu0
    %v2640 = vadd.f32 %v2547, %v2639
    %v2641 = vpop.f32.mrb[0].mxu0
    %v2642 = vadd.f32 %v2549, %v2641
    %v2643 = vpop.f32.mrb[0].mxu0
    %v2644 = vadd.f32 %v2551, %v2643
    %v2645 = vpop.f32.mrb[0].mxu0
    %v2646 = vadd.f32 %v2553, %v2645
    %2647 = vdwg.mxu0
    %v2648 = vrot.slane %v2590, 4
    %v2649 = vrot.slane %v2592, 4
    %v2650 = vsel %vm191, %v2648, %v2644
    %v2651 = vsel %vm191, %v2649, %v2646
    %v2676 = vrot.slane %v2590, 1
    %v2677 = vrot.slane %v2594, 1
    %v2678 = vsel %vm441, %v2676, %v2677
    %v2679 = vrot.slane %v2592, 1
    %v2680 = vrot.slane %v2596, 1
    %v2681 = vsel %vm441, %v2679, %v2680
    %v2682 = vrot.slane %v2600, 1
    %v2683 = vsel %vm441, %v2677, %v2682
    %v2684 = vrot.slane %v2602, 1
    %v2685 = vsel %vm441, %v2680, %v2684
    %v2686 = vrot.slane %v2604, 1
    %v2687 = vsel %vm441, %v2682, %v2686
    %v2688 = vrot.slane %v2606, 1
    %v2689 = vsel %vm441, %v2684, %v2688
    %v2690 = vrot.slane %v2610, 1
    %v2691 = vsel %vm441, %v2686, %v2690
    %v2692 = vrot.slane %v2612, 1
    %v2693 = vsel %vm441, %v2688, %v2692
    %v2694 = vrot.slane %v2614, 1
    %v2695 = vsel %vm441, %v2690, %v2694
    %v2696 = vrot.slane %v2616, 1
    %v2697 = vsel %vm441, %v2692, %v2696
    %v2698 = vrot.slane %v2620, 1
    %v2699 = vsel %vm441, %v2694, %v2698
    %v2700 = vrot.slane %v2622, 1
    %v2701 = vsel %vm441, %v2696, %v2700
    %v2702 = vrot.slane %v2624, 1
    %v2703 = vsel %vm441, %v2698, %v2702
    %v2704 = vrot.slane %v2626, 1
    %v2705 = vsel %vm441, %v2700, %v2704
    %v2706 = vrot.slane %v2630, 1
    %v2707 = vsel %vm441, %v2702, %v2706
    %v2708 = vrot.slane %v2632, 1
    %v2709 = vsel %vm441, %v2704, %v2708
    %v2710 = vrot.slane %v2634, 1
    %v2711 = vsel %vm441, %v2706, %v2710
    %v2712 = vrot.slane %v2636, 1
    %v2713 = vsel %vm441, %v2708, %v2712
    %v2714 = vrot.slane %v2640, 1
    %v2715 = vsel %vm441, %v2710, %v2714
    %v2716 = vrot.slane %v2642, 1
    %v2717 = vsel %vm441, %v2712, %v2716
    %v2718 = vrot.slane %v2650, 1
    %v2719 = vsel %vm441, %v2714, %v2718
    %v2720 = vrot.slane %v2651, 1
    %v2721 = vsel %vm441, %v2716, %v2720
    %v2746 = vmax.f32 %v2590, %v2678
    %v2747 = vmax.f32 %v2592, %v2681
    %v2748 = vmax.f32 %v2594, %v2683
    %v2749 = vmax.f32 %v2596, %v2685
    %v2750 = vmax.f32 %v2600, %v2687
    %v2751 = vmax.f32 %v2602, %v2689
    %v2752 = vmax.f32 %v2604, %v2691
    %v2753 = vmax.f32 %v2606, %v2693
    %v2754 = vmax.f32 %v2610, %v2695
    %v2755 = vmax.f32 %v2612, %v2697
    %v2756 = vmax.f32 %v2614, %v2699
    %v2757 = vmax.f32 %v2616, %v2701
    %v2758 = vmax.f32 %v2620, %v2703
    %v2759 = vmax.f32 %v2622, %v2705
    %v2760 = vmax.f32 %v2624, %v2707
    %v2761 = vmax.f32 %v2626, %v2709
    %v2762 = vmax.f32 %v2630, %v2711
    %v2763 = vmax.f32 %v2632, %v2713
    %v2764 = vmax.f32 %v2634, %v2715
    %v2765 = vmax.f32 %v2636, %v2717
    %v2766 = vmax.f32 %v2640, %v2719
    %v2767 = vmax.f32 %v2642, %v2721
    %v2768 = vmax.f32 %v2644, %v2718
    %v2769 = vmax.f32 %v2646, %v2720
    %v2770 = vld [vmem:[%s13] sm:$0xff]
    %v2771 = vld [vmem:[%s13 + $0x8] sm:$0xff]
    %v2772 = vld [vmem:[%s13 + $0x10] sm:$0xff]
    %v2773 = vld [vmem:[%s13 + $0x18] sm:$0xff]
    %v2774 = vld [vmem:[%s13 + $0x20] sm:$0xff]
    %v2775 = vld [vmem:[%s13 + $0x28] sm:$0x3f]
    %vm2776 = vcmask 752640
    %v2778 = vsel %vm2776, %v2770, 0
    %v2781 = vsel %vm2776, %v2771, 0
    %v2784 = vsel %vm2776, %v2772, 0
    %v2787 = vsel %vm2776, %v2773, 0
    %v2790 = vsel %vm2776, %v2774, 0
    %v2793 = vsel %vm2776, %v2775, 0
    %vm2795 = vcmask 1043456
    %v2797 = vsel %vm2795, %v2768, 0
    %v2800 = vsel %vm2795, %v2769, 0
    %2802 = vmatprep.subr.mxu0 %v2747
    %2803 = vmatpush1.msra.mxu0 %v2746
    %2804 = vmatprep.subr.mxu0 %v2749
    %2805 = vmatpush1.msra.mxu0 %v2748
    %2806 = vmatprep.subr.mxu0 %v2751
    %2807 = vmatpush1.msra.mxu0 %v2750
    %2808 = vmatprep.subr.mxu0 %v2753
    %2809 = vmatpush1.msra.mxu0 %v2752
    %2810 = vmatprep.subr.mxu0 %v2755
    %2811 = vmatpush1.msra.mxu0 %v2754
    %2812 = vmatprep.subr.mxu0 %v2757
    %2813 = vmatpush1.msra.mxu0 %v2756
    %2814 = vmatprep.subr.mxu0 %v2759
    %2815 = vmatpush1.msra.mxu0 %v2758
    %2816 = vmatprep.subr.mxu0 %v2761
    %2817 = vmatpush1.msra.mxu0 %v2760
    %2818 = vmatprep.subr.mxu0 %v2763
    %2819 = vmatpush1.msra.mxu0 %v2762
    %2820 = vmatprep.subr.mxu0 %v2765
    %2821 = vmatpush1.msra.mxu0 %v2764
    %2822 = vmatprep.subr.mxu0 %v2767
    %2823 = vmatpush1.msra.mxu0 %v2766
    %2824 = vmatprep.subr.mxu0 %v2800
    %2825 = vmatpush1.msra.mxu0 %v2797
    %2826 = vmatprep.subr.mxu0 0.0
    %2827 = vmatpush1.msra.mxu0 0.0
    %2828 = vmatprep.subr.mxu0 0.0
    %2829 = vmatpush1.msra.mxu0 0.0
    %2830 = vmatprep.subr.mxu0 0.0
    %2831 = vmatpush1.msra.mxu0 0.0
    %2832 = vmatprep.subr.mxu0 0.0
    %2833 = vmatpush1.msra.mxu0 0.0
    %2834 = vmatprep.subr.mxu0 0.0
    %2835 = vmatpush1.msra.mxu0 0.0
    %2836 = vmatprep.subr.mxu0 0.0
    %2837 = vmatpush1.msra.mxu0 0.0
    %2838 = vmatprep.subr.mxu0 0.0
    %2839 = vmatpush1.msra.mxu0 0.0
    %2840 = vmatprep.subr.mxu0 0.0
    %2841 = vmatpush1.msra.mxu0 0.0
    %2842 = vmatprep.subr.mxu0 0.0
    %2843 = vmatpush1.msra.mxu0 0.0
    %2844 = vmatprep.subr.mxu0 0.0
    %2845 = vmatpush1.msra.mxu0 0.0
    %2846 = vmatprep.subr.mxu0 0.0
    %2847 = vmatpush1.msra.mxu0 0.0
    %2848 = vmatprep.subr.mxu0 0.0
    %2849 = vmatpush1.msra.mxu0 0.0
    %2850 = vmatprep.subr.mxu0 0.0
    %2851 = vmatpush1.msra.mxu0 0.0
    %2852 = vmatprep.subr.mxu0 0.0
    %2853 = vmatpush1.msra.mxu0 0.0
    %2854 = vmatprep.subr.mxu0 0.0
    %2855 = vmatpush1.msra.mxu0 0.0
    %2856 = vmatprep.subr.mxu0 0.0
    %2857 = vmatpush1.msra.mxu0 0.0
    %2858 = vmatprep.subr.mxu0 0.0
    %2859 = vmatpush1.msra.mxu0 0.0
    %2860 = vmatprep.subr.mxu0 0.0
    %2861 = vmatpush1.msra.mxu0 0.0
    %2862 = vmatprep.subr.mxu0 0.0
    %2863 = vmatpush1.msra.mxu0 0.0
    %2864 = vmatprep.subr.mxu0 0.0
    %2865 = vmatpush1.msra.mxu0 0.0
    %2866 = vmatprep.mubr.f32.mxu0 0.0
    %2867 = vmatmul.mubr.f32.gmra.mrb[0].mxu0 %v2778
    %v2868 = vpop.f32.mrb[0].mxu0
    %v2869 = vadd.f32 0.0, %v2868
    %v2870 = vpop.f32.mrb[0].mxu0
    %v2871 = vadd.f32 0.0, %v2870
    %2872 = vmatprep.mubr.f32.mxu0 0.0
    %2873 = vmatmul.mubr.f32.gmra.mrb[0].mxu0 %v2781
    %v2874 = vpop.f32.mrb[0].mxu0
    %v2875 = vadd.f32 0.0, %v2874
    %v2876 = vpop.f32.mrb[0].mxu0
    %v2877 = vadd.f32 0.0, %v2876
    %2878 = vmatprep.mubr.f32.mxu0 0.0
    %2879 = vmatmul.mubr.f32.gmra.mrb[0].mxu0 %v2784
    %v2880 = vpop.f32.mrb[0].mxu0
    %v2881 = vadd.f32 0.0, %v2880
    %v2882 = vpop.f32.mrb[0].mxu0
    %v2883 = vadd.f32 0.0, %v2882
    %2884 = vmatprep.mubr.f32.mxu0 0.0
    %2885 = vmatmul.mubr.f32.gmra.mrb[0].mxu0 %v2787
    %v2886 = vpop.f32.mrb[0].mxu0
    %v2887 = vadd.f32 0.0, %v2886
    %v2888 = vpop.f32.mrb[0].mxu0
    %v2889 = vadd.f32 0.0, %v2888
    %2890 = vmatprep.mubr.f32.mxu0 0.0
    %2891 = vmatmul.mubr.f32.gmra.mrb[0].mxu0 %v2790
    %v2892 = vpop.f32.mrb[0].mxu0
    %v2893 = vadd.f32 0.0, %v2892
    %v2894 = vpop.f32.mrb[0].mxu0
    %v2895 = vadd.f32 0.0, %v2894
    %2896 = vmatprep.mubr.f32.mxu0 0.0
    %2897 = vmatmul.mubr.f32.gmra.mrb[0].mxu0 %v2793
    %v2898 = vpop.f32.mrb[0].mxu0
    %v2899 = vadd.f32 0.0, %v2898
    %v2900 = vpop.f32.mrb[0].mxu0
    %v2901 = vadd.f32 0.0, %v2900
    %2902 = vdwg.mxu0
    %v2903 = vmax.f32 %v2869, 0.0
    %v2904 = vmax.f32 %v2871, 0.0
    %v2905 = vmax.f32 %v2875, 0.0
    %v2906 = vmax.f32 %v2877, 0.0
    %v2907 = vmax.f32 %v2881, 0.0
    %v2908 = vmax.f32 %v2883, 0.0
    %v2909 = vmax.f32 %v2887, 0.0
    %v2910 = vmax.f32 %v2889, 0.0
    %v2911 = vmax.f32 %v2893, 0.0
    %v2912 = vmax.f32 %v2895, 0.0
    %v2913 = vmax.f32 %v2899, 0.0
    %v2914 = vmax.f32 %v2901, 0.0
    %vm2915 = vcmask 1047558
    %v2916 = vrot.slane %v2903, 2
    %v2917 = vsel %vm2915, %v2916, %v2913
    %v2918 = vrot.slane %v2904, 2
    %v2919 = vsel %vm2915, %v2918, %v2914
    %v2920 = vrot.slane %v2905, 2
    %v2921 = vrot.slane %v2906, 2
    %v2922 = vrot.slane %v2907, 2
    %v2923 = vrot.slane %v2908, 2
    %v2924 = vrot.slane %v2909, 2
    %v2925 = vrot.slane %v2910, 2
    %v2926 = vrot.slane %v2911, 2
    %v2927 = vrot.slane %v2912, 2
    %v2928 = vrot.slane %v2917, 2
    %v2929 = vrot.slane %v2919, 2
    %v2930 = vsel %vm2915, %v2920, %v2916
    %v2931 = vsel %vm2915, %v2921, %v2918
    %v2932 = vsel %vm2915, %v2922, %v2920
    %v2933 = vsel %vm2915, %v2923, %v2921
    %v2934 = vsel %vm2915, %v2924, %v2922
    %v2935 = vsel %vm2915, %v2925, %v2923
    %v2936 = vsel %vm2915, %v2926, %v2924
    %v2937 = vsel %vm2915, %v2927, %v2925
    %v2938 = vsel %vm2915, %v2928, %v2926
    %v2939 = vsel %vm2915, %v2929, %v2927
    %vm2954 = vcmask 1042432
    %v2955 = vrot.slane %v2917, 5
    %v2956 = vrot.slane %v2930, 5
    %v2957 = vsel %vm2954, %v2955, %v2956
    %v2958 = vrot.slane %v2919, 5
    %v2959 = vrot.slane %v2931, 5
    %v2960 = vsel %vm2954, %v2958, %v2959
    %v2961 = vrot.slane %v2932, 5
    %v2962 = vsel %vm2954, %v2956, %v2961
    %v2963 = vrot.slane %v2933, 5
    %v2964 = vsel %vm2954, %v2959, %v2963
    %v2965 = vrot.slane %v2934, 5
    %v2966 = vsel %vm2954, %v2961, %v2965
    %v2967 = vrot.slane %v2935, 5
    %v2968 = vsel %vm2954, %v2963, %v2967
    %v2969 = vrot.slane %v2936, 5
    %v2970 = vsel %vm2954, %v2965, %v2969
    %v2971 = vrot.slane %v2937, 5
    %v2972 = vsel %vm2954, %v2967, %v2971
    %v2973 = vrot.slane %v2938, 5
    %v2974 = vsel %vm2954, %v2969, %v2973
    %v2975 = vrot.slane %v2939, 5
    %v2976 = vsel %vm2954, %v2971, %v2975
    %v2977 = vrot.slane %v2928, 5
    %v2978 = vsel %vm2954, %v2973, %v2977
    %v2979 = vrot.slane %v2929, 5
    %v2980 = vsel %vm2954, %v2975, %v2979
    %v2993 = vsel %vm252, 0.0, %v2957
    %v2994 = vsel %vm252, 0.0, %v2960
    %v2995 = vsel %vm253, 0.0, %v2962
    %v2996 = vsel %vm253, 0.0, %v2964
    %v2997 = vsel %vm254, 0.0, %v2966
    %v2998 = vsel %vm254, 0.0, %v2968
    %v2999 = vsel %vm255, 0.0, %v2970
    %v3000 = vsel %vm255, 0.0, %v2972
    %v3001 = vsel %vm256, 0.0, %v2974
    %v3002 = vsel %vm256, 0.0, %v2976
    %v3003 = vsel %vm257, 0.0, %v2978
    %v3004 = vsel %vm257, 0.0, %v2980
    %vm3005 = vcmp.eq.s32.totalorder %v143, 45
    %vm3006 = vcmp.eq.s32.totalorder %v144, 45
    %vm3007 = vcmp.eq.s32.totalorder %v145, 45
    %vm3008 = vcmp.eq.s32.totalorder %v146, 45
    %vm3009 = vcmp.eq.s32.totalorder %v147, 45
    %vm3010 = vcmp.eq.s32.totalorder %v148, 45
    %v3011 = vsel %vm3005, 1, 0
    %v3012 = vsel %vm3006, 1, 0
    %v3013 = vsel %vm3007, 1, 0
    %v3014 = vsel %vm3008, 1, 0
    %v3015 = vsel %vm3009, 1, 0
    %v3016 = vsel %vm3010, 1, 0
    %vm3017 = vcmp.eq.s32.totalorder %v3011, 1
    %vm3018 = vcmp.eq.s32.totalorder %v3012, 1
    %vm3019 = vcmp.eq.s32.totalorder %v3013, 1
    %vm3020 = vcmp.eq.s32.totalorder %v3014, 1
    %vm3021 = vcmp.eq.s32.totalorder %v3015, 1
    %vm3022 = vcmp.eq.s32.totalorder %v3016, 1
    %v3033 = vrot.slane %v2903, 1
    %v3034 = vrot.slane %v2905, 1
    %v3035 = vsel %vm441, %v3033, %v3034
    %v3036 = vrot.slane %v2904, 1
    %v3037 = vrot.slane %v2906, 1
    %v3038 = vsel %vm441, %v3036, %v3037
    %v3039 = vrot.slane %v2907, 1
    %v3040 = vsel %vm441, %v3034, %v3039
    %v3041 = vrot.slane %v2908, 1
    %v3042 = vsel %vm441, %v3037, %v3041
    %v3043 = vrot.slane %v2909, 1
    %v3044 = vsel %vm441, %v3039, %v3043
    %v3045 = vrot.slane %v2910, 1
    %v3046 = vsel %vm441, %v3041, %v3045
    %v3047 = vrot.slane %v2911, 1
    %v3048 = vsel %vm441, %v3043, %v3047
    %v3049 = vrot.slane %v2912, 1
    %v3050 = vsel %vm441, %v3045, %v3049
    %v3051 = vrot.slane %v2917, 1
    %v3052 = vsel %vm441, %v3047, %v3051
    %v3053 = vrot.slane %v2919, 1
    %v3054 = vsel %vm441, %v3049, %v3053
    %v3067 = vsel %vm3017, 0.0, %v3035
    %v3068 = vsel %vm3017, 0.0, %v3038
    %v3069 = vsel %vm3018, 0.0, %v3040
    %v3070 = vsel %vm3018, 0.0, %v3042
    %v3071 = vsel %vm3019, 0.0, %v3044
    %v3072 = vsel %vm3019, 0.0, %v3046
    %v3073 = vsel %vm3020, 0.0, %v3048
    %v3074 = vsel %vm3020, 0.0, %v3050
    %v3075 = vsel %vm3021, 0.0, %v3052
    %v3076 = vsel %vm3021, 0.0, %v3054
    %v3077 = vsel %vm3022, 0.0, %v3051
    %v3078 = vsel %vm3022, 0.0, %v3053
    %v3079 = vpack.c.bf16 %v2995, %v2993
    %v3080 = vpack.c.bf16 %v2996, %v2994
    %v3081 = vpack.c.bf16 %v2905, %v2903
    %v3082 = vpack.c.bf16 %v2906, %v2904
    %v3083 = vpack.c.bf16 %v3069, %v3067
    %v3084 = vpack.c.bf16 %v3070, %v3068
    %v3085 = vpack.c.bf16 %v2999, %v2997
    %v3086 = vpack.c.bf16 %v3000, %v2998
    %v3087 = vpack.c.bf16 %v2909, %v2907
    %v3088 = vpack.c.bf16 %v2910, %v2908
    %v3089 = vpack.c.bf16 %v3073, %v3071
    %v3090 = vpack.c.bf16 %v3074, %v3072
    %v3091 = vpack.c.bf16 %v3003, %v3001
    %v3092 = vpack.c.bf16 %v3004, %v3002
    %v3093 = vpack.c.bf16 %v2913, %v2911
    %v3094 = vpack.c.bf16 %v2914, %v2912
    %v3095 = vpack.c.bf16 %v3077, %v3075
    %v3096 = vpack.c.bf16 %v3078, %v3076
    %v3097 = vld [vmem:[#allocation7] sm:$0xff]
    %v3098 = vld [vmem:[#allocation7 + $0x8] sm:$0xff]
    %v3099 = vld [vmem:[#allocation7 + $0x10] sm:$0xff]
    %v3100 = vld [vmem:[#allocation7 + $0x18] sm:$0xff]
    %v3101 = vld [vmem:[#allocation7 + $0x20] sm:$0xff]
    %v3102 = vld [vmem:[#allocation7 + $0x28] sm:$0xff]
    %v3103 = vld [vmem:[#allocation7 + $0x30] sm:$0xff]
    %v3104 = vld [vmem:[#allocation7 + $0x38] sm:$0xff]
    %v3105 = vld [vmem:[#allocation7 + $0x40] sm:$0xff]
    %v3106 = vld [vmem:[#allocation7 + $0x48] sm:$0xff]
    %v3107 = vld [vmem:[#allocation7 + $0x50] sm:$0xff]
    %v3108 = vld [vmem:[#allocation7 + $0x58] sm:$0xff]
    %v3109 = vld [vmem:[#allocation7 + $0x60] sm:$0xff]
    %v3110 = vld [vmem:[#allocation7 + $0x68] sm:$0xff]
    %v3111 = vld [vmem:[#allocation7 + $0x70] sm:$0xff]
    %v3112 = vld [vmem:[#allocation7 + $0x78] sm:$0xff]
    %v3113 = vld [vmem:[#allocation7 + $0x80] sm:$0xff]
    %v3114 = vld [vmem:[#allocation7 + $0x88] sm:$0xff]
    %v3115 = vld [vmem:[#allocation7 + $0x90] sm:$0xff]
    %v3116 = vld [vmem:[#allocation7 + $0x98] sm:$0xff]
    %v3117 = vld [vmem:[#allocation7 + $0xa0] sm:$0xff]
    %v3118 = vld [vmem:[#allocation7 + $0xa8] sm:$0xff]
    %v3119 = vld [vmem:[#allocation7 + $0xb0] sm:$0xff]
    %v3120 = vld [vmem:[#allocation7 + $0xb8] sm:$0xff]
    %v3121 = vld [vmem:[#allocation7 + $0xc0] sm:$0xff]
    %v3122 = vld [vmem:[#allocation7 + $0xc8] sm:$0xff]
    %v3123 = vld [vmem:[#allocation7 + $0xd0] sm:$0xff]
    %v3124 = vld [vmem:[#allocation7 + $0xd8] sm:$0xff]
    %v3125 = vld [vmem:[#allocation7 + $0xe0] sm:$0xff]
    %v3126 = vld [vmem:[#allocation7 + $0xe8] sm:$0xff]
    %v3127 = vld [vmem:[#allocation7 + $0xf0] sm:$0xff]
    %v3128 = vld [vmem:[#allocation7 + $0xf8] sm:$0xff]
    %v3129 = vld [vmem:[#allocation7 + $0x100] sm:$0xff]
    %v3130 = vld [vmem:[#allocation7 + $0x108] sm:$0xff]
    %v3131 = vld [vmem:[#allocation7 + $0x110] sm:$0xff]
    %v3132 = vld [vmem:[#allocation7 + $0x118] sm:$0xff]
    %v3133 = vld [vmem:[#allocation7 + $0x120] sm:$0xff]
    %v3134 = vld [vmem:[#allocation7 + $0x128] sm:$0xff]
    %v3135 = vld [vmem:[#allocation7 + $0x130] sm:$0xff]
    %v3136 = vld [vmem:[#allocation7 + $0x138] sm:$0xff]
    %v3137 = vld [vmem:[#allocation7 + $0x140] sm:$0xff]
    %v3138 = vld [vmem:[#allocation7 + $0x148] sm:$0xff]
    %v3139 = vld [vmem:[#allocation7 + $0x150] sm:$0xff]
    %v3140 = vld [vmem:[#allocation7 + $0x158] sm:$0xff]
    %v3141 = vld [vmem:[#allocation7 + $0x160] sm:$0xff]
    %v3142 = vld [vmem:[#allocation7 + $0x168] sm:$0xff]
    %v3143 = vld [vmem:[#allocation7 + $0x170] sm:$0xff]
    %v3144 = vld [vmem:[#allocation7 + $0x178] sm:$0xff]
    %v3145 = vld [vmem:[#allocation7 + $0x180] sm:$0xff]
    %v3146 = vld [vmem:[#allocation7 + $0x188] sm:$0xff]
    %v3147 = vld [vmem:[#allocation7 + $0x190] sm:$0xff]
    %v3148 = vld [vmem:[#allocation7 + $0x198] sm:$0xff]
    %v3149 = vld [vmem:[#allocation7 + $0x1a0] sm:$0xff]
    %v3150 = vld [vmem:[#allocation7 + $0x1a8] sm:$0xff]
    %v3151 = vld [vmem:[#allocation7 + $0x1b0] sm:$0xff]
    %v3152 = vld [vmem:[#allocation7 + $0x1b8] sm:$0xff]
    %v3153 = vld [vmem:[#allocation7 + $0x1c0] sm:$0xff]
    %v3154 = vld [vmem:[#allocation7 + $0x1c8] sm:$0xff]
    %v3155 = vld [vmem:[#allocation7 + $0x1d0] sm:$0xff]
    %v3156 = vld [vmem:[#allocation7 + $0x1d8] sm:$0xff]
    %v3157 = vld [vmem:[#allocation7 + $0x1e0] sm:$0xff]
    %v3158 = vld [vmem:[#allocation7 + $0x1e8] sm:$0xff]
    %v3159 = vld [vmem:[#allocation7 + $0x1f0] sm:$0xff]
    %v3160 = vld [vmem:[#allocation7 + $0x1f8] sm:$0xff]
    %v3161 = vld [vmem:[#allocation7 + $0x200] sm:$0xff]
    %v3162 = vld [vmem:[#allocation7 + $0x208] sm:$0xff]
    %v3163 = vld [vmem:[#allocation7 + $0x210] sm:$0xff]
    %v3164 = vld [vmem:[#allocation7 + $0x218] sm:$0xff]
    %v3165 = vld [vmem:[#allocation7 + $0x220] sm:$0xff]
    %v3166 = vld [vmem:[#allocation7 + $0x228] sm:$0xff]
    %v3167 = vld [vmem:[#allocation7 + $0x230] sm:$0xff]
    %v3168 = vld [vmem:[#allocation7 + $0x238] sm:$0xff]
    %v3169 = vld [vmem:[#allocation7 + $0x240] sm:$0xff]
    %v3170 = vld [vmem:[#allocation7 + $0x248] sm:$0xff]
    %v3171 = vld [vmem:[#allocation7 + $0x250] sm:$0xff]
    %v3172 = vld [vmem:[#allocation7 + $0x258] sm:$0xff]
    %v3173 = vld [vmem:[#allocation7 + $0x260] sm:$0xff]
    %v3174 = vld [vmem:[#allocation7 + $0x268] sm:$0xff]
    %v3175 = vld [vmem:[#allocation7 + $0x270] sm:$0xff]
    %v3176 = vld [vmem:[#allocation7 + $0x278] sm:$0xff]
    %v3177 = vld [vmem:[#allocation7 + $0x280] sm:$0xff]
    %v3178 = vld [vmem:[#allocation7 + $0x288] sm:$0xff]
    %v3179 = vld [vmem:[#allocation7 + $0x290] sm:$0xff]
    %v3180 = vld [vmem:[#allocation7 + $0x298] sm:$0xff]
    %v3181 = vld [vmem:[#allocation7 + $0x2a0] sm:$0xff]
    %v3182 = vld [vmem:[#allocation7 + $0x2a8] sm:$0xff]
    %v3183 = vld [vmem:[#allocation7 + $0x2b0] sm:$0xff]
    %v3184 = vld [vmem:[#allocation7 + $0x2b8] sm:$0xff]
    %v3185 = vld [vmem:[#allocation7 + $0x2c0] sm:$0xff]
    %v3186 = vld [vmem:[#allocation7 + $0x2c8] sm:$0xff]
    %v3187 = vld [vmem:[#allocation7 + $0x2d0] sm:$0xff]
    %v3188 = vld [vmem:[#allocation7 + $0x2d8] sm:$0xff]
    %v3189 = vld [vmem:[#allocation7 + $0x2e0] sm:$0xff]
    %v3190 = vld [vmem:[#allocation7 + $0x2e8] sm:$0xff]
    %v3191 = vld [vmem:[#allocation7 + $0x2f0] sm:$0xff]
    %v3192 = vld [vmem:[#allocation7 + $0x2f8] sm:$0xff]
    %v3193 = vld [vmem:[%s6] sm:$0x3]
    %v3195 = vlaneseq
    %v3196 = vshrl.u32 %v3195, 7
    %v3197 = vsub.s32 0, %v3196
    %v3198 = vrot.slane %v3193, %v3197
    %v3199 = vlaneseq
    %v3200 = vshrl.u32 %v3199, 7
    %v3201 = vsub.s32 1, %v3200
    %v3202 = vrot.slane %v3193, %v3201
    %v3301 = vunpack.c.l.b16 %v3097
    %v3302 = vunpack.c.h.b16 %v3097
    %v3303 = vunpack.c.l.b16 %v3098
    %v3304 = vunpack.c.h.b16 %v3098
    %v3305 = vunpack.c.l.b16 %v3099
    %v3306 = vunpack.c.h.b16 %v3099
    %v3307 = vunpack.c.l.b16 %v3100
    %v3308 = vunpack.c.h.b16 %v3100
    %v3309 = vunpack.c.l.b16 %v3101
    %v3310 = vunpack.c.h.b16 %v3101
    %v3311 = vunpack.c.l.b16 %v3102
    %v3312 = vunpack.c.h.b16 %v3102
    %v3313 = vunpack.c.l.b16 %v3103
    %v3314 = vunpack.c.h.b16 %v3103
    %v3315 = vunpack.c.l.b16 %v3104
    %v3316 = vunpack.c.h.b16 %v3104
    %v3317 = vunpack.c.l.b16 %v3105
    %v3318 = vunpack.c.h.b16 %v3105
    %v3319 = vunpack.c.l.b16 %v3106
    %v3320 = vunpack.c.h.b16 %v3106
    %v3321 = vunpack.c.l.b16 %v3107
    %v3322 = vunpack.c.h.b16 %v3107
    %v3323 = vunpack.c.l.b16 %v3108
    %v3324 = vunpack.c.h.b16 %v3108
    %v3325 = vunpack.c.l.b16 %v3109
    %v3326 = vunpack.c.h.b16 %v3109
    %v3327 = vunpack.c.l.b16 %v3110
    %v3328 = vunpack.c.h.b16 %v3110
    %v3329 = vunpack.c.l.b16 %v3111
    %v3330 = vunpack.c.h.b16 %v3111
    %v3331 = vunpack.c.l.b16 %v3112
    %v3332 = vunpack.c.h.b16 %v3112
    %v3333 = vunpack.c.l.b16 %v3113
    %v3334 = vunpack.c.h.b16 %v3113
    %v3335 = vunpack.c.l.b16 %v3114
    %v3336 = vunpack.c.h.b16 %v3114
    %v3337 = vunpack.c.l.b16 %v3115
    %v3338 = vunpack.c.h.b16 %v3115
    %v3339 = vunpack.c.l.b16 %v3116
    %v3340 = vunpack.c.h.b16 %v3116
    %v3341 = vunpack.c.l.b16 %v3117
    %v3342 = vunpack.c.h.b16 %v3117
    %v3343 = vunpack.c.l.b16 %v3118
    %v3344 = vunpack.c.h.b16 %v3118
    %v3345 = vunpack.c.l.b16 %v3119
    %v3346 = vunpack.c.h.b16 %v3119
    %v3347 = vunpack.c.l.b16 %v3120
    %v3348 = vunpack.c.h.b16 %v3120
    %v3349 = vunpack.c.l.b16 %v3121
    %v3350 = vunpack.c.h.b16 %v3121
    %v3351 = vunpack.c.l.b16 %v3122
    %v3352 = vunpack.c.h.b16 %v3122
    %v3353 = vunpack.c.l.b16 %v3123
    %v3354 = vunpack.c.h.b16 %v3123
    %v3355 = vunpack.c.l.b16 %v3124
    %v3356 = vunpack.c.h.b16 %v3124
    %v3357 = vunpack.c.l.b16 %v3125
    %v3358 = vunpack.c.h.b16 %v3125
    %v3359 = vunpack.c.l.b16 %v3126
    %v3360 = vunpack.c.h.b16 %v3126
    %v3361 = vunpack.c.l.b16 %v3127
    %v3362 = vunpack.c.h.b16 %v3127
    %v3363 = vunpack.c.l.b16 %v3128
    %v3364 = vunpack.c.h.b16 %v3128
    %v3365 = vunpack.c.l.b16 %v3129
    %v3366 = vunpack.c.h.b16 %v3129
    %v3367 = vunpack.c.l.b16 %v3130
    %v3368 = vunpack.c.h.b16 %v3130
    %v3369 = vunpack.c.l.b16 %v3131
    %v3370 = vunpack.c.h.b16 %v3131
    %v3371 = vunpack.c.l.b16 %v3132
    %v3372 = vunpack.c.h.b16 %v3132
    %v3373 = vunpack.c.l.b16 %v3133
    %v3374 = vunpack.c.h.b16 %v3133
    %v3375 = vunpack.c.l.b16 %v3134
    %v3376 = vunpack.c.h.b16 %v3134
    %v3377 = vunpack.c.l.b16 %v3135
    %v3378 = vunpack.c.h.b16 %v3135
    %v3379 = vunpack.c.l.b16 %v3136
    %v3380 = vunpack.c.h.b16 %v3136
    %v3381 = vunpack.c.l.b16 %v3137
    %v3382 = vunpack.c.h.b16 %v3137
    %v3383 = vunpack.c.l.b16 %v3138
    %v3384 = vunpack.c.h.b16 %v3138
    %v3385 = vunpack.c.l.b16 %v3139
    %v3386 = vunpack.c.h.b16 %v3139
    %v3387 = vunpack.c.l.b16 %v3140
    %v3388 = vunpack.c.h.b16 %v3140
    %v3389 = vunpack.c.l.b16 %v3141
    %v3390 = vunpack.c.h.b16 %v3141
    %v3391 = vunpack.c.l.b16 %v3142
    %v3392 = vunpack.c.h.b16 %v3142
    %v3393 = vunpack.c.l.b16 %v3143
    %v3394 = vunpack.c.h.b16 %v3143
    %v3395 = vunpack.c.l.b16 %v3144
    %v3396 = vunpack.c.h.b16 %v3144
    %v3397 = vunpack.c.l.b16 %v3145
    %v3398 = vunpack.c.h.b16 %v3145
    %v3399 = vunpack.c.l.b16 %v3146
    %v3400 = vunpack.c.h.b16 %v3146
    %v3401 = vunpack.c.l.b16 %v3147
    %v3402 = vunpack.c.h.b16 %v3147
    %v3403 = vunpack.c.l.b16 %v3148
    %v3404 = vunpack.c.h.b16 %v3148
    %v3405 = vunpack.c.l.b16 %v3149
    %v3406 = vunpack.c.h.b16 %v3149
    %v3407 = vunpack.c.l.b16 %v3150
    %v3408 = vunpack.c.h.b16 %v3150
    %v3409 = vunpack.c.l.b16 %v3151
    %v3410 = vunpack.c.h.b16 %v3151
    %v3411 = vunpack.c.l.b16 %v3152
    %v3412 = vunpack.c.h.b16 %v3152
    %v3413 = vunpack.c.l.b16 %v3153
    %v3414 = vunpack.c.h.b16 %v3153
    %v3415 = vunpack.c.l.b16 %v3154
    %v3416 = vunpack.c.h.b16 %v3154
    %v3417 = vunpack.c.l.b16 %v3155
    %v3418 = vunpack.c.h.b16 %v3155
    %v3419 = vunpack.c.l.b16 %v3156
    %v3420 = vunpack.c.h.b16 %v3156
    %v3421 = vunpack.c.l.b16 %v3157
    %v3422 = vunpack.c.h.b16 %v3157
    %v3423 = vunpack.c.l.b16 %v3158
    %v3424 = vunpack.c.h.b16 %v3158
    %v3425 = vunpack.c.l.b16 %v3159
    %v3426 = vunpack.c.h.b16 %v3159
    %v3427 = vunpack.c.l.b16 %v3160
    %v3428 = vunpack.c.h.b16 %v3160
    %v3429 = vunpack.c.l.b16 %v3161
    %v3430 = vunpack.c.h.b16 %v3161
    %v3431 = vunpack.c.l.b16 %v3162
    %v3432 = vunpack.c.h.b16 %v3162
    %v3433 = vunpack.c.l.b16 %v3163
    %v3434 = vunpack.c.h.b16 %v3163
    %v3435 = vunpack.c.l.b16 %v3164
    %v3436 = vunpack.c.h.b16 %v3164
    %v3437 = vunpack.c.l.b16 %v3165
    %v3438 = vunpack.c.h.b16 %v3165
    %v3439 = vunpack.c.l.b16 %v3166
    %v3440 = vunpack.c.h.b16 %v3166
    %v3441 = vunpack.c.l.b16 %v3167
    %v3442 = vunpack.c.h.b16 %v3167
    %v3443 = vunpack.c.l.b16 %v3168
    %v3444 = vunpack.c.h.b16 %v3168
    %v3445 = vunpack.c.l.b16 %v3169
    %v3446 = vunpack.c.h.b16 %v3169
    %v3447 = vunpack.c.l.b16 %v3170
    %v3448 = vunpack.c.h.b16 %v3170
    %v3449 = vunpack.c.l.b16 %v3171
    %v3450 = vunpack.c.h.b16 %v3171
    %v3451 = vunpack.c.l.b16 %v3172
    %v3452 = vunpack.c.h.b16 %v3172
    %v3453 = vunpack.c.l.b16 %v3173
    %v3454 = vunpack.c.h.b16 %v3173
    %v3455 = vunpack.c.l.b16 %v3174
    %v3456 = vunpack.c.h.b16 %v3174
    %v3457 = vunpack.c.l.b16 %v3175
    %v3458 = vunpack.c.h.b16 %v3175
    %v3459 = vunpack.c.l.b16 %v3176
    %v3460 = vunpack.c.h.b16 %v3176
    %v3461 = vunpack.c.l.b16 %v3177
    %v3462 = vunpack.c.h.b16 %v3177
    %v3463 = vunpack.c.l.b16 %v3178
    %v3464 = vunpack.c.h.b16 %v3178
    %v3465 = vunpack.c.l.b16 %v3179
    %v3466 = vunpack.c.h.b16 %v3179
    %v3467 = vunpack.c.l.b16 %v3180
    %v3468 = vunpack.c.h.b16 %v3180
    %v3469 = vunpack.c.l.b16 %v3181
    %v3470 = vunpack.c.h.b16 %v3181
    %v3471 = vunpack.c.l.b16 %v3182
    %v3472 = vunpack.c.h.b16 %v3182
    %v3473 = vunpack.c.l.b16 %v3183
    %v3474 = vunpack.c.h.b16 %v3183
    %v3475 = vunpack.c.l.b16 %v3184
    %v3476 = vunpack.c.h.b16 %v3184
    %v3477 = vunpack.c.l.b16 %v3185
    %v3478 = vunpack.c.h.b16 %v3185
    %v3479 = vunpack.c.l.b16 %v3186
    %v3480 = vunpack.c.h.b16 %v3186
    %v3481 = vunpack.c.l.b16 %v3187
    %v3482 = vunpack.c.h.b16 %v3187
    %v3483 = vunpack.c.l.b16 %v3188
    %v3484 = vunpack.c.h.b16 %v3188
    %v3485 = vunpack.c.l.b16 %v3189
    %v3486 = vunpack.c.h.b16 %v3189
    %v3487 = vunpack.c.l.b16 %v3190
    %v3488 = vunpack.c.h.b16 %v3190
    %v3489 = vunpack.c.l.b16 %v3191
    %v3490 = vunpack.c.h.b16 %v3191
    %v3491 = vunpack.c.l.b16 %v3192
    %v3492 = vunpack.c.h.b16 %v3192
    %v3493 = vpack.c.b16 %v3303, %v3301
    %v3494 = vpack.c.b16 %v3304, %v3302
    %v3495 = vpack.c.b16 %v3307, %v3305
    %v3496 = vpack.c.b16 %v3308, %v3306
    %v3497 = vpack.c.b16 %v3311, %v3309
    %v3498 = vpack.c.b16 %v3312, %v3310
    %v3499 = vpack.c.b16 %v3315, %v3313
    %v3500 = vpack.c.b16 %v3316, %v3314
    %v3501 = vpack.c.b16 %v3319, %v3317
    %v3502 = vpack.c.b16 %v3320, %v3318
    %v3503 = vpack.c.b16 %v3323, %v3321
    %v3504 = vpack.c.b16 %v3324, %v3322
    %v3505 = vpack.c.b16 %v3327, %v3325
    %v3506 = vpack.c.b16 %v3328, %v3326
    %v3507 = vpack.c.b16 %v3331, %v3329
    %v3508 = vpack.c.b16 %v3332, %v3330
    %v3509 = vpack.c.b16 %v3335, %v3333
    %v3510 = vpack.c.b16 %v3336, %v3334
    %v3511 = vpack.c.b16 %v3339, %v3337
    %v3512 = vpack.c.b16 %v3340, %v3338
    %v3513 = vpack.c.b16 %v3343, %v3341
    %v3514 = vpack.c.b16 %v3344, %v3342
    %v3515 = vpack.c.b16 %v3347, %v3345
    %v3516 = vpack.c.b16 %v3348, %v3346
    %v3517 = vpack.c.b16 %v3351, %v3349
    %v3518 = vpack.c.b16 %v3352, %v3350
    %v3519 = vpack.c.b16 %v3355, %v3353
    %v3520 = vpack.c.b16 %v3356, %v3354
    %v3521 = vpack.c.b16 %v3359, %v3357
    %v3522 = vpack.c.b16 %v3360, %v3358
    %v3523 = vpack.c.b16 %v3363, %v3361
    %v3524 = vpack.c.b16 %v3364, %v3362
    %v3525 = vpack.c.b16 %v3367, %v3365
    %v3526 = vpack.c.b16 %v3368, %v3366
    %v3527 = vpack.c.b16 %v3371, %v3369
    %v3528 = vpack.c.b16 %v3372, %v3370
    %v3529 = vpack.c.b16 %v3375, %v3373
    %v3530 = vpack.c.b16 %v3376, %v3374
    %v3531 = vpack.c.b16 %v3379, %v3377
    %v3532 = vpack.c.b16 %v3380, %v3378
    %v3533 = vpack.c.b16 %v3383, %v3381
    %v3534 = vpack.c.b16 %v3384, %v3382
    %v3535 = vpack.c.b16 %v3387, %v3385
    %v3536 = vpack.c.b16 %v3388, %v3386
    %v3537 = vpack.c.b16 %v3391, %v3389
    %v3538 = vpack.c.b16 %v3392, %v3390
    %v3539 = vpack.c.b16 %v3395, %v3393
    %v3540 = vpack.c.b16 %v3396, %v3394
    %v3541 = vpack.c.b16 %v3399, %v3397
    %v3542 = vpack.c.b16 %v3400, %v3398
    %v3543 = vpack.c.b16 %v3403, %v3401
    %v3544 = vpack.c.b16 %v3404, %v3402
    %v3545 = vpack.c.b16 %v3407, %v3405
    %v3546 = vpack.c.b16 %v3408, %v3406
    %v3547 = vpack.c.b16 %v3411, %v3409
    %v3548 = vpack.c.b16 %v3412, %v3410
    %v3549 = vpack.c.b16 %v3415, %v3413
    %v3550 = vpack.c.b16 %v3416, %v3414
    %v3551 = vpack.c.b16 %v3419, %v3417
    %v3552 = vpack.c.b16 %v3420, %v3418
    %v3553 = vpack.c.b16 %v3423, %v3421
    %v3554 = vpack.c.b16 %v3424, %v3422
    %v3555 = vpack.c.b16 %v3427, %v3425
    %v3556 = vpack.c.b16 %v3428, %v3426
    %v3557 = vpack.c.b16 %v3431, %v3429
    %v3558 = vpack.c.b16 %v3432, %v3430
    %v3559 = vpack.c.b16 %v3435, %v3433
    %v3560 = vpack.c.b16 %v3436, %v3434
    %v3561 = vpack.c.b16 %v3439, %v3437
    %v3562 = vpack.c.b16 %v3440, %v3438
    %v3563 = vpack.c.b16 %v3443, %v3441
    %v3564 = vpack.c.b16 %v3444, %v3442
    %v3565 = vpack.c.b16 %v3447, %v3445
    %v3566 = vpack.c.b16 %v3448, %v3446
    %v3567 = vpack.c.b16 %v3451, %v3449
    %v3568 = vpack.c.b16 %v3452, %v3450
    %v3569 = vpack.c.b16 %v3455, %v3453
    %v3570 = vpack.c.b16 %v3456, %v3454
    %v3571 = vpack.c.b16 %v3459, %v3457
    %v3572 = vpack.c.b16 %v3460, %v3458
    %v3573 = vpack.c.b16 %v3463, %v3461
    %v3574 = vpack.c.b16 %v3464, %v3462
    %v3575 = vpack.c.b16 %v3467, %v3465
    %v3576 = vpack.c.b16 %v3468, %v3466
    %v3577 = vpack.c.b16 %v3471, %v3469
    %v3578 = vpack.c.b16 %v3472, %v3470
    %v3579 = vpack.c.b16 %v3475, %v3473
    %v3580 = vpack.c.b16 %v3476, %v3474
    %v3581 = vpack.c.b16 %v3479, %v3477
    %v3582 = vpack.c.b16 %v3480, %v3478
    %v3583 = vpack.c.b16 %v3483, %v3481
    %v3584 = vpack.c.b16 %v3484, %v3482
    %v3585 = vpack.c.b16 %v3487, %v3485
    %v3586 = vpack.c.b16 %v3488, %v3486
    %v3587 = vpack.c.b16 %v3491, %v3489
    %v3588 = vpack.c.b16 %v3492, %v3490
    %3685 = vmatprep.subr.bf16.mxu0 %v3494
    %3686 = vmatpush1.bf16.msra.mxu0 %v3493
    %3687 = vmatprep.subr.bf16.mxu0 %v3496
    %3688 = vmatpush1.bf16.msra.mxu0 %v3495
    %3689 = vmatprep.subr.bf16.mxu0 %v3498
    %3690 = vmatpush1.bf16.msra.mxu0 %v3497
    %3691 = vmatprep.subr.bf16.mxu0 %v3500
    %3692 = vmatpush1.bf16.msra.mxu0 %v3499
    %3693 = vmatprep.subr.bf16.mxu0 %v3502
    %3694 = vmatpush1.bf16.msra.mxu0 %v3501
    %3695 = vmatprep.subr.bf16.mxu0 %v3504
    %3696 = vmatpush1.bf16.msra.mxu0 %v3503
    %3697 = vmatprep.subr.bf16.mxu0 %v3506
    %3698 = vmatpush1.bf16.msra.mxu0 %v3505
    %3699 = vmatprep.subr.bf16.mxu0 %v3508
    %3700 = vmatpush1.bf16.msra.mxu0 %v3507
    %3701 = vmatprep.subr.bf16.mxu0 %v3510
    %3702 = vmatpush1.bf16.msra.mxu0 %v3509
    %3703 = vmatprep.subr.bf16.mxu0 %v3512
    %3704 = vmatpush1.bf16.msra.mxu0 %v3511
    %3705 = vmatprep.subr.bf16.mxu0 %v3514
    %3706 = vmatpush1.bf16.msra.mxu0 %v3513
    %3707 = vmatprep.subr.bf16.mxu0 %v3516
    %3708 = vmatpush1.bf16.msra.mxu0 %v3515
    %3709 = vmatprep.subr.bf16.mxu0 %v3518
    %3710 = vmatpush1.bf16.msra.mxu0 %v3517
    %3711 = vmatprep.subr.bf16.mxu0 %v3520
    %3712 = vmatpush1.bf16.msra.mxu0 %v3519
    %3713 = vmatprep.subr.bf16.mxu0 %v3522
    %3714 = vmatpush1.bf16.msra.mxu0 %v3521
    %3715 = vmatprep.subr.bf16.mxu0 %v3524
    %3716 = vmatpush1.bf16.msra.mxu0 %v3523
    %3717 = vmatprep.mubr.bf16.mxu0 %v3080
    %3718 = vmatmul.mubr.bf16.gmra.mrb[0].mxu0 %v3079
    %v3719 = vpop.f32.mrb[0].mxu0
    %v3720 = vadd.f32 %v3198, %v3719
    %v3721 = vpop.f32.mrb[0].mxu0
    %v3722 = vadd.f32 %v3202, %v3721
    %v3723 = vpop.f32.mrb[0].mxu0
    %v3724 = vadd.f32 %v3198, %v3723
    %v3725 = vpop.f32.mrb[0].mxu0
    %v3726 = vadd.f32 %v3202, %v3725
    %3727 = vmatprep.mubr.bf16.mxu0 %v3086
    %3728 = vmatmul.mubr.bf16.gmra.mrb[0].mxu0 %v3085
    %v3729 = vpop.f32.mrb[0].mxu0
    %v3730 = vadd.f32 %v3198, %v3729
    %v3731 = vpop.f32.mrb[0].mxu0
    %v3732 = vadd.f32 %v3202, %v3731
    %v3733 = vpop.f32.mrb[0].mxu0
    %v3734 = vadd.f32 %v3198, %v3733
    %v3735 = vpop.f32.mrb[0].mxu0
    %v3736 = vadd.f32 %v3202, %v3735
    %3737 = vmatprep.mubr.bf16.mxu0 %v3092
    %3738 = vmatmul.mubr.bf16.gmra.mrb[0].mxu0 %v3091
    %v3739 = vpop.f32.mrb[0].mxu0
    %v3740 = vadd.f32 %v3198, %v3739
    %v3741 = vpop.f32.mrb[0].mxu0
    %v3742 = vadd.f32 %v3202, %v3741
    %v3743 = vpop.f32.mrb[0].mxu0
    %v3744 = vadd.f32 %v3198, %v3743
    %v3745 = vpop.f32.mrb[0].mxu0
    %v3746 = vadd.f32 %v3202, %v3745
    %3747 = vdwg.mxu0
    %3748 = vmatprep.subr.bf16.mxu0 %v3526
    %3749 = vmatpush1.bf16.msra.mxu0 %v3525
    %3750 = vmatprep.subr.bf16.mxu0 %v3528
    %3751 = vmatpush1.bf16.msra.mxu0 %v3527
    %3752 = vmatprep.subr.bf16.mxu0 %v3530
    %3753 = vmatpush1.bf16.msra.mxu0 %v3529
    %3754 = vmatprep.subr.bf16.mxu0 %v3532
    %3755 = vmatpush1.bf16.msra.mxu0 %v3531
    %3756 = vmatprep.subr.bf16.mxu0 %v3534
    %3757 = vmatpush1.bf16.msra.mxu0 %v3533
    %3758 = vmatprep.subr.bf16.mxu0 %v3536
    %3759 = vmatpush1.bf16.msra.mxu0 %v3535
    %3760 = vmatprep.subr.bf16.mxu0 %v3538
    %3761 = vmatpush1.bf16.msra.mxu0 %v3537
    %3762 = vmatprep.subr.bf16.mxu0 %v3540
    %3763 = vmatpush1.bf16.msra.mxu0 %v3539
    %3764 = vmatprep.subr.bf16.mxu0 %v3542
    %3765 = vmatpush1.bf16.msra.mxu0 %v3541
    %3766 = vmatprep.subr.bf16.mxu0 %v3544
    %3767 = vmatpush1.bf16.msra.mxu0 %v3543
    %3768 = vmatprep.subr.bf16.mxu0 %v3546
    %3769 = vmatpush1.bf16.msra.mxu0 %v3545
    %3770 = vmatprep.subr.bf16.mxu0 %v3548
    %3771 = vmatpush1.bf16.msra.mxu0 %v3547
    %3772 = vmatprep.subr.bf16.mxu0 %v3550
    %3773 = vmatpush1.bf16.msra.mxu0 %v3549
    %3774 = vmatprep.subr.bf16.mxu0 %v3552
    %3775 = vmatpush1.bf16.msra.mxu0 %v3551
    %3776 = vmatprep.subr.bf16.mxu0 %v3554
    %3777 = vmatpush1.bf16.msra.mxu0 %v3553
    %3778 = vmatprep.subr.bf16.mxu0 %v3556
    %3779 = vmatpush1.bf16.msra.mxu0 %v3555
    %3780 = vmatprep.mubr.bf16.mxu0 %v3082
    %3781 = vmatmul.mubr.bf16.gmra.mrb[0].mxu0 %v3081
    %v3782 = vpop.f32.mrb[0].mxu0
    %v3783 = vadd.f32 %v3720, %v3782
    %v3784 = vpop.f32.mrb[0].mxu0
    %v3785 = vadd.f32 %v3722, %v3784
    %v3786 = vpop.f32.mrb[0].mxu0
    %v3787 = vadd.f32 %v3724, %v3786
    %v3788 = vpop.f32.mrb[0].mxu0
    %v3789 = vadd.f32 %v3726, %v3788
    %3790 = vmatprep.mubr.bf16.mxu0 %v3088
    %3791 = vmatmul.mubr.bf16.gmra.mrb[0].mxu0 %v3087
    %v3792 = vpop.f32.mrb[0].mxu0
    %v3793 = vadd.f32 %v3730, %v3792
    %v3794 = vpop.f32.mrb[0].mxu0
    %v3795 = vadd.f32 %v3732, %v3794
    %v3796 = vpop.f32.mrb[0].mxu0
    %v3797 = vadd.f32 %v3734, %v3796
    %v3798 = vpop.f32.mrb[0].mxu0
    %v3799 = vadd.f32 %v3736, %v3798
    %3800 = vmatprep.mubr.bf16.mxu0 %v3094
    %3801 = vmatmul.mubr.bf16.gmra.mrb[0].mxu0 %v3093
    %v3802 = vpop.f32.mrb[0].mxu0
    %v3803 = vadd.f32 %v3740, %v3802
    %v3804 = vpop.f32.mrb[0].mxu0
    %v3805 = vadd.f32 %v3742, %v3804
    %v3806 = vpop.f32.mrb[0].mxu0
    %v3807 = vadd.f32 %v3744, %v3806
    %v3808 = vpop.f32.mrb[0].mxu0
    %v3809 = vadd.f32 %v3746, %v3808
    %3810 = vdwg.mxu0
    %3811 = vmatprep.subr.bf16.mxu0 %v3558
    %3812 = vmatpush1.bf16.msra.mxu0 %v3557
    %3813 = vmatprep.subr.bf16.mxu0 %v3560
    %3814 = vmatpush1.bf16.msra.mxu0 %v3559
    %3815 = vmatprep.subr.bf16.mxu0 %v3562
    %3816 = vmatpush1.bf16.msra.mxu0 %v3561
    %3817 = vmatprep.subr.bf16.mxu0 %v3564
    %3818 = vmatpush1.bf16.msra.mxu0 %v3563
    %3819 = vmatprep.subr.bf16.mxu0 %v3566
    %3820 = vmatpush1.bf16.msra.mxu0 %v3565
    %3821 = vmatprep.subr.bf16.mxu0 %v3568
    %3822 = vmatpush1.bf16.msra.mxu0 %v3567
    %3823 = vmatprep.subr.bf16.mxu0 %v3570
    %3824 = vmatpush1.bf16.msra.mxu0 %v3569
    %3825 = vmatprep.subr.bf16.mxu0 %v3572
    %3826 = vmatpush1.bf16.msra.mxu0 %v3571
    %3827 = vmatprep.subr.bf16.mxu0 %v3574
    %3828 = vmatpush1.bf16.msra.mxu0 %v3573
    %3829 = vmatprep.subr.bf16.mxu0 %v3576
    %3830 = vmatpush1.bf16.msra.mxu0 %v3575
    %3831 = vmatprep.subr.bf16.mxu0 %v3578
    %3832 = vmatpush1.bf16.msra.mxu0 %v3577
    %3833 = vmatprep.subr.bf16.mxu0 %v3580
    %3834 = vmatpush1.bf16.msra.mxu0 %v3579
    %3835 = vmatprep.subr.bf16.mxu0 %v3582
    %3836 = vmatpush1.bf16.msra.mxu0 %v3581
    %3837 = vmatprep.subr.bf16.mxu0 %v3584
    %3838 = vmatpush1.bf16.msra.mxu0 %v3583
    %3839 = vmatprep.subr.bf16.mxu0 %v3586
    %3840 = vmatpush1.bf16.msra.mxu0 %v3585
    %3841 = vmatprep.subr.bf16.mxu0 %v3588
    %3842 = vmatpush1.bf16.msra.mxu0 %v3587
    %3843 = vmatprep.mubr.bf16.mxu0 %v3084
    %3844 = vmatmul.mubr.bf16.gmra.mrb[0].mxu0 %v3083
    %v3845 = vpop.f32.mrb[0].mxu0
    %v3846 = vadd.f32 %v3783, %v3845
    %v3847 = vpop.f32.mrb[0].mxu0
    %v3848 = vadd.f32 %v3785, %v3847
    %v3849 = vpop.f32.mrb[0].mxu0
    %v3850 = vadd.f32 %v3787, %v3849
    %v3851 = vpop.f32.mrb[0].mxu0
    %v3852 = vadd.f32 %v3789, %v3851
    %3853 = vmatprep.mubr.bf16.mxu0 %v3090
    %3854 = vmatmul.mubr.bf16.gmra.mrb[0].mxu0 %v3089
    %v3855 = vpop.f32.mrb[0].mxu0
    %v3856 = vadd.f32 %v3793, %v3855
    %v3857 = vpop.f32.mrb[0].mxu0
    %v3858 = vadd.f32 %v3795, %v3857
    %v3859 = vpop.f32.mrb[0].mxu0
    %v3860 = vadd.f32 %v3797, %v3859
    %v3861 = vpop.f32.mrb[0].mxu0
    %v3862 = vadd.f32 %v3799, %v3861
    %3863 = vmatprep.mubr.bf16.mxu0 %v3096
    %3864 = vmatmul.mubr.bf16.gmra.mrb[0].mxu0 %v3095
    %v3865 = vpop.f32.mrb[0].mxu0
    %v3866 = vadd.f32 %v3803, %v3865
    %v3867 = vpop.f32.mrb[0].mxu0
    %v3868 = vadd.f32 %v3805, %v3867
    %v3869 = vpop.f32.mrb[0].mxu0
    %v3870 = vadd.f32 %v3807, %v3869
    %v3871 = vpop.f32.mrb[0].mxu0
    %v3872 = vadd.f32 %v3809, %v3871
    %3873 = vdwg.mxu0
    %v3874 = vmax.f32 %v3846, 0.0
    %v3875 = vmax.f32 %v3848, 0.0
    %v3876 = vmax.f32 %v3850, 0.0
    %v3877 = vmax.f32 %v3852, 0.0
    %v3878 = vmax.f32 %v3856, 0.0
    %v3879 = vmax.f32 %v3858, 0.0
    %v3880 = vmax.f32 %v3860, 0.0
    %v3881 = vmax.f32 %v3862, 0.0
    %v3882 = vmax.f32 %v3866, 0.0
    %v3883 = vmax.f32 %v3868, 0.0
    %v3884 = vmax.f32 %v3870, 0.0
    %v3885 = vmax.f32 %v3872, 0.0
    %v3886 = vrot.slane %v3874, 2
    %v3887 = vsel %vm2915, %v3886, %v3884
    %v3888 = vrot.slane %v3875, 2
    %v3889 = vsel %vm2915, %v3888, %v3885
    %v3890 = vrot.slane %v3876, 2
    %v3891 = vrot.slane %v3877, 2
    %v3892 = vrot.slane %v3878, 2
    %v3893 = vrot.slane %v3879, 2
    %v3894 = vrot.slane %v3880, 2
    %v3895 = vrot.slane %v3881, 2
    %v3896 = vrot.slane %v3882, 2
    %v3897 = vrot.slane %v3883, 2
    %v3898 = vrot.slane %v3887, 2
    %v3899 = vrot.slane %v3889, 2
    %v3900 = vsel %vm2915, %v3890, %v3886
    %v3901 = vsel %vm2915, %v3891, %v3888
    %v3902 = vsel %vm2915, %v3892, %v3890
    %v3903 = vsel %vm2915, %v3893, %v3891
    %v3904 = vsel %vm2915, %v3894, %v3892
    %v3905 = vsel %vm2915, %v3895, %v3893
    %v3906 = vsel %vm2915, %v3896, %v3894
    %v3907 = vsel %vm2915, %v3897, %v3895
    %v3908 = vsel %vm2915, %v3898, %v3896
    %v3909 = vsel %vm2915, %v3899, %v3897
    %v3924 = vrot.slane %v3887, 5
    %v3925 = vrot.slane %v3900, 5
    %v3926 = vsel %vm2954, %v3924, %v3925
    %v3927 = vrot.slane %v3889, 5
    %v3928 = vrot.slane %v3901, 5
    %v3929 = vsel %vm2954, %v3927, %v3928
    %v3930 = vrot.slane %v3902, 5
    %v3931 = vsel %vm2954, %v3925, %v3930
    %v3932 = vrot.slane %v3903, 5
    %v3933 = vsel %vm2954, %v3928, %v3932
    %v3934 = vrot.slane %v3904, 5
    %v3935 = vsel %vm2954, %v3930, %v3934
    %v3936 = vrot.slane %v3905, 5
    %v3937 = vsel %vm2954, %v3932, %v3936
    %v3938 = vrot.slane %v3906, 5
    %v3939 = vsel %vm2954, %v3934, %v3938
    %v3940 = vrot.slane %v3907, 5
    %v3941 = vsel %vm2954, %v3936, %v3940
    %v3942 = vrot.slane %v3908, 5
    %v3943 = vsel %vm2954, %v3938, %v3942
    %v3944 = vrot.slane %v3909, 5
    %v3945 = vsel %vm2954, %v3940, %v3944
    %v3946 = vrot.slane %v3898, 5
    %v3947 = vsel %vm2954, %v3942, %v3946
    %v3948 = vrot.slane %v3899, 5
    %v3949 = vsel %vm2954, %v3944, %v3948
    %v3962 = vsel %vm252, 0.0, %v3926
    %v3963 = vsel %vm252, 0.0, %v3929
    %v3964 = vsel %vm253, 0.0, %v3931
    %v3965 = vsel %vm253, 0.0, %v3933
    %v3966 = vsel %vm254, 0.0, %v3935
    %v3967 = vsel %vm254, 0.0, %v3937
    %v3968 = vsel %vm255, 0.0, %v3939
    %v3969 = vsel %vm255, 0.0, %v3941
    %v3970 = vsel %vm256, 0.0, %v3943
    %v3971 = vsel %vm256, 0.0, %v3945
    %v3972 = vsel %vm257, 0.0, %v3947
    %v3973 = vsel %vm257, 0.0, %v3949
    %v3984 = vrot.slane %v3874, 1
    %v3985 = vrot.slane %v3876, 1
    %v3986 = vsel %vm441, %v3984, %v3985
    %v3987 = vrot.slane %v3875, 1
    %v3988 = vrot.slane %v3877, 1
    %v3989 = vsel %vm441, %v3987, %v3988
    %v3990 = vrot.slane %v3878, 1
    %v3991 = vsel %vm441, %v3985, %v3990
    %v3992 = vrot.slane %v3879, 1
    %v3993 = vsel %vm441, %v3988, %v3992
    %v3994 = vrot.slane %v3880, 1
    %v3995 = vsel %vm441, %v3990, %v3994
    %v3996 = vrot.slane %v3881, 1
    %v3997 = vsel %vm441, %v3992, %v3996
    %v3998 = vrot.slane %v3882, 1
    %v3999 = vsel %vm441, %v3994, %v3998
    %v4000 = vrot.slane %v3883, 1
    %v4001 = vsel %vm441, %v3996, %v4000
    %v4002 = vrot.slane %v3887, 1
    %v4003 = vsel %vm441, %v3998, %v4002
    %v4004 = vrot.slane %v3889, 1
    %v4005 = vsel %vm441, %v4000, %v4004
    %v4018 = vsel %vm3017, 0.0, %v3986
    %v4019 = vsel %vm3017, 0.0, %v3989
    %v4020 = vsel %vm3018, 0.0, %v3991
    %v4021 = vsel %vm3018, 0.0, %v3993
    %v4022 = vsel %vm3019, 0.0, %v3995
    %v4023 = vsel %vm3019, 0.0, %v3997
    %v4024 = vsel %vm3020, 0.0, %v3999
    %v4025 = vsel %vm3020, 0.0, %v4001
    %v4026 = vsel %vm3021, 0.0, %v4003
    %v4027 = vsel %vm3021, 0.0, %v4005
    %v4028 = vsel %vm3022, 0.0, %v4002
    %v4029 = vsel %vm3022, 0.0, %v4004
    %v4030 = vpack.c.bf16 %v3964, %v3962
    %v4031 = vpack.c.bf16 %v3965, %v3963
    %v4032 = vpack.c.bf16 %v3876, %v3874
    %v4033 = vpack.c.bf16 %v3877, %v3875
    %v4034 = vpack.c.bf16 %v4020, %v4018
    %v4035 = vpack.c.bf16 %v4021, %v4019
    %v4036 = vpack.c.bf16 %v3968, %v3966
    %v4037 = vpack.c.bf16 %v3969, %v3967
    %v4038 = vpack.c.bf16 %v3880, %v3878
    %v4039 = vpack.c.bf16 %v3881, %v3879
    %v4040 = vpack.c.bf16 %v4024, %v4022
    %v4041 = vpack.c.bf16 %v4025, %v4023
    %v4042 = vpack.c.bf16 %v3972, %v3970
    %v4043 = vpack.c.bf16 %v3973, %v3971
    %v4044 = vpack.c.bf16 %v3884, %v3882
    %v4045 = vpack.c.bf16 %v3885, %v3883
    %v4046 = vpack.c.bf16 %v4028, %v4026
    %v4047 = vpack.c.bf16 %v4029, %v4027
    %v4048 = vld [vmem:[#allocation8] sm:$0xff]
    %v4049 = vld [vmem:[#allocation8 + $0x8] sm:$0xff]
    %v4050 = vld [vmem:[#allocation8 + $0x10] sm:$0xff]
    %v4051 = vld [vmem:[#allocation8 + $0x18] sm:$0xff]
    %v4052 = vld [vmem:[#allocation8 + $0x20] sm:$0xff]
    %v4053 = vld [vmem:[#allocation8 + $0x28] sm:$0xff]
    %v4054 = vld [vmem:[#allocation8 + $0x30] sm:$0xff]
    %v4055 = vld [vmem:[#allocation8 + $0x38] sm:$0xff]
    %v4056 = vld [vmem:[#allocation8 + $0x40] sm:$0xff]
    %v4057 = vld [vmem:[#allocation8 + $0x48] sm:$0xff]
    %v4058 = vld [vmem:[#allocation8 + $0x50] sm:$0xff]
    %v4059 = vld [vmem:[#allocation8 + $0x58] sm:$0xff]
    %v4060 = vld [vmem:[#allocation8 + $0x60] sm:$0xff]
    %v4061 = vld [vmem:[#allocation8 + $0x68] sm:$0xff]
    %v4062 = vld [vmem:[#allocation8 + $0x70] sm:$0xff]
    %v4063 = vld [vmem:[#allocation8 + $0x78] sm:$0xff]
    %v4064 = vld [vmem:[#allocation8 + $0x80] sm:$0xff]
    %v4065 = vld [vmem:[#allocation8 + $0x88] sm:$0xff]
    %v4066 = vld [vmem:[#allocation8 + $0x90] sm:$0xff]
    %v4067 = vld [vmem:[#allocation8 + $0x98] sm:$0xff]
    %v4068 = vld [vmem:[#allocation8 + $0xa0] sm:$0xff]
    %v4069 = vld [vmem:[#allocation8 + $0xa8] sm:$0xff]
    %v4070 = vld [vmem:[#allocation8 + $0xb0] sm:$0xff]
    %v4071 = vld [vmem:[#allocation8 + $0xb8] sm:$0xff]
    %v4072 = vld [vmem:[#allocation8 + $0xc0] sm:$0xff]
    %v4073 = vld [vmem:[#allocation8 + $0xc8] sm:$0xff]
    %v4074 = vld [vmem:[#allocation8 + $0xd0] sm:$0xff]
    %v4075 = vld [vmem:[#allocation8 + $0xd8] sm:$0xff]
    %v4076 = vld [vmem:[#allocation8 + $0xe0] sm:$0xff]
    %v4077 = vld [vmem:[#allocation8 + $0xe8] sm:$0xff]
    %v4078 = vld [vmem:[#allocation8 + $0xf0] sm:$0xff]
    %v4079 = vld [vmem:[#allocation8 + $0xf8] sm:$0xff]
    %v4080 = vld [vmem:[#allocation8 + $0x100] sm:$0xff]
    %v4081 = vld [vmem:[#allocation8 + $0x108] sm:$0xff]
    %v4082 = vld [vmem:[#allocation8 + $0x110] sm:$0xff]
    %v4083 = vld [vmem:[#allocation8 + $0x118] sm:$0xff]
    %v4084 = vld [vmem:[#allocation8 + $0x120] sm:$0xff]
    %v4085 = vld [vmem:[#allocation8 + $0x128] sm:$0xff]
    %v4086 = vld [vmem:[#allocation8 + $0x130] sm:$0xff]
    %v4087 = vld [vmem:[#allocation8 + $0x138] sm:$0xff]
    %v4088 = vld [vmem:[#allocation8 + $0x140] sm:$0xff]
    %v4089 = vld [vmem:[#allocation8 + $0x148] sm:$0xff]
    %v4090 = vld [vmem:[#allocation8 + $0x150] sm:$0xff]
    %v4091 = vld [vmem:[#allocation8 + $0x158] sm:$0xff]
    %v4092 = vld [vmem:[#allocation8 + $0x160] sm:$0xff]
    %v4093 = vld [vmem:[#allocation8 + $0x168] sm:$0xff]
    %v4094 = vld [vmem:[#allocation8 + $0x170] sm:$0xff]
    %v4095 = vld [vmem:[#allocation8 + $0x178] sm:$0xff]
    %v4096 = vld [vmem:[#allocation8 + $0x180] sm:$0xff]
    %v4097 = vld [vmem:[#allocation8 + $0x188] sm:$0xff]
    %v4098 = vld [vmem:[#allocation8 + $0x190] sm:$0xff]
    %v4099 = vld [vmem:[#allocation8 + $0x198] sm:$0xff]
    %v4100 = vld [vmem:[#allocation8 + $0x1a0] sm:$0xff]
    %v4101 = vld [vmem:[#allocation8 + $0x1a8] sm:$0xff]
    %v4102 = vld [vmem:[#allocation8 + $0x1b0] sm:$0xff]
    %v4103 = vld [vmem:[#allocation8 + $0x1b8] sm:$0xff]
    %v4104 = vld [vmem:[#allocation8 + $0x1c0] sm:$0xff]
    %v4105 = vld [vmem:[#allocation8 + $0x1c8] sm:$0xff]
    %v4106 = vld [vmem:[#allocation8 + $0x1d0] sm:$0xff]
    %v4107 = vld [vmem:[#allocation8 + $0x1d8] sm:$0xff]
    %v4108 = vld [vmem:[#allocation8 + $0x1e0] sm:$0xff]
    %v4109 = vld [vmem:[#allocation8 + $0x1e8] sm:$0xff]
    %v4110 = vld [vmem:[#allocation8 + $0x1f0] sm:$0xff]
    %v4111 = vld [vmem:[#allocation8 + $0x1f8] sm:$0xff]
    %v4112 = vld [vmem:[#allocation8 + $0x200] sm:$0xff]
    %v4113 = vld [vmem:[#allocation8 + $0x208] sm:$0xff]
    %v4114 = vld [vmem:[#allocation8 + $0x210] sm:$0xff]
    %v4115 = vld [vmem:[#allocation8 + $0x218] sm:$0xff]
    %v4116 = vld [vmem:[#allocation8 + $0x220] sm:$0xff]
    %v4117 = vld [vmem:[#allocation8 + $0x228] sm:$0xff]
    %v4118 = vld [vmem:[#allocation8 + $0x230] sm:$0xff]
    %v4119 = vld [vmem:[#allocation8 + $0x238] sm:$0xff]
    %v4120 = vld [vmem:[#allocation8 + $0x240] sm:$0xff]
    %v4121 = vld [vmem:[#allocation8 + $0x248] sm:$0xff]
    %v4122 = vld [vmem:[#allocation8 + $0x250] sm:$0xff]
    %v4123 = vld [vmem:[#allocation8 + $0x258] sm:$0xff]
    %v4124 = vld [vmem:[#allocation8 + $0x260] sm:$0xff]
    %v4125 = vld [vmem:[#allocation8 + $0x268] sm:$0xff]
    %v4126 = vld [vmem:[#allocation8 + $0x270] sm:$0xff]
    %v4127 = vld [vmem:[#allocation8 + $0x278] sm:$0xff]
    %v4128 = vld [vmem:[#allocation8 + $0x280] sm:$0xff]
    %v4129 = vld [vmem:[#allocation8 + $0x288] sm:$0xff]
    %v4130 = vld [vmem:[#allocation8 + $0x290] sm:$0xff]
    %v4131 = vld [vmem:[#allocation8 + $0x298] sm:$0xff]
    %v4132 = vld [vmem:[#allocation8 + $0x2a0] sm:$0xff]
    %v4133 = vld [vmem:[#allocation8 + $0x2a8] sm:$0xff]
    %v4134 = vld [vmem:[#allocation8 + $0x2b0] sm:$0xff]
    %v4135 = vld [vmem:[#allocation8 + $0x2b8] sm:$0xff]
    %v4136 = vld [vmem:[#allocation8 + $0x2c0] sm:$0xff]
    %v4137 = vld [vmem:[#allocation8 + $0x2c8] sm:$0xff]
    %v4138 = vld [vmem:[#allocation8 + $0x2d0] sm:$0xff]
    %v4139 = vld [vmem:[#allocation8 + $0x2d8] sm:$0xff]
    %v4140 = vld [vmem:[#allocation8 + $0x2e0] sm:$0xff]
    %v4141 = vld [vmem:[#allocation8 + $0x2e8] sm:$0xff]
    %v4142 = vld [vmem:[#allocation8 + $0x2f0] sm:$0xff]
    %v4143 = vld [vmem:[#allocation8 + $0x2f8] sm:$0xff]
    %v4144 = vld [vmem:[%s8] sm:$0x3]
    %v4146 = vlaneseq
    %v4147 = vshrl.u32 %v4146, 7
    %v4148 = vsub.s32 0, %v4147
    %v4149 = vrot.slane %v4144, %v4148
    %v4150 = vlaneseq
    %v4151 = vshrl.u32 %v4150, 7
    %v4152 = vsub.s32 1, %v4151
    %v4153 = vrot.slane %v4144, %v4152
    %v4252 = vunpack.c.l.b16 %v4048
    %v4253 = vunpack.c.h.b16 %v4048
    %v4254 = vunpack.c.l.b16 %v4049
    %v4255 = vunpack.c.h.b16 %v4049
    %v4256 = vunpack.c.l.b16 %v4050
    %v4257 = vunpack.c.h.b16 %v4050
    %v4258 = vunpack.c.l.b16 %v4051
    %v4259 = vunpack.c.h.b16 %v4051
    %v4260 = vunpack.c.l.b16 %v4052
    %v4261 = vunpack.c.h.b16 %v4052
    %v4262 = vunpack.c.l.b16 %v4053
    %v4263 = vunpack.c.h.b16 %v4053
    %v4264 = vunpack.c.l.b16 %v4054
    %v4265 = vunpack.c.h.b16 %v4054
    %v4266 = vunpack.c.l.b16 %v4055
    %v4267 = vunpack.c.h.b16 %v4055
    %v4268 = vunpack.c.l.b16 %v4056
    %v4269 = vunpack.c.h.b16 %v4056
    %v4270 = vunpack.c.l.b16 %v4057
    %v4271 = vunpack.c.h.b16 %v4057
    %v4272 = vunpack.c.l.b16 %v4058
    %v4273 = vunpack.c.h.b16 %v4058
    %v4274 = vunpack.c.l.b16 %v4059
    %v4275 = vunpack.c.h.b16 %v4059
    %v4276 = vunpack.c.l.b16 %v4060
    %v4277 = vunpack.c.h.b16 %v4060
    %v4278 = vunpack.c.l.b16 %v4061
    %v4279 = vunpack.c.h.b16 %v4061
    %v4280 = vunpack.c.l.b16 %v4062
    %v4281 = vunpack.c.h.b16 %v4062
    %v4282 = vunpack.c.l.b16 %v4063
    %v4283 = vunpack.c.h.b16 %v4063
    %v4284 = vunpack.c.l.b16 %v4064
    %v4285 = vunpack.c.h.b16 %v4064
    %v4286 = vunpack.c.l.b16 %v4065
    %v4287 = vunpack.c.h.b16 %v4065
    %v4288 = vunpack.c.l.b16 %v4066
    %v4289 = vunpack.c.h.b16 %v4066
    %v4290 = vunpack.c.l.b16 %v4067
    %v4291 = vunpack.c.h.b16 %v4067
    %v4292 = vunpack.c.l.b16 %v4068
    %v4293 = vunpack.c.h.b16 %v4068
    %v4294 = vunpack.c.l.b16 %v4069
    %v4295 = vunpack.c.h.b16 %v4069
    %v4296 = vunpack.c.l.b16 %v4070
    %v4297 = vunpack.c.h.b16 %v4070
    %v4298 = vunpack.c.l.b16 %v4071
    %v4299 = vunpack.c.h.b16 %v4071
    %v4300 = vunpack.c.l.b16 %v4072
    %v4301 = vunpack.c.h.b16 %v4072
    %v4302 = vunpack.c.l.b16 %v4073
    %v4303 = vunpack.c.h.b16 %v4073
    %v4304 = vunpack.c.l.b16 %v4074
    %v4305 = vunpack.c.h.b16 %v4074
    %v4306 = vunpack.c.l.b16 %v4075
    %v4307 = vunpack.c.h.b16 %v4075
    %v4308 = vunpack.c.l.b16 %v4076
    %v4309 = vunpack.c.h.b16 %v4076
    %v4310 = vunpack.c.l.b16 %v4077
    %v4311 = vunpack.c.h.b16 %v4077
    %v4312 = vunpack.c.l.b16 %v4078
    %v4313 = vunpack.c.h.b16 %v4078
    %v4314 = vunpack.c.l.b16 %v4079
    %v4315 = vunpack.c.h.b16 %v4079
    %v4316 = vunpack.c.l.b16 %v4080
    %v4317 = vunpack.c.h.b16 %v4080
    %v4318 = vunpack.c.l.b16 %v4081
    %v4319 = vunpack.c.h.b16 %v4081
    %v4320 = vunpack.c.l.b16 %v4082
    %v4321 = vunpack.c.h.b16 %v4082
    %v4322 = vunpack.c.l.b16 %v4083
    %v4323 = vunpack.c.h.b16 %v4083
    %v4324 = vunpack.c.l.b16 %v4084
    %v4325 = vunpack.c.h.b16 %v4084
    %v4326 = vunpack.c.l.b16 %v4085
    %v4327 = vunpack.c.h.b16 %v4085
    %v4328 = vunpack.c.l.b16 %v4086
    %v4329 = vunpack.c.h.b16 %v4086
    %v4330 = vunpack.c.l.b16 %v4087
    %v4331 = vunpack.c.h.b16 %v4087
    %v4332 = vunpack.c.l.b16 %v4088
    %v4333 = vunpack.c.h.b16 %v4088
    %v4334 = vunpack.c.l.b16 %v4089
    %v4335 = vunpack.c.h.b16 %v4089
    %v4336 = vunpack.c.l.b16 %v4090
    %v4337 = vunpack.c.h.b16 %v4090
    %v4338 = vunpack.c.l.b16 %v4091
    %v4339 = vunpack.c.h.b16 %v4091
    %v4340 = vunpack.c.l.b16 %v4092
    %v4341 = vunpack.c.h.b16 %v4092
    %v4342 = vunpack.c.l.b16 %v4093
    %v4343 = vunpack.c.h.b16 %v4093
    %v4344 = vunpack.c.l.b16 %v4094
    %v4345 = vunpack.c.h.b16 %v4094
    %v4346 = vunpack.c.l.b16 %v4095
    %v4347 = vunpack.c.h.b16 %v4095
    %v4348 = vunpack.c.l.b16 %v4096
    %v4349 = vunpack.c.h.b16 %v4096
    %v4350 = vunpack.c.l.b16 %v4097
    %v4351 = vunpack.c.h.b16 %v4097
    %v4352 = vunpack.c.l.b16 %v4098
    %v4353 = vunpack.c.h.b16 %v4098
    %v4354 = vunpack.c.l.b16 %v4099
    %v4355 = vunpack.c.h.b16 %v4099
    %v4356 = vunpack.c.l.b16 %v4100
    %v4357 = vunpack.c.h.b16 %v4100
    %v4358 = vunpack.c.l.b16 %v4101
    %v4359 = vunpack.c.h.b16 %v4101
    %v4360 = vunpack.c.l.b16 %v4102
    %v4361 = vunpack.c.h.b16 %v4102
    %v4362 = vunpack.c.l.b16 %v4103
    %v4363 = vunpack.c.h.b16 %v4103
    %v4364 = vunpack.c.l.b16 %v4104
    %v4365 = vunpack.c.h.b16 %v4104
    %v4366 = vunpack.c.l.b16 %v4105
    %v4367 = vunpack.c.h.b16 %v4105
    %v4368 = vunpack.c.l.b16 %v4106
    %v4369 = vunpack.c.h.b16 %v4106
    %v4370 = vunpack.c.l.b16 %v4107
    %v4371 = vunpack.c.h.b16 %v4107
    %v4372 = vunpack.c.l.b16 %v4108
    %v4373 = vunpack.c.h.b16 %v4108
    %v4374 = vunpack.c.l.b16 %v4109
    %v4375 = vunpack.c.h.b16 %v4109
    %v4376 = vunpack.c.l.b16 %v4110
    %v4377 = vunpack.c.h.b16 %v4110
    %v4378 = vunpack.c.l.b16 %v4111
    %v4379 = vunpack.c.h.b16 %v4111
    %v4380 = vunpack.c.l.b16 %v4112
    %v4381 = vunpack.c.h.b16 %v4112
    %v4382 = vunpack.c.l.b16 %v4113
    %v4383 = vunpack.c.h.b16 %v4113
    %v4384 = vunpack.c.l.b16 %v4114
    %v4385 = vunpack.c.h.b16 %v4114
    %v4386 = vunpack.c.l.b16 %v4115
    %v4387 = vunpack.c.h.b16 %v4115
    %v4388 = vunpack.c.l.b16 %v4116
    %v4389 = vunpack.c.h.b16 %v4116
    %v4390 = vunpack.c.l.b16 %v4117
    %v4391 = vunpack.c.h.b16 %v4117
    %v4392 = vunpack.c.l.b16 %v4118
    %v4393 = vunpack.c.h.b16 %v4118
    %v4394 = vunpack.c.l.b16 %v4119
    %v4395 = vunpack.c.h.b16 %v4119
    %v4396 = vunpack.c.l.b16 %v4120
    %v4397 = vunpack.c.h.b16 %v4120
    %v4398 = vunpack.c.l.b16 %v4121
    %v4399 = vunpack.c.h.b16 %v4121
    %v4400 = vunpack.c.l.b16 %v4122
    %v4401 = vunpack.c.h.b16 %v4122
    %v4402 = vunpack.c.l.b16 %v4123
    %v4403 = vunpack.c.h.b16 %v4123
    %v4404 = vunpack.c.l.b16 %v4124
    %v4405 = vunpack.c.h.b16 %v4124
    %v4406 = vunpack.c.l.b16 %v4125
    %v4407 = vunpack.c.h.b16 %v4125
    %v4408 = vunpack.c.l.b16 %v4126
    %v4409 = vunpack.c.h.b16 %v4126
    %v4410 = vunpack.c.l.b16 %v4127
    %v4411 = vunpack.c.h.b16 %v4127
    %v4412 = vunpack.c.l.b16 %v4128
    %v4413 = vunpack.c.h.b16 %v4128
    %v4414 = vunpack.c.l.b16 %v4129
    %v4415 = vunpack.c.h.b16 %v4129
    %v4416 = vunpack.c.l.b16 %v4130
    %v4417 = vunpack.c.h.b16 %v4130
    %v4418 = vunpack.c.l.b16 %v4131
    %v4419 = vunpack.c.h.b16 %v4131
    %v4420 = vunpack.c.l.b16 %v4132
    %v4421 = vunpack.c.h.b16 %v4132
    %v4422 = vunpack.c.l.b16 %v4133
    %v4423 = vunpack.c.h.b16 %v4133
    %v4424 = vunpack.c.l.b16 %v4134
    %v4425 = vunpack.c.h.b16 %v4134
    %v4426 = vunpack.c.l.b16 %v4135
    %v4427 = vunpack.c.h.b16 %v4135
    %v4428 = vunpack.c.l.b16 %v4136
    %v4429 = vunpack.c.h.b16 %v4136
    %v4430 = vunpack.c.l.b16 %v4137
    %v4431 = vunpack.c.h.b16 %v4137
    %v4432 = vunpack.c.l.b16 %v4138
    %v4433 = vunpack.c.h.b16 %v4138
    %v4434 = vunpack.c.l.b16 %v4139
    %v4435 = vunpack.c.h.b16 %v4139
    %v4436 = vunpack.c.l.b16 %v4140
    %v4437 = vunpack.c.h.b16 %v4140
    %v4438 = vunpack.c.l.b16 %v4141
    %v4439 = vunpack.c.h.b16 %v4141
    %v4440 = vunpack.c.l.b16 %v4142
    %v4441 = vunpack.c.h.b16 %v4142
    %v4442 = vunpack.c.l.b16 %v4143
    %v4443 = vunpack.c.h.b16 %v4143
    %v4444 = vpack.c.b16 %v4254, %v4252
    %v4445 = vpack.c.b16 %v4255, %v4253
    %v4446 = vpack.c.b16 %v4258, %v4256
    %v4447 = vpack.c.b16 %v4259, %v4257
    %v4448 = vpack.c.b16 %v4262, %v4260
    %v4449 = vpack.c.b16 %v4263, %v4261
    %v4450 = vpack.c.b16 %v4266, %v4264
    %v4451 = vpack.c.b16 %v4267, %v4265
    %v4452 = vpack.c.b16 %v4270, %v4268
    %v4453 = vpack.c.b16 %v4271, %v4269
    %v4454 = vpack.c.b16 %v4274, %v4272
    %v4455 = vpack.c.b16 %v4275, %v4273
    %v4456 = vpack.c.b16 %v4278, %v4276
    %v4457 = vpack.c.b16 %v4279, %v4277
    %v4458 = vpack.c.b16 %v4282, %v4280
    %v4459 = vpack.c.b16 %v4283, %v4281
    %v4460 = vpack.c.b16 %v4286, %v4284
    %v4461 = vpack.c.b16 %v4287, %v4285
    %v4462 = vpack.c.b16 %v4290, %v4288
    %v4463 = vpack.c.b16 %v4291, %v4289
    %v4464 = vpack.c.b16 %v4294, %v4292
    %v4465 = vpack.c.b16 %v4295, %v4293
    %v4466 = vpack.c.b16 %v4298, %v4296
    %v4467 = vpack.c.b16 %v4299, %v4297
    %v4468 = vpack.c.b16 %v4302, %v4300
    %v4469 = vpack.c.b16 %v4303, %v4301
    %v4470 = vpack.c.b16 %v4306, %v4304
    %v4471 = vpack.c.b16 %v4307, %v4305
    %v4472 = vpack.c.b16 %v4310, %v4308
    %v4473 = vpack.c.b16 %v4311, %v4309
    %v4474 = vpack.c.b16 %v4314, %v4312
    %v4475 = vpack.c.b16 %v4315, %v4313
    %v4476 = vpack.c.b16 %v4318, %v4316
    %v4477 = vpack.c.b16 %v4319, %v4317
    %v4478 = vpack.c.b16 %v4322, %v4320
    %v4479 = vpack.c.b16 %v4323, %v4321
    %v4480 = vpack.c.b16 %v4326, %v4324
    %v4481 = vpack.c.b16 %v4327, %v4325
    %v4482 = vpack.c.b16 %v4330, %v4328
    %v4483 = vpack.c.b16 %v4331, %v4329
    %v4484 = vpack.c.b16 %v4334, %v4332
    %v4485 = vpack.c.b16 %v4335, %v4333
    %v4486 = vpack.c.b16 %v4338, %v4336
    %v4487 = vpack.c.b16 %v4339, %v4337
    %v4488 = vpack.c.b16 %v4342, %v4340
    %v4489 = vpack.c.b16 %v4343, %v4341
    %v4490 = vpack.c.b16 %v4346, %v4344
    %v4491 = vpack.c.b16 %v4347, %v4345
    %v4492 = vpack.c.b16 %v4350, %v4348
    %v4493 = vpack.c.b16 %v4351, %v4349
    %v4494 = vpack.c.b16 %v4354, %v4352
    %v4495 = vpack.c.b16 %v4355, %v4353
    %v4496 = vpack.c.b16 %v4358, %v4356
    %v4497 = vpack.c.b16 %v4359, %v4357
    %v4498 = vpack.c.b16 %v4362, %v4360
    %v4499 = vpack.c.b16 %v4363, %v4361
    %v4500 = vpack.c.b16 %v4366, %v4364
    %v4501 = vpack.c.b16 %v4367, %v4365
    %v4502 = vpack.c.b16 %v4370, %v4368
    %v4503 = vpack.c.b16 %v4371, %v4369
    %v4504 = vpack.c.b16 %v4374, %v4372
    %v4505 = vpack.c.b16 %v4375, %v4373
    %v4506 = vpack.c.b16 %v4378, %v4376
    %v4507 = vpack.c.b16 %v4379, %v4377
    %v4508 = vpack.c.b16 %v4382, %v4380
    %v4509 = vpack.c.b16 %v4383, %v4381
    %v4510 = vpack.c.b16 %v4386, %v4384
    %v4511 = vpack.c.b16 %v4387, %v4385
    %v4512 = vpack.c.b16 %v4390, %v4388
    %v4513 = vpack.c.b16 %v4391, %v4389
    %v4514 = vpack.c.b16 %v4394, %v4392
    %v4515 = vpack.c.b16 %v4395, %v4393
    %v4516 = vpack.c.b16 %v4398, %v4396
    %v4517 = vpack.c.b16 %v4399, %v4397
    %v4518 = vpack.c.b16 %v4402, %v4400
    %v4519 = vpack.c.b16 %v4403, %v4401
    %v4520 = vpack.c.b16 %v4406, %v4404
    %v4521 = vpack.c.b16 %v4407, %v4405
    %v4522 = vpack.c.b16 %v4410, %v4408
    %v4523 = vpack.c.b16 %v4411, %v4409
    %v4524 = vpack.c.b16 %v4414, %v4412
    %v4525 = vpack.c.b16 %v4415, %v4413
    %v4526 = vpack.c.b16 %v4418, %v4416
    %v4527 = vpack.c.b16 %v4419, %v4417
    %v4528 = vpack.c.b16 %v4422, %v4420
    %v4529 = vpack.c.b16 %v4423, %v4421
    %v4530 = vpack.c.b16 %v4426, %v4424
    %v4531 = vpack.c.b16 %v4427, %v4425
    %v4532 = vpack.c.b16 %v4430, %v4428
    %v4533 = vpack.c.b16 %v4431, %v4429
    %v4534 = vpack.c.b16 %v4434, %v4432
    %v4535 = vpack.c.b16 %v4435, %v4433
    %v4536 = vpack.c.b16 %v4438, %v4436
    %v4537 = vpack.c.b16 %v4439, %v4437
    %v4538 = vpack.c.b16 %v4442, %v4440
    %v4539 = vpack.c.b16 %v4443, %v4441
    %4636 = vmatprep.subr.bf16.mxu0 %v4445
    %4637 = vmatpush1.bf16.msra.mxu0 %v4444
    %4638 = vmatprep.subr.bf16.mxu0 %v4447
    %4639 = vmatpush1.bf16.msra.mxu0 %v4446
    %4640 = vmatprep.subr.bf16.mxu0 %v4449
    %4641 = vmatpush1.bf16.msra.mxu0 %v4448
    %4642 = vmatprep.subr.bf16.mxu0 %v4451
    %4643 = vmatpush1.bf16.msra.mxu0 %v4450
    %4644 = vmatprep.subr.bf16.mxu0 %v4453
    %4645 = vmatpush1.bf16.msra.mxu0 %v4452
    %4646 = vmatprep.subr.bf16.mxu0 %v4455
    %4647 = vmatpush1.bf16.msra.mxu0 %v4454
    %4648 = vmatprep.subr.bf16.mxu0 %v4457
    %4649 = vmatpush1.bf16.msra.mxu0 %v4456
    %4650 = vmatprep.subr.bf16.mxu0 %v4459
    %4651 = vmatpush1.bf16.msra.mxu0 %v4458
    %4652 = vmatprep.subr.bf16.mxu0 %v4461
    %4653 = vmatpush1.bf16.msra.mxu0 %v4460
    %4654 = vmatprep.subr.bf16.mxu0 %v4463
    %4655 = vmatpush1.bf16.msra.mxu0 %v4462
    %4656 = vmatprep.subr.bf16.mxu0 %v4465
    %4657 = vmatpush1.bf16.msra.mxu0 %v4464
    %4658 = vmatprep.subr.bf16.mxu0 %v4467
    %4659 = vmatpush1.bf16.msra.mxu0 %v4466
    %4660 = vmatprep.subr.bf16.mxu0 %v4469
    %4661 = vmatpush1.bf16.msra.mxu0 %v4468
    %4662 = vmatprep.subr.bf16.mxu0 %v4471
    %4663 = vmatpush1.bf16.msra.mxu0 %v4470
    %4664 = vmatprep.subr.bf16.mxu0 %v4473
    %4665 = vmatpush1.bf16.msra.mxu0 %v4472
    %4666 = vmatprep.subr.bf16.mxu0 %v4475
    %4667 = vmatpush1.bf16.msra.mxu0 %v4474
    %4668 = vmatprep.mubr.bf16.mxu0 %v4031
    %4669 = vmatmul.mubr.bf16.gmra.mrb[0].mxu0 %v4030
    %v4670 = vpop.f32.mrb[0].mxu0
    %v4671 = vadd.f32 %v4149, %v4670
    %v4672 = vpop.f32.mrb[0].mxu0
    %v4673 = vadd.f32 %v4153, %v4672
    %v4674 = vpop.f32.mrb[0].mxu0
    %v4675 = vadd.f32 %v4149, %v4674
    %v4676 = vpop.f32.mrb[0].mxu0
    %v4677 = vadd.f32 %v4153, %v4676
    %4678 = vmatprep.mubr.bf16.mxu0 %v4037
    %4679 = vmatmul.mubr.bf16.gmra.mrb[0].mxu0 %v4036
    %v4680 = vpop.f32.mrb[0].mxu0
    %v4681 = vadd.f32 %v4149, %v4680
    %v4682 = vpop.f32.mrb[0].mxu0
    %v4683 = vadd.f32 %v4153, %v4682
    %v4684 = vpop.f32.mrb[0].mxu0
    %v4685 = vadd.f32 %v4149, %v4684
    %v4686 = vpop.f32.mrb[0].mxu0
    %v4687 = vadd.f32 %v4153, %v4686
    %4688 = vmatprep.mubr.bf16.mxu0 %v4043
    %4689 = vmatmul.mubr.bf16.gmra.mrb[0].mxu0 %v4042
    %v4690 = vpop.f32.mrb[0].mxu0
    %v4691 = vadd.f32 %v4149, %v4690
    %v4692 = vpop.f32.mrb[0].mxu0
    %v4693 = vadd.f32 %v4153, %v4692
    %v4694 = vpop.f32.mrb[0].mxu0
    %v4695 = vadd.f32 %v4149, %v4694
    %v4696 = vpop.f32.mrb[0].mxu0
    %v4697 = vadd.f32 %v4153, %v4696
    %4698 = vdwg.mxu0
    %4699 = vmatprep.subr.bf16.mxu0 %v4477
    %4700 = vmatpush1.bf16.msra.mxu0 %v4476
    %4701 = vmatprep.subr.bf16.mxu0 %v4479
    %4702 = vmatpush1.bf16.msra.mxu0 %v4478
    %4703 = vmatprep.subr.bf16.mxu0 %v4481
    %4704 = vmatpush1.bf16.msra.mxu0 %v4480
    %4705 = vmatprep.subr.bf16.mxu0 %v4483
    %4706 = vmatpush1.bf16.msra.mxu0 %v4482
    %4707 = vmatprep.subr.bf16.mxu0 %v4485
    %4708 = vmatpush1.bf16.msra.mxu0 %v4484
    %4709 = vmatprep.subr.bf16.mxu0 %v4487
    %4710 = vmatpush1.bf16.msra.mxu0 %v4486
    %4711 = vmatprep.subr.bf16.mxu0 %v4489
    %4712 = vmatpush1.bf16.msra.mxu0 %v4488
    %4713 = vmatprep.subr.bf16.mxu0 %v4491
    %4714 = vmatpush1.bf16.msra.mxu0 %v4490
    %4715 = vmatprep.subr.bf16.mxu0 %v4493
    %4716 = vmatpush1.bf16.msra.mxu0 %v4492
    %4717 = vmatprep.subr.bf16.mxu0 %v4495
    %4718 = vmatpush1.bf16.msra.mxu0 %v4494
    %4719 = vmatprep.subr.bf16.mxu0 %v4497
    %4720 = vmatpush1.bf16.msra.mxu0 %v4496
    %4721 = vmatprep.subr.bf16.mxu0 %v4499
    %4722 = vmatpush1.bf16.msra.mxu0 %v4498
    %4723 = vmatprep.subr.bf16.mxu0 %v4501
    %4724 = vmatpush1.bf16.msra.mxu0 %v4500
    %4725 = vmatprep.subr.bf16.mxu0 %v4503
    %4726 = vmatpush1.bf16.msra.mxu0 %v4502
    %4727 = vmatprep.subr.bf16.mxu0 %v4505
    %4728 = vmatpush1.bf16.msra.mxu0 %v4504
    %4729 = vmatprep.subr.bf16.mxu0 %v4507
    %4730 = vmatpush1.bf16.msra.mxu0 %v4506
    %4731 = vmatprep.mubr.bf16.mxu0 %v4033
    %4732 = vmatmul.mubr.bf16.gmra.mrb[0].mxu0 %v4032
    %v4733 = vpop.f32.mrb[0].mxu0
    %v4734 = vadd.f32 %v4671, %v4733
    %v4735 = vpop.f32.mrb[0].mxu0
    %v4736 = vadd.f32 %v4673, %v4735
    %v4737 = vpop.f32.mrb[0].mxu0
    %v4738 = vadd.f32 %v4675, %v4737
    %v4739 = vpop.f32.mrb[0].mxu0
    %v4740 = vadd.f32 %v4677, %v4739
    %4741 = vmatprep.mubr.bf16.mxu0 %v4039
    %4742 = vmatmul.mubr.bf16.gmra.mrb[0].mxu0 %v4038
    %v4743 = vpop.f32.mrb[0].mxu0
    %v4744 = vadd.f32 %v4681, %v4743
    %v4745 = vpop.f32.mrb[0].mxu0
    %v4746 = vadd.f32 %v4683, %v4745
    %v4747 = vpop.f32.mrb[0].mxu0
    %v4748 = vadd.f32 %v4685, %v4747
    %v4749 = vpop.f32.mrb[0].mxu0
    %v4750 = vadd.f32 %v4687, %v4749
    %4751 = vmatprep.mubr.bf16.mxu0 %v4045
    %4752 = vmatmul.mubr.bf16.gmra.mrb[0].mxu0 %v4044
    %v4753 = vpop.f32.mrb[0].mxu0
    %v4754 = vadd.f32 %v4691, %v4753
    %v4755 = vpop.f32.mrb[0].mxu0
    %v4756 = vadd.f32 %v4693, %v4755
    %v4757 = vpop.f32.mrb[0].mxu0
    %v4758 = vadd.f32 %v4695, %v4757
    %v4759 = vpop.f32.mrb[0].mxu0
    %v4760 = vadd.f32 %v4697, %v4759
    %4761 = vdwg.mxu0
    %4762 = vmatprep.subr.bf16.mxu0 %v4509
    %4763 = vmatpush1.bf16.msra.mxu0 %v4508
    %4764 = vmatprep.subr.bf16.mxu0 %v4511
    %4765 = vmatpush1.bf16.msra.mxu0 %v4510
    %4766 = vmatprep.subr.bf16.mxu0 %v4513
    %4767 = vmatpush1.bf16.msra.mxu0 %v4512
    %4768 = vmatprep.subr.bf16.mxu0 %v4515
    %4769 = vmatpush1.bf16.msra.mxu0 %v4514
    %4770 = vmatprep.subr.bf16.mxu0 %v4517
    %4771 = vmatpush1.bf16.msra.mxu0 %v4516
    %4772 = vmatprep.subr.bf16.mxu0 %v4519
    %4773 = vmatpush1.bf16.msra.mxu0 %v4518
    %4774 = vmatprep.subr.bf16.mxu0 %v4521
    %4775 = vmatpush1.bf16.msra.mxu0 %v4520
    %4776 = vmatprep.subr.bf16.mxu0 %v4523
    %4777 = vmatpush1.bf16.msra.mxu0 %v4522
    %4778 = vmatprep.subr.bf16.mxu0 %v4525
    %4779 = vmatpush1.bf16.msra.mxu0 %v4524
    %4780 = vmatprep.subr.bf16.mxu0 %v4527
    %4781 = vmatpush1.bf16.msra.mxu0 %v4526
    %4782 = vmatprep.subr.bf16.mxu0 %v4529
    %4783 = vmatpush1.bf16.msra.mxu0 %v4528
    %4784 = vmatprep.subr.bf16.mxu0 %v4531
    %4785 = vmatpush1.bf16.msra.mxu0 %v4530
    %4786 = vmatprep.subr.bf16.mxu0 %v4533
    %4787 = vmatpush1.bf16.msra.mxu0 %v4532
    %4788 = vmatprep.subr.bf16.mxu0 %v4535
    %4789 = vmatpush1.bf16.msra.mxu0 %v4534
    %4790 = vmatprep.subr.bf16.mxu0 %v4537
    %4791 = vmatpush1.bf16.msra.mxu0 %v4536
    %4792 = vmatprep.subr.bf16.mxu0 %v4539
    %4793 = vmatpush1.bf16.msra.mxu0 %v4538
    %4794 = vmatprep.mubr.bf16.mxu0 %v4035
    %4795 = vmatmul.mubr.bf16.gmra.mrb[0].mxu0 %v4034
    %v4796 = vpop.f32.mrb[0].mxu0
    %v4797 = vadd.f32 %v4734, %v4796
    %v4798 = vpop.f32.mrb[0].mxu0
    %v4799 = vadd.f32 %v4736, %v4798
    %v4800 = vpop.f32.mrb[0].mxu0
    %v4801 = vadd.f32 %v4738, %v4800
    %v4802 = vpop.f32.mrb[0].mxu0
    %v4803 = vadd.f32 %v4740, %v4802
    %4804 = vmatprep.mubr.bf16.mxu0 %v4041
    %4805 = vmatmul.mubr.bf16.gmra.mrb[0].mxu0 %v4040
    %v4806 = vpop.f32.mrb[0].mxu0
    %v4807 = vadd.f32 %v4744, %v4806
    %v4808 = vpop.f32.mrb[0].mxu0
    %v4809 = vadd.f32 %v4746, %v4808
    %v4810 = vpop.f32.mrb[0].mxu0
    %v4811 = vadd.f32 %v4748, %v4810
    %v4812 = vpop.f32.mrb[0].mxu0
    %v4813 = vadd.f32 %v4750, %v4812
    %4814 = vmatprep.mubr.bf16.mxu0 %v4047
    %4815 = vmatmul.mubr.bf16.gmra.mrb[0].mxu0 %v4046
    %v4816 = vpop.f32.mrb[0].mxu0
    %v4817 = vadd.f32 %v4754, %v4816
    %v4818 = vpop.f32.mrb[0].mxu0
    %v4819 = vadd.f32 %v4756, %v4818
    %v4820 = vpop.f32.mrb[0].mxu0
    %v4821 = vadd.f32 %v4758, %v4820
    %v4822 = vpop.f32.mrb[0].mxu0
    %v4823 = vadd.f32 %v4760, %v4822
    %4824 = vdwg.mxu0
    %v4825 = vmax.f32 %v4797, 0.0
    %v4826 = vmax.f32 %v4799, 0.0
    %v4827 = vmax.f32 %v4801, 0.0
    %v4828 = vmax.f32 %v4803, 0.0
    %v4829 = vmax.f32 %v4807, 0.0
    %v4830 = vmax.f32 %v4809, 0.0
    %v4831 = vmax.f32 %v4811, 0.0
    %v4832 = vmax.f32 %v4813, 0.0
    %v4833 = vmax.f32 %v4817, 0.0
    %v4834 = vmax.f32 %v4819, 0.0
    %v4835 = vmax.f32 %v4821, 0.0
    %v4836 = vmax.f32 %v4823, 0.0
    %v4837 = vrot.slane %v4825, 2
    %v4838 = vsel %vm2915, %v4837, %v4835
    %v4839 = vrot.slane %v4826, 2
    %v4840 = vsel %vm2915, %v4839, %v4836
    %v4841 = vrot.slane %v4827, 2
    %v4842 = vrot.slane %v4828, 2
    %v4843 = vrot.slane %v4829, 2
    %v4844 = vrot.slane %v4830, 2
    %v4845 = vrot.slane %v4831, 2
    %v4846 = vrot.slane %v4832, 2
    %v4847 = vrot.slane %v4833, 2
    %v4848 = vrot.slane %v4834, 2
    %v4849 = vrot.slane %v4838, 2
    %v4850 = vrot.slane %v4840, 2
    %v4851 = vsel %vm2915, %v4841, %v4837
    %v4852 = vsel %vm2915, %v4842, %v4839
    %v4853 = vsel %vm2915, %v4843, %v4841
    %v4854 = vsel %vm2915, %v4844, %v4842
    %v4855 = vsel %vm2915, %v4845, %v4843
    %v4856 = vsel %vm2915, %v4846, %v4844
    %v4857 = vsel %vm2915, %v4847, %v4845
    %v4858 = vsel %vm2915, %v4848, %v4846
    %v4859 = vsel %vm2915, %v4849, %v4847
    %v4860 = vsel %vm2915, %v4850, %v4848
    %v4875 = vrot.slane %v4838, 5
    %v4876 = vrot.slane %v4851, 5
    %v4877 = vsel %vm2954, %v4875, %v4876
    %v4878 = vrot.slane %v4840, 5
    %v4879 = vrot.slane %v4852, 5
    %v4880 = vsel %vm2954, %v4878, %v4879
    %v4881 = vrot.slane %v4853, 5
    %v4882 = vsel %vm2954, %v4876, %v4881
    %v4883 = vrot.slane %v4854, 5
    %v4884 = vsel %vm2954, %v4879, %v4883
    %v4885 = vrot.slane %v4855, 5
    %v4886 = vsel %vm2954, %v4881, %v4885
    %v4887 = vrot.slane %v4856, 5
    %v4888 = vsel %vm2954, %v4883, %v4887
    %v4889 = vrot.slane %v4857, 5
    %v4890 = vsel %vm2954, %v4885, %v4889
    %v4891 = vrot.slane %v4858, 5
    %v4892 = vsel %vm2954, %v4887, %v4891
    %v4893 = vrot.slane %v4859, 5
    %v4894 = vsel %vm2954, %v4889, %v4893
    %v4895 = vrot.slane %v4860, 5
    %v4896 = vsel %vm2954, %v4891, %v4895
    %v4897 = vrot.slane %v4849, 5
    %v4898 = vsel %vm2954, %v4893, %v4897
    %v4899 = vrot.slane %v4850, 5
    %v4900 = vsel %vm2954, %v4895, %v4899
    %v4913 = vsel %vm252, 0.0, %v4877
    %v4914 = vsel %vm252, 0.0, %v4880
    %v4915 = vsel %vm253, 0.0, %v4882
    %v4916 = vsel %vm253, 0.0, %v4884
    %v4917 = vsel %vm254, 0.0, %v4886
    %v4918 = vsel %vm254, 0.0, %v4888
    %v4919 = vsel %vm255, 0.0, %v4890
    %v4920 = vsel %vm255, 0.0, %v4892
    %v4921 = vsel %vm256, 0.0, %v4894
    %v4922 = vsel %vm256, 0.0, %v4896
    %v4923 = vsel %vm257, 0.0, %v4898
    %v4924 = vsel %vm257, 0.0, %v4900
    %v4935 = vrot.slane %v4825, 1
    %v4936 = vrot.slane %v4827, 1
    %v4937 = vsel %vm441, %v4935, %v4936
    %v4938 = vrot.slane %v4826, 1
    %v4939 = vrot.slane %v4828, 1
    %v4940 = vsel %vm441, %v4938, %v4939
    %v4941 = vrot.slane %v4829, 1
    %v4942 = vsel %vm441, %v4936, %v4941
    %v4943 = vrot.slane %v4830, 1
    %v4944 = vsel %vm441, %v4939, %v4943
    %v4945 = vrot.slane %v4831, 1
    %v4946 = vsel %vm441, %v4941, %v4945
    %v4947 = vrot.slane %v4832, 1
    %v4948 = vsel %vm441, %v4943, %v4947
    %v4949 = vrot.slane %v4833, 1
    %v4950 = vsel %vm441, %v4945, %v4949
    %v4951 = vrot.slane %v4834, 1
    %v4952 = vsel %vm441, %v4947, %v4951
    %v4953 = vrot.slane %v4838, 1
    %v4954 = vsel %vm441, %v4949, %v4953
    %v4955 = vrot.slane %v4840, 1
    %v4956 = vsel %vm441, %v4951, %v4955
    %v4969 = vsel %vm3017, 0.0, %v4937
    %v4970 = vsel %vm3017, 0.0, %v4940
    %v4971 = vsel %vm3018, 0.0, %v4942
    %v4972 = vsel %vm3018, 0.0, %v4944
    %v4973 = vsel %vm3019, 0.0, %v4946
    %v4974 = vsel %vm3019, 0.0, %v4948
    %v4975 = vsel %vm3020, 0.0, %v4950
    %v4976 = vsel %vm3020, 0.0, %v4952
    %v4977 = vsel %vm3021, 0.0, %v4954
    %v4978 = vsel %vm3021, 0.0, %v4956
    %v4979 = vsel %vm3022, 0.0, %v4953
    %v4980 = vsel %vm3022, 0.0, %v4955
    %v4981 = vpack.c.bf16 %v4915, %v4913
    %v4982 = vpack.c.bf16 %v4916, %v4914
    %v4983 = vpack.c.bf16 %v4827, %v4825
    %v4984 = vpack.c.bf16 %v4828, %v4826
    %v4985 = vpack.c.bf16 %v4971, %v4969
    %v4986 = vpack.c.bf16 %v4972, %v4970
    %v4987 = vpack.c.bf16 %v4919, %v4917
    %v4988 = vpack.c.bf16 %v4920, %v4918
    %v4989 = vpack.c.bf16 %v4831, %v4829
    %v4990 = vpack.c.bf16 %v4832, %v4830
    %v4991 = vpack.c.bf16 %v4975, %v4973
    %v4992 = vpack.c.bf16 %v4976, %v4974
    %v4993 = vpack.c.bf16 %v4923, %v4921
    %v4994 = vpack.c.bf16 %v4924, %v4922
    %v4995 = vpack.c.bf16 %v4835, %v4833
    %v4996 = vpack.c.bf16 %v4836, %v4834
    %v4997 = vpack.c.bf16 %v4979, %v4977
    %v4998 = vpack.c.bf16 %v4980, %v4978
    %v4999 = vld [vmem:[#allocation10] sm:$0xff]
    %v5000 = vld [vmem:[#allocation10 + $0x8] sm:$0xff]
    %v5001 = vld [vmem:[#allocation10 + $0x10] sm:$0xff]
    %v5002 = vld [vmem:[#allocation10 + $0x18] sm:$0xff]
    %v5003 = vld [vmem:[#allocation10 + $0x20] sm:$0xff]
    %v5004 = vld [vmem:[#allocation10 + $0x28] sm:$0xff]
    %v5005 = vld [vmem:[#allocation10 + $0x30] sm:$0xff]
    %v5006 = vld [vmem:[#allocation10 + $0x38] sm:$0xff]
    %v5007 = vld [vmem:[#allocation10 + $0x40] sm:$0xff]
    %v5008 = vld [vmem:[#allocation10 + $0x48] sm:$0xff]
    %v5009 = vld [vmem:[#allocation10 + $0x50] sm:$0xff]
    %v5010 = vld [vmem:[#allocation10 + $0x58] sm:$0xff]
    %v5011 = vld [vmem:[#allocation10 + $0x60] sm:$0xff]
    %v5012 = vld [vmem:[#allocation10 + $0x68] sm:$0xff]
    %v5013 = vld [vmem:[#allocation10 + $0x70] sm:$0xff]
    %v5014 = vld [vmem:[#allocation10 + $0x78] sm:$0xff]
    %v5015 = vld [vmem:[#allocation10 + $0x80] sm:$0xff]
    %v5016 = vld [vmem:[#allocation10 + $0x88] sm:$0xff]
    %v5017 = vld [vmem:[#allocation10 + $0x90] sm:$0xff]
    %v5018 = vld [vmem:[#allocation10 + $0x98] sm:$0xff]
    %v5019 = vld [vmem:[#allocation10 + $0xa0] sm:$0xff]
    %v5020 = vld [vmem:[#allocation10 + $0xa8] sm:$0xff]
    %v5021 = vld [vmem:[#allocation10 + $0xb0] sm:$0xff]
    %v5022 = vld [vmem:[#allocation10 + $0xb8] sm:$0xff]
    %v5023 = vld [vmem:[#allocation10 + $0xc0] sm:$0xff]
    %v5024 = vld [vmem:[#allocation10 + $0xc8] sm:$0xff]
    %v5025 = vld [vmem:[#allocation10 + $0xd0] sm:$0xff]
    %v5026 = vld [vmem:[#allocation10 + $0xd8] sm:$0xff]
    %v5027 = vld [vmem:[#allocation10 + $0xe0] sm:$0xff]
    %v5028 = vld [vmem:[#allocation10 + $0xe8] sm:$0xff]
    %v5029 = vld [vmem:[#allocation10 + $0xf0] sm:$0xff]
    %v5030 = vld [vmem:[#allocation10 + $0xf8] sm:$0xff]
    %v5031 = vld [vmem:[#allocation10 + $0x100] sm:$0xff]
    %v5032 = vld [vmem:[#allocation10 + $0x108] sm:$0xff]
    %v5033 = vld [vmem:[#allocation10 + $0x110] sm:$0xff]
    %v5034 = vld [vmem:[#allocation10 + $0x118] sm:$0xff]
    %v5035 = vld [vmem:[#allocation10 + $0x120] sm:$0xff]
    %v5036 = vld [vmem:[#allocation10 + $0x128] sm:$0xff]
    %v5037 = vld [vmem:[#allocation10 + $0x130] sm:$0xff]
    %v5038 = vld [vmem:[#allocation10 + $0x138] sm:$0xff]
    %v5039 = vld [vmem:[#allocation10 + $0x140] sm:$0xff]
    %v5040 = vld [vmem:[#allocation10 + $0x148] sm:$0xff]
    %v5041 = vld [vmem:[#allocation10 + $0x150] sm:$0xff]
    %v5042 = vld [vmem:[#allocation10 + $0x158] sm:$0xff]
    %v5043 = vld [vmem:[#allocation10 + $0x160] sm:$0xff]
    %v5044 = vld [vmem:[#allocation10 + $0x168] sm:$0xff]
    %v5045 = vld [vmem:[#allocation10 + $0x170] sm:$0xff]
    %v5046 = vld [vmem:[#allocation10 + $0x178] sm:$0xff]
    %v5047 = vld [vmem:[#allocation10 + $0x180] sm:$0xff]
    %v5048 = vld [vmem:[#allocation10 + $0x188] sm:$0xff]
    %v5049 = vld [vmem:[#allocation10 + $0x190] sm:$0xff]
    %v5050 = vld [vmem:[#allocation10 + $0x198] sm:$0xff]
    %v5051 = vld [vmem:[#allocation10 + $0x1a0] sm:$0xff]
    %v5052 = vld [vmem:[#allocation10 + $0x1a8] sm:$0xff]
    %v5053 = vld [vmem:[#allocation10 + $0x1b0] sm:$0xff]
    %v5054 = vld [vmem:[#allocation10 + $0x1b8] sm:$0xff]
    %v5055 = vld [vmem:[#allocation10 + $0x1c0] sm:$0xff]
    %v5056 = vld [vmem:[#allocation10 + $0x1c8] sm:$0xff]
    %v5057 = vld [vmem:[#allocation10 + $0x1d0] sm:$0xff]
    %v5058 = vld [vmem:[#allocation10 + $0x1d8] sm:$0xff]
    %v5059 = vld [vmem:[#allocation10 + $0x1e0] sm:$0xff]
    %v5060 = vld [vmem:[#allocation10 + $0x1e8] sm:$0xff]
    %v5061 = vld [vmem:[#allocation10 + $0x1f0] sm:$0xff]
    %v5062 = vld [vmem:[#allocation10 + $0x1f8] sm:$0xff]
    %v5063 = vld [vmem:[#allocation10 + $0x200] sm:$0xff]
    %v5064 = vld [vmem:[#allocation10 + $0x208] sm:$0xff]
    %v5065 = vld [vmem:[#allocation10 + $0x210] sm:$0xff]
    %v5066 = vld [vmem:[#allocation10 + $0x218] sm:$0xff]
    %v5067 = vld [vmem:[#allocation10 + $0x220] sm:$0xff]
    %v5068 = vld [vmem:[#allocation10 + $0x228] sm:$0xff]
    %v5069 = vld [vmem:[#allocation10 + $0x230] sm:$0xff]
    %v5070 = vld [vmem:[#allocation10 + $0x238] sm:$0xff]
    %v5071 = vld [vmem:[#allocation10 + $0x240] sm:$0xff]
    %v5072 = vld [vmem:[#allocation10 + $0x248] sm:$0xff]
    %v5073 = vld [vmem:[#allocation10 + $0x250] sm:$0xff]
    %v5074 = vld [vmem:[#allocation10 + $0x258] sm:$0xff]
    %v5075 = vld [vmem:[#allocation10 + $0x260] sm:$0xff]
    %v5076 = vld [vmem:[#allocation10 + $0x268] sm:$0xff]
    %v5077 = vld [vmem:[#allocation10 + $0x270] sm:$0xff]
    %v5078 = vld [vmem:[#allocation10 + $0x278] sm:$0xff]
    %v5079 = vld [vmem:[#allocation10 + $0x280] sm:$0xff]
    %v5080 = vld [vmem:[#allocation10 + $0x288] sm:$0xff]
    %v5081 = vld [vmem:[#allocation10 + $0x290] sm:$0xff]
    %v5082 = vld [vmem:[#allocation10 + $0x298] sm:$0xff]
    %v5083 = vld [vmem:[#allocation10 + $0x2a0] sm:$0xff]
    %v5084 = vld [vmem:[#allocation10 + $0x2a8] sm:$0xff]
    %v5085 = vld [vmem:[#allocation10 + $0x2b0] sm:$0xff]
    %v5086 = vld [vmem:[#allocation10 + $0x2b8] sm:$0xff]
    %v5087 = vld [vmem:[#allocation10 + $0x2c0] sm:$0xff]
    %v5088 = vld [vmem:[#allocation10 + $0x2c8] sm:$0xff]
    %v5089 = vld [vmem:[#allocation10 + $0x2d0] sm:$0xff]
    %v5090 = vld [vmem:[#allocation10 + $0x2d8] sm:$0xff]
    %v5091 = vld [vmem:[#allocation10 + $0x2e0] sm:$0xff]
    %v5092 = vld [vmem:[#allocation10 + $0x2e8] sm:$0xff]
    %v5093 = vld [vmem:[#allocation10 + $0x2f0] sm:$0xff]
    %v5094 = vld [vmem:[#allocation10 + $0x2f8] sm:$0xff]
    %v5095 = vld [vmem:[%s10] sm:$0x3]
    %v5097 = vlaneseq
    %v5098 = vshrl.u32 %v5097, 7
    %v5099 = vsub.s32 0, %v5098
    %v5100 = vrot.slane %v5095, %v5099
    %v5101 = vlaneseq
    %v5102 = vshrl.u32 %v5101, 7
    %v5103 = vsub.s32 1, %v5102
    %v5104 = vrot.slane %v5095, %v5103
    %v5203 = vunpack.c.l.b16 %v4999
    %v5204 = vunpack.c.h.b16 %v4999
    %v5205 = vunpack.c.l.b16 %v5000
    %v5206 = vunpack.c.h.b16 %v5000
    %v5207 = vunpack.c.l.b16 %v5001
    %v5208 = vunpack.c.h.b16 %v5001
    %v5209 = vunpack.c.l.b16 %v5002
    %v5210 = vunpack.c.h.b16 %v5002
    %v5211 = vunpack.c.l.b16 %v5003
    %v5212 = vunpack.c.h.b16 %v5003
    %v5213 = vunpack.c.l.b16 %v5004
    %v5214 = vunpack.c.h.b16 %v5004
    %v5215 = vunpack.c.l.b16 %v5005
    %v5216 = vunpack.c.h.b16 %v5005
    %v5217 = vunpack.c.l.b16 %v5006
    %v5218 = vunpack.c.h.b16 %v5006
    %v5219 = vunpack.c.l.b16 %v5007
    %v5220 = vunpack.c.h.b16 %v5007
    %v5221 = vunpack.c.l.b16 %v5008
    %v5222 = vunpack.c.h.b16 %v5008
    %v5223 = vunpack.c.l.b16 %v5009
    %v5224 = vunpack.c.h.b16 %v5009
    %v5225 = vunpack.c.l.b16 %v5010
    %v5226 = vunpack.c.h.b16 %v5010
    %v5227 = vunpack.c.l.b16 %v5011
    %v5228 = vunpack.c.h.b16 %v5011
    %v5229 = vunpack.c.l.b16 %v5012
    %v5230 = vunpack.c.h.b16 %v5012
    %v5231 = vunpack.c.l.b16 %v5013
    %v5232 = vunpack.c.h.b16 %v5013
    %v5233 = vunpack.c.l.b16 %v5014
    %v5234 = vunpack.c.h.b16 %v5014
    %v5235 = vunpack.c.l.b16 %v5015
    %v5236 = vunpack.c.h.b16 %v5015
    %v5237 = vunpack.c.l.b16 %v5016
    %v5238 = vunpack.c.h.b16 %v5016
    %v5239 = vunpack.c.l.b16 %v5017
    %v5240 = vunpack.c.h.b16 %v5017
    %v5241 = vunpack.c.l.b16 %v5018
    %v5242 = vunpack.c.h.b16 %v5018
    %v5243 = vunpack.c.l.b16 %v5019
    %v5244 = vunpack.c.h.b16 %v5019
    %v5245 = vunpack.c.l.b16 %v5020
    %v5246 = vunpack.c.h.b16 %v5020
    %v5247 = vunpack.c.l.b16 %v5021
    %v5248 = vunpack.c.h.b16 %v5021
    %v5249 = vunpack.c.l.b16 %v5022
    %v5250 = vunpack.c.h.b16 %v5022
    %v5251 = vunpack.c.l.b16 %v5023
    %v5252 = vunpack.c.h.b16 %v5023
    %v5253 = vunpack.c.l.b16 %v5024
    %v5254 = vunpack.c.h.b16 %v5024
    %v5255 = vunpack.c.l.b16 %v5025
    %v5256 = vunpack.c.h.b16 %v5025
    %v5257 = vunpack.c.l.b16 %v5026
    %v5258 = vunpack.c.h.b16 %v5026
    %v5259 = vunpack.c.l.b16 %v5027
    %v5260 = vunpack.c.h.b16 %v5027
    %v5261 = vunpack.c.l.b16 %v5028
    %v5262 = vunpack.c.h.b16 %v5028
    %v5263 = vunpack.c.l.b16 %v5029
    %v5264 = vunpack.c.h.b16 %v5029
    %v5265 = vunpack.c.l.b16 %v5030
    %v5266 = vunpack.c.h.b16 %v5030
    %v5267 = vunpack.c.l.b16 %v5031
    %v5268 = vunpack.c.h.b16 %v5031
    %v5269 = vunpack.c.l.b16 %v5032
    %v5270 = vunpack.c.h.b16 %v5032
    %v5271 = vunpack.c.l.b16 %v5033
    %v5272 = vunpack.c.h.b16 %v5033
    %v5273 = vunpack.c.l.b16 %v5034
    %v5274 = vunpack.c.h.b16 %v5034
    %v5275 = vunpack.c.l.b16 %v5035
    %v5276 = vunpack.c.h.b16 %v5035
    %v5277 = vunpack.c.l.b16 %v5036
    %v5278 = vunpack.c.h.b16 %v5036
    %v5279 = vunpack.c.l.b16 %v5037
    %v5280 = vunpack.c.h.b16 %v5037
    %v5281 = vunpack.c.l.b16 %v5038
    %v5282 = vunpack.c.h.b16 %v5038
    %v5283 = vunpack.c.l.b16 %v5039
    %v5284 = vunpack.c.h.b16 %v5039
    %v5285 = vunpack.c.l.b16 %v5040
    %v5286 = vunpack.c.h.b16 %v5040
    %v5287 = vunpack.c.l.b16 %v5041
    %v5288 = vunpack.c.h.b16 %v5041
    %v5289 = vunpack.c.l.b16 %v5042
    %v5290 = vunpack.c.h.b16 %v5042
    %v5291 = vunpack.c.l.b16 %v5043
    %v5292 = vunpack.c.h.b16 %v5043
    %v5293 = vunpack.c.l.b16 %v5044
    %v5294 = vunpack.c.h.b16 %v5044
    %v5295 = vunpack.c.l.b16 %v5045
    %v5296 = vunpack.c.h.b16 %v5045
    %v5297 = vunpack.c.l.b16 %v5046
    %v5298 = vunpack.c.h.b16 %v5046
    %v5299 = vunpack.c.l.b16 %v5047
    %v5300 = vunpack.c.h.b16 %v5047
    %v5301 = vunpack.c.l.b16 %v5048
    %v5302 = vunpack.c.h.b16 %v5048
    %v5303 = vunpack.c.l.b16 %v5049
    %v5304 = vunpack.c.h.b16 %v5049
    %v5305 = vunpack.c.l.b16 %v5050
    %v5306 = vunpack.c.h.b16 %v5050
    %v5307 = vunpack.c.l.b16 %v5051
    %v5308 = vunpack.c.h.b16 %v5051
    %v5309 = vunpack.c.l.b16 %v5052
    %v5310 = vunpack.c.h.b16 %v5052
    %v5311 = vunpack.c.l.b16 %v5053
    %v5312 = vunpack.c.h.b16 %v5053
    %v5313 = vunpack.c.l.b16 %v5054
    %v5314 = vunpack.c.h.b16 %v5054
    %v5315 = vunpack.c.l.b16 %v5055
    %v5316 = vunpack.c.h.b16 %v5055
    %v5317 = vunpack.c.l.b16 %v5056
    %v5318 = vunpack.c.h.b16 %v5056
    %v5319 = vunpack.c.l.b16 %v5057
    %v5320 = vunpack.c.h.b16 %v5057
    %v5321 = vunpack.c.l.b16 %v5058
    %v5322 = vunpack.c.h.b16 %v5058
    %v5323 = vunpack.c.l.b16 %v5059
    %v5324 = vunpack.c.h.b16 %v5059
    %v5325 = vunpack.c.l.b16 %v5060
    %v5326 = vunpack.c.h.b16 %v5060
    %v5327 = vunpack.c.l.b16 %v5061
    %v5328 = vunpack.c.h.b16 %v5061
    %v5329 = vunpack.c.l.b16 %v5062
    %v5330 = vunpack.c.h.b16 %v5062
    %v5331 = vunpack.c.l.b16 %v5063
    %v5332 = vunpack.c.h.b16 %v5063
    %v5333 = vunpack.c.l.b16 %v5064
    %v5334 = vunpack.c.h.b16 %v5064
    %v5335 = vunpack.c.l.b16 %v5065
    %v5336 = vunpack.c.h.b16 %v5065
    %v5337 = vunpack.c.l.b16 %v5066
    %v5338 = vunpack.c.h.b16 %v5066
    %v5339 = vunpack.c.l.b16 %v5067
    %v5340 = vunpack.c.h.b16 %v5067
    %v5341 = vunpack.c.l.b16 %v5068
    %v5342 = vunpack.c.h.b16 %v5068
    %v5343 = vunpack.c.l.b16 %v5069
    %v5344 = vunpack.c.h.b16 %v5069
    %v5345 = vunpack.c.l.b16 %v5070
    %v5346 = vunpack.c.h.b16 %v5070
    %v5347 = vunpack.c.l.b16 %v5071
    %v5348 = vunpack.c.h.b16 %v5071
    %v5349 = vunpack.c.l.b16 %v5072
    %v5350 = vunpack.c.h.b16 %v5072
    %v5351 = vunpack.c.l.b16 %v5073
    %v5352 = vunpack.c.h.b16 %v5073
    %v5353 = vunpack.c.l.b16 %v5074
    %v5354 = vunpack.c.h.b16 %v5074
    %v5355 = vunpack.c.l.b16 %v5075
    %v5356 = vunpack.c.h.b16 %v5075
    %v5357 = vunpack.c.l.b16 %v5076
    %v5358 = vunpack.c.h.b16 %v5076
    %v5359 = vunpack.c.l.b16 %v5077
    %v5360 = vunpack.c.h.b16 %v5077
    %v5361 = vunpack.c.l.b16 %v5078
    %v5362 = vunpack.c.h.b16 %v5078
    %v5363 = vunpack.c.l.b16 %v5079
    %v5364 = vunpack.c.h.b16 %v5079
    %v5365 = vunpack.c.l.b16 %v5080
    %v5366 = vunpack.c.h.b16 %v5080
    %v5367 = vunpack.c.l.b16 %v5081
    %v5368 = vunpack.c.h.b16 %v5081
    %v5369 = vunpack.c.l.b16 %v5082
    %v5370 = vunpack.c.h.b16 %v5082
    %v5371 = vunpack.c.l.b16 %v5083
    %v5372 = vunpack.c.h.b16 %v5083
    %v5373 = vunpack.c.l.b16 %v5084
    %v5374 = vunpack.c.h.b16 %v5084
    %v5375 = vunpack.c.l.b16 %v5085
    %v5376 = vunpack.c.h.b16 %v5085
    %v5377 = vunpack.c.l.b16 %v5086
    %v5378 = vunpack.c.h.b16 %v5086
    %v5379 = vunpack.c.l.b16 %v5087
    %v5380 = vunpack.c.h.b16 %v5087
    %v5381 = vunpack.c.l.b16 %v5088
    %v5382 = vunpack.c.h.b16 %v5088
    %v5383 = vunpack.c.l.b16 %v5089
    %v5384 = vunpack.c.h.b16 %v5089
    %v5385 = vunpack.c.l.b16 %v5090
    %v5386 = vunpack.c.h.b16 %v5090
    %v5387 = vunpack.c.l.b16 %v5091
    %v5388 = vunpack.c.h.b16 %v5091
    %v5389 = vunpack.c.l.b16 %v5092
    %v5390 = vunpack.c.h.b16 %v5092
    %v5391 = vunpack.c.l.b16 %v5093
    %v5392 = vunpack.c.h.b16 %v5093
    %v5393 = vunpack.c.l.b16 %v5094
    %v5394 = vunpack.c.h.b16 %v5094
    %v5395 = vpack.c.b16 %v5205, %v5203
    %v5396 = vpack.c.b16 %v5206, %v5204
    %v5397 = vpack.c.b16 %v5209, %v5207
    %v5398 = vpack.c.b16 %v5210, %v5208
    %v5399 = vpack.c.b16 %v5213, %v5211
    %v5400 = vpack.c.b16 %v5214, %v5212
    %v5401 = vpack.c.b16 %v5217, %v5215
    %v5402 = vpack.c.b16 %v5218, %v5216
    %v5403 = vpack.c.b16 %v5221, %v5219
    %v5404 = vpack.c.b16 %v5222, %v5220
    %v5405 = vpack.c.b16 %v5225, %v5223
    %v5406 = vpack.c.b16 %v5226, %v5224
    %v5407 = vpack.c.b16 %v5229, %v5227
    %v5408 = vpack.c.b16 %v5230, %v5228
    %v5409 = vpack.c.b16 %v5233, %v5231
    %v5410 = vpack.c.b16 %v5234, %v5232
    %v5411 = vpack.c.b16 %v5237, %v5235
    %v5412 = vpack.c.b16 %v5238, %v5236
    %v5413 = vpack.c.b16 %v5241, %v5239
    %v5414 = vpack.c.b16 %v5242, %v5240
    %v5415 = vpack.c.b16 %v5245, %v5243
    %v5416 = vpack.c.b16 %v5246, %v5244
    %v5417 = vpack.c.b16 %v5249, %v5247
    %v5418 = vpack.c.b16 %v5250, %v5248
    %v5419 = vpack.c.b16 %v5253, %v5251
    %v5420 = vpack.c.b16 %v5254, %v5252
    %v5421 = vpack.c.b16 %v5257, %v5255
    %v5422 = vpack.c.b16 %v5258, %v5256
    %v5423 = vpack.c.b16 %v5261, %v5259
    %v5424 = vpack.c.b16 %v5262, %v5260
    %v5425 = vpack.c.b16 %v5265, %v5263
    %v5426 = vpack.c.b16 %v5266, %v5264
    %v5427 = vpack.c.b16 %v5269, %v5267
    %v5428 = vpack.c.b16 %v5270, %v5268
    %v5429 = vpack.c.b16 %v5273, %v5271
    %v5430 = vpack.c.b16 %v5274, %v5272
    %v5431 = vpack.c.b16 %v5277, %v5275
    %v5432 = vpack.c.b16 %v5278, %v5276
    %v5433 = vpack.c.b16 %v5281, %v5279
    %v5434 = vpack.c.b16 %v5282, %v5280
    %v5435 = vpack.c.b16 %v5285, %v5283
    %v5436 = vpack.c.b16 %v5286, %v5284
    %v5437 = vpack.c.b16 %v5289, %v5287
    %v5438 = vpack.c.b16 %v5290, %v5288
    %v5439 = vpack.c.b16 %v5293, %v5291
    %v5440 = vpack.c.b16 %v5294, %v5292
    %v5441 = vpack.c.b16 %v5297, %v5295
    %v5442 = vpack.c.b16 %v5298, %v5296
    %v5443 = vpack.c.b16 %v5301, %v5299
    %v5444 = vpack.c.b16 %v5302, %v5300
    %v5445 = vpack.c.b16 %v5305, %v5303
    %v5446 = vpack.c.b16 %v5306, %v5304
    %v5447 = vpack.c.b16 %v5309, %v5307
    %v5448 = vpack.c.b16 %v5310, %v5308
    %v5449 = vpack.c.b16 %v5313, %v5311
    %v5450 = vpack.c.b16 %v5314, %v5312
    %v5451 = vpack.c.b16 %v5317, %v5315
    %v5452 = vpack.c.b16 %v5318, %v5316
    %v5453 = vpack.c.b16 %v5321, %v5319
    %v5454 = vpack.c.b16 %v5322, %v5320
    %v5455 = vpack.c.b16 %v5325, %v5323
    %v5456 = vpack.c.b16 %v5326, %v5324
    %v5457 = vpack.c.b16 %v5329, %v5327
    %v5458 = vpack.c.b16 %v5330, %v5328
    %v5459 = vpack.c.b16 %v5333, %v5331
    %v5460 = vpack.c.b16 %v5334, %v5332
    %v5461 = vpack.c.b16 %v5337, %v5335
    %v5462 = vpack.c.b16 %v5338, %v5336
    %v5463 = vpack.c.b16 %v5341, %v5339
    %v5464 = vpack.c.b16 %v5342, %v5340
    %v5465 = vpack.c.b16 %v5345, %v5343
    %v5466 = vpack.c.b16 %v5346, %v5344
    %v5467 = vpack.c.b16 %v5349, %v5347
    %v5468 = vpack.c.b16 %v5350, %v5348
    %v5469 = vpack.c.b16 %v5353, %v5351
    %v5470 = vpack.c.b16 %v5354, %v5352
    %v5471 = vpack.c.b16 %v5357, %v5355
    %v5472 = vpack.c.b16 %v5358, %v5356
    %v5473 = vpack.c.b16 %v5361, %v5359
    %v5474 = vpack.c.b16 %v5362, %v5360
    %v5475 = vpack.c.b16 %v5365, %v5363
    %v5476 = vpack.c.b16 %v5366, %v5364
    %v5477 = vpack.c.b16 %v5369, %v5367
    %v5478 = vpack.c.b16 %v5370, %v5368
    %v5479 = vpack.c.b16 %v5373, %v5371
    %v5480 = vpack.c.b16 %v5374, %v5372
    %v5481 = vpack.c.b16 %v5377, %v5375
    %v5482 = vpack.c.b16 %v5378, %v5376
    %v5483 = vpack.c.b16 %v5381, %v5379
    %v5484 = vpack.c.b16 %v5382, %v5380
    %v5485 = vpack.c.b16 %v5385, %v5383
    %v5486 = vpack.c.b16 %v5386, %v5384
    %v5487 = vpack.c.b16 %v5389, %v5387
    %v5488 = vpack.c.b16 %v5390, %v5388
    %v5489 = vpack.c.b16 %v5393, %v5391
    %v5490 = vpack.c.b16 %v5394, %v5392
    %5587 = vmatprep.subr.bf16.mxu0 %v5396
    %5588 = vmatpush1.bf16.msra.mxu0 %v5395
    %5589 = vmatprep.subr.bf16.mxu0 %v5398
    %5590 = vmatpush1.bf16.msra.mxu0 %v5397
    %5591 = vmatprep.subr.bf16.mxu0 %v5400
    %5592 = vmatpush1.bf16.msra.mxu0 %v5399
    %5593 = vmatprep.subr.bf16.mxu0 %v5402
    %5594 = vmatpush1.bf16.msra.mxu0 %v5401
    %5595 = vmatprep.subr.bf16.mxu0 %v5404
    %5596 = vmatpush1.bf16.msra.mxu0 %v5403
    %5597 = vmatprep.subr.bf16.mxu0 %v5406
    %5598 = vmatpush1.bf16.msra.mxu0 %v5405
    %5599 = vmatprep.subr.bf16.mxu0 %v5408
    %5600 = vmatpush1.bf16.msra.mxu0 %v5407
    %5601 = vmatprep.subr.bf16.mxu0 %v5410
    %5602 = vmatpush1.bf16.msra.mxu0 %v5409
    %5603 = vmatprep.subr.bf16.mxu0 %v5412
    %5604 = vmatpush1.bf16.msra.mxu0 %v5411
    %5605 = vmatprep.subr.bf16.mxu0 %v5414
    %5606 = vmatpush1.bf16.msra.mxu0 %v5413
    %5607 = vmatprep.subr.bf16.mxu0 %v5416
    %5608 = vmatpush1.bf16.msra.mxu0 %v5415
    %5609 = vmatprep.subr.bf16.mxu0 %v5418
    %5610 = vmatpush1.bf16.msra.mxu0 %v5417
    %5611 = vmatprep.subr.bf16.mxu0 %v5420
    %5612 = vmatpush1.bf16.msra.mxu0 %v5419
    %5613 = vmatprep.subr.bf16.mxu0 %v5422
    %5614 = vmatpush1.bf16.msra.mxu0 %v5421
    %5615 = vmatprep.subr.bf16.mxu0 %v5424
    %5616 = vmatpush1.bf16.msra.mxu0 %v5423
    %5617 = vmatprep.subr.bf16.mxu0 %v5426
    %5618 = vmatpush1.bf16.msra.mxu0 %v5425
    %5619 = vmatprep.mubr.bf16.mxu0 %v4982
    %5620 = vmatmul.mubr.bf16.gmra.mrb[0].mxu0 %v4981
    %v5621 = vpop.f32.mrb[0].mxu0
    %v5622 = vadd.f32 %v5100, %v5621
    %v5623 = vpop.f32.mrb[0].mxu0
    %v5624 = vadd.f32 %v5104, %v5623
    %v5625 = vpop.f32.mrb[0].mxu0
    %v5626 = vadd.f32 %v5100, %v5625
    %v5627 = vpop.f32.mrb[0].mxu0
    %v5628 = vadd.f32 %v5104, %v5627
    %5629 = vmatprep.mubr.bf16.mxu0 %v4988
    %5630 = vmatmul.mubr.bf16.gmra.mrb[0].mxu0 %v4987
    %v5631 = vpop.f32.mrb[0].mxu0
    %v5632 = vadd.f32 %v5100, %v5631
    %v5633 = vpop.f32.mrb[0].mxu0
    %v5634 = vadd.f32 %v5104, %v5633
    %v5635 = vpop.f32.mrb[0].mxu0
    %v5636 = vadd.f32 %v5100, %v5635
    %v5637 = vpop.f32.mrb[0].mxu0
    %v5638 = vadd.f32 %v5104, %v5637
    %5639 = vmatprep.mubr.bf16.mxu0 %v4994
    %5640 = vmatmul.mubr.bf16.gmra.mrb[0].mxu0 %v4993
    %v5641 = vpop.f32.mrb[0].mxu0
    %v5642 = vadd.f32 %v5100, %v5641
    %v5643 = vpop.f32.mrb[0].mxu0
    %v5644 = vadd.f32 %v5104, %v5643
    %v5645 = vpop.f32.mrb[0].mxu0
    %v5646 = vadd.f32 %v5100, %v5645
    %v5647 = vpop.f32.mrb[0].mxu0
    %v5648 = vadd.f32 %v5104, %v5647
    %5649 = vdwg.mxu0
    %5650 = vmatprep.subr.bf16.mxu0 %v5428
    %5651 = vmatpush1.bf16.msra.mxu0 %v5427
    %5652 = vmatprep.subr.bf16.mxu0 %v5430
    %5653 = vmatpush1.bf16.msra.mxu0 %v5429
    %5654 = vmatprep.subr.bf16.mxu0 %v5432
    %5655 = vmatpush1.bf16.msra.mxu0 %v5431
    %5656 = vmatprep.subr.bf16.mxu0 %v5434
    %5657 = vmatpush1.bf16.msra.mxu0 %v5433
    %5658 = vmatprep.subr.bf16.mxu0 %v5436
    %5659 = vmatpush1.bf16.msra.mxu0 %v5435
    %5660 = vmatprep.subr.bf16.mxu0 %v5438
    %5661 = vmatpush1.bf16.msra.mxu0 %v5437
    %5662 = vmatprep.subr.bf16.mxu0 %v5440
    %5663 = vmatpush1.bf16.msra.mxu0 %v5439
    %5664 = vmatprep.subr.bf16.mxu0 %v5442
    %5665 = vmatpush1.bf16.msra.mxu0 %v5441
    %5666 = vmatprep.subr.bf16.mxu0 %v5444
    %5667 = vmatpush1.bf16.msra.mxu0 %v5443
    %5668 = vmatprep.subr.bf16.mxu0 %v5446
    %5669 = vmatpush1.bf16.msra.mxu0 %v5445
    %5670 = vmatprep.subr.bf16.mxu0 %v5448
    %5671 = vmatpush1.bf16.msra.mxu0 %v5447
    %5672 = vmatprep.subr.bf16.mxu0 %v5450
    %5673 = vmatpush1.bf16.msra.mxu0 %v5449
    %5674 = vmatprep.subr.bf16.mxu0 %v5452
    %5675 = vmatpush1.bf16.msra.mxu0 %v5451
    %5676 = vmatprep.subr.bf16.mxu0 %v5454
    %5677 = vmatpush1.bf16.msra.mxu0 %v5453
    %5678 = vmatprep.subr.bf16.mxu0 %v5456
    %5679 = vmatpush1.bf16.msra.mxu0 %v5455
    %5680 = vmatprep.subr.bf16.mxu0 %v5458
    %5681 = vmatpush1.bf16.msra.mxu0 %v5457
    %5682 = vmatprep.mubr.bf16.mxu0 %v4984
    %5683 = vmatmul.mubr.bf16.gmra.mrb[0].mxu0 %v4983
    %v5684 = vpop.f32.mrb[0].mxu0
    %v5685 = vadd.f32 %v5622, %v5684
    %v5686 = vpop.f32.mrb[0].mxu0
    %v5687 = vadd.f32 %v5624, %v5686
    %v5688 = vpop.f32.mrb[0].mxu0
    %v5689 = vadd.f32 %v5626, %v5688
    %v5690 = vpop.f32.mrb[0].mxu0
    %v5691 = vadd.f32 %v5628, %v5690
    %5692 = vmatprep.mubr.bf16.mxu0 %v4990
    %5693 = vmatmul.mubr.bf16.gmra.mrb[0].mxu0 %v4989
    %v5694 = vpop.f32.mrb[0].mxu0
    %v5695 = vadd.f32 %v5632, %v5694
    %v5696 = vpop.f32.mrb[0].mxu0
    %v5697 = vadd.f32 %v5634, %v5696
    %v5698 = vpop.f32.mrb[0].mxu0
    %v5699 = vadd.f32 %v5636, %v5698
    %v5700 = vpop.f32.mrb[0].mxu0
    %v5701 = vadd.f32 %v5638, %v5700
    %5702 = vmatprep.mubr.bf16.mxu0 %v4996
    %5703 = vmatmul.mubr.bf16.gmra.mrb[0].mxu0 %v4995
    %v5704 = vpop.f32.mrb[0].mxu0
    %v5705 = vadd.f32 %v5642, %v5704
    %v5706 = vpop.f32.mrb[0].mxu0
    %v5707 = vadd.f32 %v5644, %v5706
    %v5708 = vpop.f32.mrb[0].mxu0
    %v5709 = vadd.f32 %v5646, %v5708
    %v5710 = vpop.f32.mrb[0].mxu0
    %v5711 = vadd.f32 %v5648, %v5710
    %5712 = vdwg.mxu0
    %5713 = vmatprep.subr.bf16.mxu0 %v5460
    %5714 = vmatpush1.bf16.msra.mxu0 %v5459
    %5715 = vmatprep.subr.bf16.mxu0 %v5462
    %5716 = vmatpush1.bf16.msra.mxu0 %v5461
    %5717 = vmatprep.subr.bf16.mxu0 %v5464
    %5718 = vmatpush1.bf16.msra.mxu0 %v5463
    %5719 = vmatprep.subr.bf16.mxu0 %v5466
    %5720 = vmatpush1.bf16.msra.mxu0 %v5465
    %5721 = vmatprep.subr.bf16.mxu0 %v5468
    %5722 = vmatpush1.bf16.msra.mxu0 %v5467
    %5723 = vmatprep.subr.bf16.mxu0 %v5470
    %5724 = vmatpush1.bf16.msra.mxu0 %v5469
    %5725 = vmatprep.subr.bf16.mxu0 %v5472
    %5726 = vmatpush1.bf16.msra.mxu0 %v5471
    %5727 = vmatprep.subr.bf16.mxu0 %v5474
    %5728 = vmatpush1.bf16.msra.mxu0 %v5473
    %5729 = vmatprep.subr.bf16.mxu0 %v5476
    %5730 = vmatpush1.bf16.msra.mxu0 %v5475
    %5731 = vmatprep.subr.bf16.mxu0 %v5478
    %5732 = vmatpush1.bf16.msra.mxu0 %v5477
    %5733 = vmatprep.subr.bf16.mxu0 %v5480
    %5734 = vmatpush1.bf16.msra.mxu0 %v5479
    %5735 = vmatprep.subr.bf16.mxu0 %v5482
    %5736 = vmatpush1.bf16.msra.mxu0 %v5481
    %5737 = vmatprep.subr.bf16.mxu0 %v5484
    %5738 = vmatpush1.bf16.msra.mxu0 %v5483
    %5739 = vmatprep.subr.bf16.mxu0 %v5486
    %5740 = vmatpush1.bf16.msra.mxu0 %v5485
    %5741 = vmatprep.subr.bf16.mxu0 %v5488
    %5742 = vmatpush1.bf16.msra.mxu0 %v5487
    %5743 = vmatprep.subr.bf16.mxu0 %v5490
    %5744 = vmatpush1.bf16.msra.mxu0 %v5489
    %5745 = vmatprep.mubr.bf16.mxu0 %v4986
    %5746 = vmatmul.mubr.bf16.gmra.mrb[0].mxu0 %v4985
    %v5747 = vpop.f32.mrb[0].mxu0
    %v5748 = vadd.f32 %v5685, %v5747
    %v5749 = vpop.f32.mrb[0].mxu0
    %v5750 = vadd.f32 %v5687, %v5749
    %v5751 = vpop.f32.mrb[0].mxu0
    %v5752 = vadd.f32 %v5689, %v5751
    %v5753 = vpop.f32.mrb[0].mxu0
    %v5754 = vadd.f32 %v5691, %v5753
    %5755 = vmatprep.mubr.bf16.mxu0 %v4992
    %5756 = vmatmul.mubr.bf16.gmra.mrb[0].mxu0 %v4991
    %v5757 = vpop.f32.mrb[0].mxu0
    %v5758 = vadd.f32 %v5695, %v5757
    %v5759 = vpop.f32.mrb[0].mxu0
    %v5760 = vadd.f32 %v5697, %v5759
    %v5761 = vpop.f32.mrb[0].mxu0
    %v5762 = vadd.f32 %v5699, %v5761
    %v5763 = vpop.f32.mrb[0].mxu0
    %v5764 = vadd.f32 %v5701, %v5763
    %5765 = vmatprep.mubr.bf16.mxu0 %v4998
    %5766 = vmatmul.mubr.bf16.gmra.mrb[0].mxu0 %v4997
    %v5767 = vpop.f32.mrb[0].mxu0
    %v5768 = vadd.f32 %v5705, %v5767
    %v5769 = vpop.f32.mrb[0].mxu0
    %v5770 = vadd.f32 %v5707, %v5769
    %v5771 = vpop.f32.mrb[0].mxu0
    %v5772 = vadd.f32 %v5709, %v5771
    %v5773 = vpop.f32.mrb[0].mxu0
    %v5774 = vadd.f32 %v5711, %v5773
    %5775 = vdwg.mxu0
    %v5776 = vrot.slane %v5748, 2
    %v5777 = vrot.slane %v5750, 2
    %v5778 = vsel %vm2915, %v5776, %v5772
    %v5779 = vsel %vm2915, %v5777, %v5774
    %v5792 = vrot.slane %v5748, 1
    %v5793 = vrot.slane %v5752, 1
    %v5794 = vsel %vm441, %v5792, %v5793
    %v5795 = vrot.slane %v5750, 1
    %v5796 = vrot.slane %v5754, 1
    %v5797 = vsel %vm441, %v5795, %v5796
    %v5798 = vrot.slane %v5758, 1
    %v5799 = vsel %vm441, %v5793, %v5798
    %v5800 = vrot.slane %v5760, 1
    %v5801 = vsel %vm441, %v5796, %v5800
    %v5802 = vrot.slane %v5762, 1
    %v5803 = vsel %vm441, %v5798, %v5802
    %v5804 = vrot.slane %v5764, 1
    %v5805 = vsel %vm441, %v5800, %v5804
    %v5806 = vrot.slane %v5768, 1
    %v5807 = vsel %vm441, %v5802, %v5806
    %v5808 = vrot.slane %v5770, 1
    %v5809 = vsel %vm441, %v5804, %v5808
    %v5810 = vrot.slane %v5778, 1
    %v5811 = vsel %vm441, %v5806, %v5810
    %v5812 = vrot.slane %v5779, 1
    %v5813 = vsel %vm441, %v5808, %v5812
    %v5826 = vmax.f32 %v5748, %v5794
    %v5827 = vmax.f32 %v5750, %v5797
    %v5828 = vmax.f32 %v5752, %v5799
    %v5829 = vmax.f32 %v5754, %v5801
    %v5830 = vmax.f32 %v5758, %v5803
    %v5831 = vmax.f32 %v5760, %v5805
    %v5832 = vmax.f32 %v5762, %v5807
    %v5833 = vmax.f32 %v5764, %v5809
    %v5834 = vmax.f32 %v5768, %v5811
    %v5835 = vmax.f32 %v5770, %v5813
    %v5836 = vmax.f32 %v5772, %v5810
    %v5837 = vmax.f32 %v5774, %v5812
    %v5838 = vld [vmem:[%s14] sm:$0xff]
    %v5839 = vld [vmem:[%s14 + $0x8] sm:$0xff]
    %v5840 = vld [vmem:[%s14 + $0x10] sm:$0x7f]
    %vm5841 = vcmask 375808
    %v5843 = vsel %vm5841, %v5838, 0
    %v5846 = vsel %vm5841, %v5839, 0
    %v5849 = vsel %vm5841, %v5840, 0
    %vm5851 = vcmask 1045504
    %v5853 = vsel %vm5851, %v5836, 0
    %v5856 = vsel %vm5851, %v5837, 0
    %5858 = vmatprep.subr.mxu0 %v5827
    %5859 = vmatpush1.msra.mxu0 %v5826
    %5860 = vmatprep.subr.mxu0 %v5829
    %5861 = vmatpush1.msra.mxu0 %v5828
    %5862 = vmatprep.subr.mxu0 %v5831
    %5863 = vmatpush1.msra.mxu0 %v5830
    %5864 = vmatprep.subr.mxu0 %v5833
    %5865 = vmatpush1.msra.mxu0 %v5832
    %5866 = vmatprep.subr.mxu0 %v5835
    %5867 = vmatpush1.msra.mxu0 %v5834
    %5868 = vmatprep.subr.mxu0 %v5856
    %5869 = vmatpush1.msra.mxu0 %v5853
    %5870 = vmatprep.subr.mxu0 0.0
    %5871 = vmatpush1.msra.mxu0 0.0
    %5872 = vmatprep.subr.mxu0 0.0
    %5873 = vmatpush1.msra.mxu0 0.0
    %5874 = vmatprep.subr.mxu0 0.0
    %5875 = vmatpush1.msra.mxu0 0.0
    %5876 = vmatprep.subr.mxu0 0.0
    %5877 = vmatpush1.msra.mxu0 0.0
    %5878 = vmatprep.subr.mxu0 0.0
    %5879 = vmatpush1.msra.mxu0 0.0
    %5880 = vmatprep.subr.mxu0 0.0
    %5881 = vmatpush1.msra.mxu0 0.0
    %5882 = vmatprep.subr.mxu0 0.0
    %5883 = vmatpush1.msra.mxu0 0.0
    %5884 = vmatprep.subr.mxu0 0.0
    %5885 = vmatpush1.msra.mxu0 0.0
    %5886 = vmatprep.subr.mxu0 0.0
    %5887 = vmatpush1.msra.mxu0 0.0
    %5888 = vmatprep.subr.mxu0 0.0
    %5889 = vmatpush1.msra.mxu0 0.0
    %5890 = vmatprep.subr.mxu0 0.0
    %5891 = vmatpush1.msra.mxu0 0.0
    %5892 = vmatprep.subr.mxu0 0.0
    %5893 = vmatpush1.msra.mxu0 0.0
    %5894 = vmatprep.subr.mxu0 0.0
    %5895 = vmatpush1.msra.mxu0 0.0
    %5896 = vmatprep.subr.mxu0 0.0
    %5897 = vmatpush1.msra.mxu0 0.0
    %5898 = vmatprep.subr.mxu0 0.0
    %5899 = vmatpush1.msra.mxu0 0.0
    %5900 = vmatprep.subr.mxu0 0.0
    %5901 = vmatpush1.msra.mxu0 0.0
    %5902 = vmatprep.subr.mxu0 0.0
    %5903 = vmatpush1.msra.mxu0 0.0
    %5904 = vmatprep.subr.mxu0 0.0
    %5905 = vmatpush1.msra.mxu0 0.0
    %5906 = vmatprep.subr.mxu0 0.0
    %5907 = vmatpush1.msra.mxu0 0.0
    %5908 = vmatprep.subr.mxu0 0.0
    %5909 = vmatpush1.msra.mxu0 0.0
    %5910 = vmatprep.subr.mxu0 0.0
    %5911 = vmatpush1.msra.mxu0 0.0
    %5912 = vmatprep.subr.mxu0 0.0
    %5913 = vmatpush1.msra.mxu0 0.0
    %5914 = vmatprep.subr.mxu0 0.0
    %5915 = vmatpush1.msra.mxu0 0.0
    %5916 = vmatprep.subr.mxu0 0.0
    %5917 = vmatpush1.msra.mxu0 0.0
    %5918 = vmatprep.subr.mxu0 0.0
    %5919 = vmatpush1.msra.mxu0 0.0
    %5920 = vmatprep.subr.mxu0 0.0
    %5921 = vmatpush1.msra.mxu0 0.0
    %5922 = vmatprep.mubr.f32.mxu0 0.0
    %5923 = vmatmul.mubr.f32.gmra.mrb[0].mxu0 %v5843
    %v5924 = vpop.f32.mrb[0].mxu0
    %v5925 = vadd.f32 0.0, %v5924
    %v5926 = vpop.f32.mrb[0].mxu0
    %v5927 = vadd.f32 0.0, %v5926
    %5928 = vmatprep.mubr.f32.mxu0 0.0
    %5929 = vmatmul.mubr.f32.gmra.mrb[0].mxu0 %v5846
    %v5930 = vpop.f32.mrb[0].mxu0
    %v5931 = vadd.f32 0.0, %v5930
    %v5932 = vpop.f32.mrb[0].mxu0
    %v5933 = vadd.f32 0.0, %v5932
    %5934 = vmatprep.mubr.f32.mxu0 0.0
    %5935 = vmatmul.mubr.f32.gmra.mrb[0].mxu0 %v5849
    %v5936 = vpop.f32.mrb[0].mxu0
    %v5937 = vadd.f32 0.0, %v5936
    %v5938 = vpop.f32.mrb[0].mxu0
    %v5939 = vadd.f32 0.0, %v5938
    %5940 = vdwg.mxu0
    %v5941 = vmax.f32 %v5925, 0.0
    %v5942 = vmax.f32 %v5927, 0.0
    %v5943 = vmax.f32 %v5931, 0.0
    %v5944 = vmax.f32 %v5933, 0.0
    %v5945 = vmax.f32 %v5937, 0.0
    %v5946 = vmax.f32 %v5939, 0.0
    %vm5947 = vcmask 1047559
    %v5948 = vrot.slane %v5941, 1
    %v5949 = vsel %vm5947, %v5948, %v5945
    %v5950 = vrot.slane %v5942, 1
    %v5951 = vsel %vm5947, %v5950, %v5946
    %v5952 = vrot.slane %v5943, 1
    %v5953 = vrot.slane %v5944, 1
    %v5954 = vrot.slane %v5949, 1
    %v5955 = vrot.slane %v5951, 1
    %v5956 = vsel %vm5947, %v5952, %v5948
    %v5957 = vsel %vm5947, %v5953, %v5950
    %v5958 = vsel %vm5947, %v5954, %v5952
    %v5959 = vsel %vm5947, %v5955, %v5953
    %vm5968 = vcmask 1041408
    %v5969 = vrot.slane %v5949, 6
    %v5970 = vrot.slane %v5956, 6
    %v5971 = vsel %vm5968, %v5969, %v5970
    %v5972 = vrot.slane %v5951, 6
    %v5973 = vrot.slane %v5957, 6
    %v5974 = vsel %vm5968, %v5972, %v5973
    %v5975 = vrot.slane %v5958, 6
    %v5976 = vsel %vm5968, %v5970, %v5975
    %v5977 = vrot.slane %v5959, 6
    %v5978 = vsel %vm5968, %v5973, %v5977
    %v5979 = vrot.slane %v5954, 6
    %v5980 = vsel %vm5968, %v5975, %v5979
    %v5981 = vrot.slane %v5955, 6
    %v5982 = vsel %vm5968, %v5977, %v5981
    %v5989 = vsel %vm252, 0.0, %v5971
    %v5990 = vsel %vm252, 0.0, %v5974
    %v5991 = vsel %vm253, 0.0, %v5976
    %v5992 = vsel %vm253, 0.0, %v5978
    %v5993 = vsel %vm254, 0.0, %v5980
    %v5994 = vsel %vm254, 0.0, %v5982
    %vm5995 = vcmp.eq.s32.totalorder %v143, 22
    %vm5996 = vcmp.eq.s32.totalorder %v144, 22
    %vm5997 = vcmp.eq.s32.totalorder %v145, 22
    %v5998 = vsel %vm5995, 1, 0
    %v5999 = vsel %vm5996, 1, 0
    %v6000 = vsel %vm5997, 1, 0
    %vm6001 = vcmp.eq.s32.totalorder %v5998, 1
    %vm6002 = vcmp.eq.s32.totalorder %v5999, 1
    %vm6003 = vcmp.eq.s32.totalorder %v6000, 1
    %v6008 = vrot.slane %v5941, 1
    %v6009 = vrot.slane %v5943, 1
    %v6010 = vsel %vm441, %v6008, %v6009
    %v6011 = vrot.slane %v5942, 1
    %v6012 = vrot.slane %v5944, 1
    %v6013 = vsel %vm441, %v6011, %v6012
    %v6014 = vrot.slane %v5949, 1
    %v6015 = vsel %vm441, %v6009, %v6014
    %v6016 = vrot.slane %v5951, 1
    %v6017 = vsel %vm441, %v6012, %v6016
    %v6024 = vsel %vm6001, 0.0, %v6010
    %v6025 = vsel %vm6001, 0.0, %v6013
    %v6026 = vsel %vm6002, 0.0, %v6015
    %v6027 = vsel %vm6002, 0.0, %v6017
    %v6028 = vsel %vm6003, 0.0, %v6014
    %v6029 = vsel %vm6003, 0.0, %v6016
    %v6030 = vpack.c.bf16 %v5991, %v5989
    %v6031 = vpack.c.bf16 %v5992, %v5990
    %v6032 = vpack.c.bf16 %v5943, %v5941
    %v6033 = vpack.c.bf16 %v5944, %v5942
    %v6034 = vpack.c.bf16 %v6026, %v6024
    %v6035 = vpack.c.bf16 %v6027, %v6025
    %v6036 = vpack.c.bf16 %v5993, %v5993
    %v6037 = vpack.c.bf16 %v5994, %v5994
    %v6038 = vpack.c.bf16 %v5945, %v5945
    %v6039 = vpack.c.bf16 %v5946, %v5946
    %v6040 = vpack.c.bf16 %v6028, %v6028
    %v6041 = vpack.c.bf16 %v6029, %v6029
    %v6042 = vld [vmem:[#allocation11] sm:$0xff]
    %v6043 = vld [vmem:[#allocation11 + $0x8] sm:$0xff]
    %v6044 = vld [vmem:[#allocation11 + $0x10] sm:$0xff]
    %v6045 = vld [vmem:[#allocation11 + $0x18] sm:$0xff]
    %v6046 = vld [vmem:[#allocation11 + $0x20] sm:$0xff]
    %v6047 = vld [vmem:[#allocation11 + $0x28] sm:$0xff]
    %v6048 = vld [vmem:[#allocation11 + $0x30] sm:$0xff]
    %v6049 = vld [vmem:[#allocation11 + $0x38] sm:$0xff]
    %v6050 = vld [vmem:[#allocation11 + $0x40] sm:$0xff]
    %v6051 = vld [vmem:[#allocation11 + $0x48] sm:$0xff]
    %v6052 = vld [vmem:[#allocation11 + $0x50] sm:$0xff]
    %v6053 = vld [vmem:[#allocation11 + $0x58] sm:$0xff]
    %v6054 = vld [vmem:[#allocation11 + $0x60] sm:$0xff]
    %v6055 = vld [vmem:[#allocation11 + $0x68] sm:$0xff]
    %v6056 = vld [vmem:[#allocation11 + $0x70] sm:$0xff]
    %v6057 = vld [vmem:[#allocation11 + $0x78] sm:$0xff]
    %v6058 = vld [vmem:[#allocation11 + $0x80] sm:$0xff]
    %v6059 = vld [vmem:[#allocation11 + $0x88] sm:$0xff]
    %v6060 = vld [vmem:[#allocation11 + $0x90] sm:$0xff]
    %v6061 = vld [vmem:[#allocation11 + $0x98] sm:$0xff]
    %v6062 = vld [vmem:[#allocation11 + $0xa0] sm:$0xff]
    %v6063 = vld [vmem:[#allocation11 + $0xa8] sm:$0xff]
    %v6064 = vld [vmem:[#allocation11 + $0xb0] sm:$0xff]
    %v6065 = vld [vmem:[#allocation11 + $0xb8] sm:$0xff]
    %v6066 = vld [vmem:[#allocation11 + $0xc0] sm:$0xff]
    %v6067 = vld [vmem:[#allocation11 + $0xc8] sm:$0xff]
    %v6068 = vld [vmem:[#allocation11 + $0xd0] sm:$0xff]
    %v6069 = vld [vmem:[#allocation11 + $0xd8] sm:$0xff]
    %v6070 = vld [vmem:[#allocation11 + $0xe0] sm:$0xff]
    %v6071 = vld [vmem:[#allocation11 + $0xe8] sm:$0xff]
    %v6072 = vld [vmem:[#allocation11 + $0xf0] sm:$0xff]
    %v6073 = vld [vmem:[#allocation11 + $0xf8] sm:$0xff]
    %v6074 = vld [vmem:[#allocation11 + $0x100] sm:$0xff]
    %v6075 = vld [vmem:[#allocation11 + $0x108] sm:$0xff]
    %v6076 = vld [vmem:[#allocation11 + $0x110] sm:$0xff]
    %v6077 = vld [vmem:[#allocation11 + $0x118] sm:$0xff]
    %v6078 = vld [vmem:[#allocation11 + $0x120] sm:$0xff]
    %v6079 = vld [vmem:[#allocation11 + $0x128] sm:$0xff]
    %v6080 = vld [vmem:[#allocation11 + $0x130] sm:$0xff]
    %v6081 = vld [vmem:[#allocation11 + $0x138] sm:$0xff]
    %v6082 = vld [vmem:[#allocation11 + $0x140] sm:$0xff]
    %v6083 = vld [vmem:[#allocation11 + $0x148] sm:$0xff]
    %v6084 = vld [vmem:[#allocation11 + $0x150] sm:$0xff]
    %v6085 = vld [vmem:[#allocation11 + $0x158] sm:$0xff]
    %v6086 = vld [vmem:[#allocation11 + $0x160] sm:$0xff]
    %v6087 = vld [vmem:[#allocation11 + $0x168] sm:$0xff]
    %v6088 = vld [vmem:[#allocation11 + $0x170] sm:$0xff]
    %v6089 = vld [vmem:[#allocation11 + $0x178] sm:$0xff]
    %v6090 = vld [vmem:[#allocation11 + $0x180] sm:$0xff]
    %v6091 = vld [vmem:[#allocation11 + $0x188] sm:$0xff]
    %v6092 = vld [vmem:[#allocation11 + $0x190] sm:$0xff]
    %v6093 = vld [vmem:[#allocation11 + $0x198] sm:$0xff]
    %v6094 = vld [vmem:[#allocation11 + $0x1a0] sm:$0xff]
    %v6095 = vld [vmem:[#allocation11 + $0x1a8] sm:$0xff]
    %v6096 = vld [vmem:[#allocation11 + $0x1b0] sm:$0xff]
    %v6097 = vld [vmem:[#allocation11 + $0x1b8] sm:$0xff]
    %v6098 = vld [vmem:[#allocation11 + $0x1c0] sm:$0xff]
    %v6099 = vld [vmem:[#allocation11 + $0x1c8] sm:$0xff]
    %v6100 = vld [vmem:[#allocation11 + $0x1d0] sm:$0xff]
    %v6101 = vld [vmem:[#allocation11 + $0x1d8] sm:$0xff]
    %v6102 = vld [vmem:[#allocation11 + $0x1e0] sm:$0xff]
    %v6103 = vld [vmem:[#allocation11 + $0x1e8] sm:$0xff]
    %v6104 = vld [vmem:[#allocation11 + $0x1f0] sm:$0xff]
    %v6105 = vld [vmem:[#allocation11 + $0x1f8] sm:$0xff]
    %v6106 = vld [vmem:[#allocation11 + $0x200] sm:$0xff]
    %v6107 = vld [vmem:[#allocation11 + $0x208] sm:$0xff]
    %v6108 = vld [vmem:[#allocation11 + $0x210] sm:$0xff]
    %v6109 = vld [vmem:[#allocation11 + $0x218] sm:$0xff]
    %v6110 = vld [vmem:[#allocation11 + $0x220] sm:$0xff]
    %v6111 = vld [vmem:[#allocation11 + $0x228] sm:$0xff]
    %v6112 = vld [vmem:[#allocation11 + $0x230] sm:$0xff]
    %v6113 = vld [vmem:[#allocation11 + $0x238] sm:$0xff]
    %v6114 = vld [vmem:[#allocation11 + $0x240] sm:$0xff]
    %v6115 = vld [vmem:[#allocation11 + $0x248] sm:$0xff]
    %v6116 = vld [vmem:[#allocation11 + $0x250] sm:$0xff]
    %v6117 = vld [vmem:[#allocation11 + $0x258] sm:$0xff]
    %v6118 = vld [vmem:[#allocation11 + $0x260] sm:$0xff]
    %v6119 = vld [vmem:[#allocation11 + $0x268] sm:$0xff]
    %v6120 = vld [vmem:[#allocation11 + $0x270] sm:$0xff]
    %v6121 = vld [vmem:[#allocation11 + $0x278] sm:$0xff]
    %v6122 = vld [vmem:[#allocation11 + $0x280] sm:$0xff]
    %v6123 = vld [vmem:[#allocation11 + $0x288] sm:$0xff]
    %v6124 = vld [vmem:[#allocation11 + $0x290] sm:$0xff]
    %v6125 = vld [vmem:[#allocation11 + $0x298] sm:$0xff]
    %v6126 = vld [vmem:[#allocation11 + $0x2a0] sm:$0xff]
    %v6127 = vld [vmem:[#allocation11 + $0x2a8] sm:$0xff]
    %v6128 = vld [vmem:[#allocation11 + $0x2b0] sm:$0xff]
    %v6129 = vld [vmem:[#allocation11 + $0x2b8] sm:$0xff]
    %v6130 = vld [vmem:[#allocation11 + $0x2c0] sm:$0xff]
    %v6131 = vld [vmem:[#allocation11 + $0x2c8] sm:$0xff]
    %v6132 = vld [vmem:[#allocation11 + $0x2d0] sm:$0xff]
    %v6133 = vld [vmem:[#allocation11 + $0x2d8] sm:$0xff]
    %v6134 = vld [vmem:[#allocation11 + $0x2e0] sm:$0xff]
    %v6135 = vld [vmem:[#allocation11 + $0x2e8] sm:$0xff]
    %v6136 = vld [vmem:[#allocation11 + $0x2f0] sm:$0xff]
    %v6137 = vld [vmem:[#allocation11 + $0x2f8] sm:$0xff]
    %v6138 = vld [vmem:[%s12] sm:$0x3]
    %v6140 = vlaneseq
    %v6141 = vshrl.u32 %v6140, 7
    %v6142 = vsub.s32 0, %v6141
    %v6143 = vrot.slane %v6138, %v6142
    %v6144 = vlaneseq
    %v6145 = vshrl.u32 %v6144, 7
    %v6146 = vsub.s32 1, %v6145
    %v6147 = vrot.slane %v6138, %v6146
    %v6246 = vunpack.c.l.b16 %v6042
    %v6247 = vunpack.c.h.b16 %v6042
    %v6248 = vunpack.c.l.b16 %v6043
    %v6249 = vunpack.c.h.b16 %v6043
    %v6250 = vunpack.c.l.b16 %v6044
    %v6251 = vunpack.c.h.b16 %v6044
    %v6252 = vunpack.c.l.b16 %v6045
    %v6253 = vunpack.c.h.b16 %v6045
    %v6254 = vunpack.c.l.b16 %v6046
    %v6255 = vunpack.c.h.b16 %v6046
    %v6256 = vunpack.c.l.b16 %v6047
    %v6257 = vunpack.c.h.b16 %v6047
    %v6258 = vunpack.c.l.b16 %v6048
    %v6259 = vunpack.c.h.b16 %v6048
    %v6260 = vunpack.c.l.b16 %v6049
    %v6261 = vunpack.c.h.b16 %v6049
    %v6262 = vunpack.c.l.b16 %v6050
    %v6263 = vunpack.c.h.b16 %v6050
    %v6264 = vunpack.c.l.b16 %v6051
    %v6265 = vunpack.c.h.b16 %v6051
    %v6266 = vunpack.c.l.b16 %v6052
    %v6267 = vunpack.c.h.b16 %v6052
    %v6268 = vunpack.c.l.b16 %v6053
    %v6269 = vunpack.c.h.b16 %v6053
    %v6270 = vunpack.c.l.b16 %v6054
    %v6271 = vunpack.c.h.b16 %v6054
    %v6272 = vunpack.c.l.b16 %v6055
    %v6273 = vunpack.c.h.b16 %v6055
    %v6274 = vunpack.c.l.b16 %v6056
    %v6275 = vunpack.c.h.b16 %v6056
    %v6276 = vunpack.c.l.b16 %v6057
    %v6277 = vunpack.c.h.b16 %v6057
    %v6278 = vunpack.c.l.b16 %v6058
    %v6279 = vunpack.c.h.b16 %v6058
    %v6280 = vunpack.c.l.b16 %v6059
    %v6281 = vunpack.c.h.b16 %v6059
    %v6282 = vunpack.c.l.b16 %v6060
    %v6283 = vunpack.c.h.b16 %v6060
    %v6284 = vunpack.c.l.b16 %v6061
    %v6285 = vunpack.c.h.b16 %v6061
    %v6286 = vunpack.c.l.b16 %v6062
    %v6287 = vunpack.c.h.b16 %v6062
    %v6288 = vunpack.c.l.b16 %v6063
    %v6289 = vunpack.c.h.b16 %v6063
    %v6290 = vunpack.c.l.b16 %v6064
    %v6291 = vunpack.c.h.b16 %v6064
    %v6292 = vunpack.c.l.b16 %v6065
    %v6293 = vunpack.c.h.b16 %v6065
    %v6294 = vunpack.c.l.b16 %v6066
    %v6295 = vunpack.c.h.b16 %v6066
    %v6296 = vunpack.c.l.b16 %v6067
    %v6297 = vunpack.c.h.b16 %v6067
    %v6298 = vunpack.c.l.b16 %v6068
    %v6299 = vunpack.c.h.b16 %v6068
    %v6300 = vunpack.c.l.b16 %v6069
    %v6301 = vunpack.c.h.b16 %v6069
    %v6302 = vunpack.c.l.b16 %v6070
    %v6303 = vunpack.c.h.b16 %v6070
    %v6304 = vunpack.c.l.b16 %v6071
    %v6305 = vunpack.c.h.b16 %v6071
    %v6306 = vunpack.c.l.b16 %v6072
    %v6307 = vunpack.c.h.b16 %v6072
    %v6308 = vunpack.c.l.b16 %v6073
    %v6309 = vunpack.c.h.b16 %v6073
    %v6310 = vunpack.c.l.b16 %v6074
    %v6311 = vunpack.c.h.b16 %v6074
    %v6312 = vunpack.c.l.b16 %v6075
    %v6313 = vunpack.c.h.b16 %v6075
    %v6314 = vunpack.c.l.b16 %v6076
    %v6315 = vunpack.c.h.b16 %v6076
    %v6316 = vunpack.c.l.b16 %v6077
    %v6317 = vunpack.c.h.b16 %v6077
    %v6318 = vunpack.c.l.b16 %v6078
    %v6319 = vunpack.c.h.b16 %v6078
    %v6320 = vunpack.c.l.b16 %v6079
    %v6321 = vunpack.c.h.b16 %v6079
    %v6322 = vunpack.c.l.b16 %v6080
    %v6323 = vunpack.c.h.b16 %v6080
    %v6324 = vunpack.c.l.b16 %v6081
    %v6325 = vunpack.c.h.b16 %v6081
    %v6326 = vunpack.c.l.b16 %v6082
    %v6327 = vunpack.c.h.b16 %v6082
    %v6328 = vunpack.c.l.b16 %v6083
    %v6329 = vunpack.c.h.b16 %v6083
    %v6330 = vunpack.c.l.b16 %v6084
    %v6331 = vunpack.c.h.b16 %v6084
    %v6332 = vunpack.c.l.b16 %v6085
    %v6333 = vunpack.c.h.b16 %v6085
    %v6334 = vunpack.c.l.b16 %v6086
    %v6335 = vunpack.c.h.b16 %v6086
    %v6336 = vunpack.c.l.b16 %v6087
    %v6337 = vunpack.c.h.b16 %v6087
    %v6338 = vunpack.c.l.b16 %v6088
    %v6339 = vunpack.c.h.b16 %v6088
    %v6340 = vunpack.c.l.b16 %v6089
    %v6341 = vunpack.c.h.b16 %v6089
    %v6342 = vunpack.c.l.b16 %v6090
    %v6343 = vunpack.c.h.b16 %v6090
    %v6344 = vunpack.c.l.b16 %v6091
    %v6345 = vunpack.c.h.b16 %v6091
    %v6346 = vunpack.c.l.b16 %v6092
    %v6347 = vunpack.c.h.b16 %v6092
    %v6348 = vunpack.c.l.b16 %v6093
    %v6349 = vunpack.c.h.b16 %v6093
    %v6350 = vunpack.c.l.b16 %v6094
    %v6351 = vunpack.c.h.b16 %v6094
    %v6352 = vunpack.c.l.b16 %v6095
    %v6353 = vunpack.c.h.b16 %v6095
    %v6354 = vunpack.c.l.b16 %v6096
    %v6355 = vunpack.c.h.b16 %v6096
    %v6356 = vunpack.c.l.b16 %v6097
    %v6357 = vunpack.c.h.b16 %v6097
    %v6358 = vunpack.c.l.b16 %v6098
    %v6359 = vunpack.c.h.b16 %v6098
    %v6360 = vunpack.c.l.b16 %v6099
    %v6361 = vunpack.c.h.b16 %v6099
    %v6362 = vunpack.c.l.b16 %v6100
    %v6363 = vunpack.c.h.b16 %v6100
    %v6364 = vunpack.c.l.b16 %v6101
    %v6365 = vunpack.c.h.b16 %v6101
    %v6366 = vunpack.c.l.b16 %v6102
    %v6367 = vunpack.c.h.b16 %v6102
    %v6368 = vunpack.c.l.b16 %v6103
    %v6369 = vunpack.c.h.b16 %v6103
    %v6370 = vunpack.c.l.b16 %v6104
    %v6371 = vunpack.c.h.b16 %v6104
    %v6372 = vunpack.c.l.b16 %v6105
    %v6373 = vunpack.c.h.b16 %v6105
    %v6374 = vunpack.c.l.b16 %v6106
    %v6375 = vunpack.c.h.b16 %v6106
    %v6376 = vunpack.c.l.b16 %v6107
    %v6377 = vunpack.c.h.b16 %v6107
    %v6378 = vunpack.c.l.b16 %v6108
    %v6379 = vunpack.c.h.b16 %v6108
    %v6380 = vunpack.c.l.b16 %v6109
    %v6381 = vunpack.c.h.b16 %v6109
    %v6382 = vunpack.c.l.b16 %v6110
    %v6383 = vunpack.c.h.b16 %v6110
    %v6384 = vunpack.c.l.b16 %v6111
    %v6385 = vunpack.c.h.b16 %v6111
    %v6386 = vunpack.c.l.b16 %v6112
    %v6387 = vunpack.c.h.b16 %v6112
    %v6388 = vunpack.c.l.b16 %v6113
    %v6389 = vunpack.c.h.b16 %v6113
    %v6390 = vunpack.c.l.b16 %v6114
    %v6391 = vunpack.c.h.b16 %v6114
    %v6392 = vunpack.c.l.b16 %v6115
    %v6393 = vunpack.c.h.b16 %v6115
    %v6394 = vunpack.c.l.b16 %v6116
    %v6395 = vunpack.c.h.b16 %v6116
    %v6396 = vunpack.c.l.b16 %v6117
    %v6397 = vunpack.c.h.b16 %v6117
    %v6398 = vunpack.c.l.b16 %v6118
    %v6399 = vunpack.c.h.b16 %v6118
    %v6400 = vunpack.c.l.b16 %v6119
    %v6401 = vunpack.c.h.b16 %v6119
    %v6402 = vunpack.c.l.b16 %v6120
    %v6403 = vunpack.c.h.b16 %v6120
    %v6404 = vunpack.c.l.b16 %v6121
    %v6405 = vunpack.c.h.b16 %v6121
    %v6406 = vunpack.c.l.b16 %v6122
    %v6407 = vunpack.c.h.b16 %v6122
    %v6408 = vunpack.c.l.b16 %v6123
    %v6409 = vunpack.c.h.b16 %v6123
    %v6410 = vunpack.c.l.b16 %v6124
    %v6411 = vunpack.c.h.b16 %v6124
    %v6412 = vunpack.c.l.b16 %v6125
    %v6413 = vunpack.c.h.b16 %v6125
    %v6414 = vunpack.c.l.b16 %v6126
    %v6415 = vunpack.c.h.b16 %v6126
    %v6416 = vunpack.c.l.b16 %v6127
    %v6417 = vunpack.c.h.b16 %v6127
    %v6418 = vunpack.c.l.b16 %v6128
    %v6419 = vunpack.c.h.b16 %v6128
    %v6420 = vunpack.c.l.b16 %v6129
    %v6421 = vunpack.c.h.b16 %v6129
    %v6422 = vunpack.c.l.b16 %v6130
    %v6423 = vunpack.c.h.b16 %v6130
    %v6424 = vunpack.c.l.b16 %v6131
    %v6425 = vunpack.c.h.b16 %v6131
    %v6426 = vunpack.c.l.b16 %v6132
    %v6427 = vunpack.c.h.b16 %v6132
    %v6428 = vunpack.c.l.b16 %v6133
    %v6429 = vunpack.c.h.b16 %v6133
    %v6430 = vunpack.c.l.b16 %v6134
    %v6431 = vunpack.c.h.b16 %v6134
    %v6432 = vunpack.c.l.b16 %v6135
    %v6433 = vunpack.c.h.b16 %v6135
    %v6434 = vunpack.c.l.b16 %v6136
    %v6435 = vunpack.c.h.b16 %v6136
    %v6436 = vunpack.c.l.b16 %v6137
    %v6437 = vunpack.c.h.b16 %v6137
    %v6438 = vpack.c.b16 %v6248, %v6246
    %v6439 = vpack.c.b16 %v6249, %v6247
    %v6440 = vpack.c.b16 %v6252, %v6250
    %v6441 = vpack.c.b16 %v6253, %v6251
    %v6442 = vpack.c.b16 %v6256, %v6254
    %v6443 = vpack.c.b16 %v6257, %v6255
    %v6444 = vpack.c.b16 %v6260, %v6258
    %v6445 = vpack.c.b16 %v6261, %v6259
    %v6446 = vpack.c.b16 %v6264, %v6262
    %v6447 = vpack.c.b16 %v6265, %v6263
    %v6448 = vpack.c.b16 %v6268, %v6266
    %v6449 = vpack.c.b16 %v6269, %v6267
    %v6450 = vpack.c.b16 %v6272, %v6270
    %v6451 = vpack.c.b16 %v6273, %v6271
    %v6452 = vpack.c.b16 %v6276, %v6274
    %v6453 = vpack.c.b16 %v6277, %v6275
    %v6454 = vpack.c.b16 %v6280, %v6278
    %v6455 = vpack.c.b16 %v6281, %v6279
    %v6456 = vpack.c.b16 %v6284, %v6282
    %v6457 = vpack.c.b16 %v6285, %v6283
    %v6458 = vpack.c.b16 %v6288, %v6286
    %v6459 = vpack.c.b16 %v6289, %v6287
    %v6460 = vpack.c.b16 %v6292, %v6290
    %v6461 = vpack.c.b16 %v6293, %v6291
    %v6462 = vpack.c.b16 %v6296, %v6294
    %v6463 = vpack.c.b16 %v6297, %v6295
    %v6464 = vpack.c.b16 %v6300, %v6298
    %v6465 = vpack.c.b16 %v6301, %v6299
    %v6466 = vpack.c.b16 %v6304, %v6302
    %v6467 = vpack.c.b16 %v6305, %v6303
    %v6468 = vpack.c.b16 %v6308, %v6306
    %v6469 = vpack.c.b16 %v6309, %v6307
    %v6470 = vpack.c.b16 %v6312, %v6310
    %v6471 = vpack.c.b16 %v6313, %v6311
    %v6472 = vpack.c.b16 %v6316, %v6314
    %v6473 = vpack.c.b16 %v6317, %v6315
    %v6474 = vpack.c.b16 %v6320, %v6318
    %v6475 = vpack.c.b16 %v6321, %v6319
    %v6476 = vpack.c.b16 %v6324, %v6322
    %v6477 = vpack.c.b16 %v6325, %v6323
    %v6478 = vpack.c.b16 %v6328, %v6326
    %v6479 = vpack.c.b16 %v6329, %v6327
    %v6480 = vpack.c.b16 %v6332, %v6330
    %v6481 = vpack.c.b16 %v6333, %v6331
    %v6482 = vpack.c.b16 %v6336, %v6334
    %v6483 = vpack.c.b16 %v6337, %v6335
    %v6484 = vpack.c.b16 %v6340, %v6338
    %v6485 = vpack.c.b16 %v6341, %v6339
    %v6486 = vpack.c.b16 %v6344, %v6342
    %v6487 = vpack.c.b16 %v6345, %v6343
    %v6488 = vpack.c.b16 %v6348, %v6346
    %v6489 = vpack.c.b16 %v6349, %v6347
    %v6490 = vpack.c.b16 %v6352, %v6350
    %v6491 = vpack.c.b16 %v6353, %v6351
    %v6492 = vpack.c.b16 %v6356, %v6354
    %v6493 = vpack.c.b16 %v6357, %v6355
    %v6494 = vpack.c.b16 %v6360, %v6358
    %v6495 = vpack.c.b16 %v6361, %v6359
    %v6496 = vpack.c.b16 %v6364, %v6362
    %v6497 = vpack.c.b16 %v6365, %v6363
    %v6498 = vpack.c.b16 %v6368, %v6366
    %v6499 = vpack.c.b16 %v6369, %v6367
    %v6500 = vpack.c.b16 %v6372, %v6370
    %v6501 = vpack.c.b16 %v6373, %v6371
    %v6502 = vpack.c.b16 %v6376, %v6374
    %v6503 = vpack.c.b16 %v6377, %v6375
    %v6504 = vpack.c.b16 %v6380, %v6378
    %v6505 = vpack.c.b16 %v6381, %v6379
    %v6506 = vpack.c.b16 %v6384, %v6382
    %v6507 = vpack.c.b16 %v6385, %v6383
    %v6508 = vpack.c.b16 %v6388, %v6386
    %v6509 = vpack.c.b16 %v6389, %v6387
    %v6510 = vpack.c.b16 %v6392, %v6390
    %v6511 = vpack.c.b16 %v6393, %v6391
    %v6512 = vpack.c.b16 %v6396, %v6394
    %v6513 = vpack.c.b16 %v6397, %v6395
    %v6514 = vpack.c.b16 %v6400, %v6398
    %v6515 = vpack.c.b16 %v6401, %v6399
    %v6516 = vpack.c.b16 %v6404, %v6402
    %v6517 = vpack.c.b16 %v6405, %v6403
    %v6518 = vpack.c.b16 %v6408, %v6406
    %v6519 = vpack.c.b16 %v6409, %v6407
    %v6520 = vpack.c.b16 %v6412, %v6410
    %v6521 = vpack.c.b16 %v6413, %v6411
    %v6522 = vpack.c.b16 %v6416, %v6414
    %v6523 = vpack.c.b16 %v6417, %v6415
    %v6524 = vpack.c.b16 %v6420, %v6418
    %v6525 = vpack.c.b16 %v6421, %v6419
    %v6526 = vpack.c.b16 %v6424, %v6422
    %v6527 = vpack.c.b16 %v6425, %v6423
    %v6528 = vpack.c.b16 %v6428, %v6426
    %v6529 = vpack.c.b16 %v6429, %v6427
    %v6530 = vpack.c.b16 %v6432, %v6430
    %v6531 = vpack.c.b16 %v6433, %v6431
    %v6532 = vpack.c.b16 %v6436, %v6434
    %v6533 = vpack.c.b16 %v6437, %v6435
    %6630 = vmatprep.subr.bf16.mxu0 %v6439
    %6631 = vmatpush1.bf16.msra.mxu0 %v6438
    %6632 = vmatprep.subr.bf16.mxu0 %v6441
    %6633 = vmatpush1.bf16.msra.mxu0 %v6440
    %6634 = vmatprep.subr.bf16.mxu0 %v6443
    %6635 = vmatpush1.bf16.msra.mxu0 %v6442
    %6636 = vmatprep.subr.bf16.mxu0 %v6445
    %6637 = vmatpush1.bf16.msra.mxu0 %v6444
    %6638 = vmatprep.subr.bf16.mxu0 %v6447
    %6639 = vmatpush1.bf16.msra.mxu0 %v6446
    %6640 = vmatprep.subr.bf16.mxu0 %v6449
    %6641 = vmatpush1.bf16.msra.mxu0 %v6448
    %6642 = vmatprep.subr.bf16.mxu0 %v6451
    %6643 = vmatpush1.bf16.msra.mxu0 %v6450
    %6644 = vmatprep.subr.bf16.mxu0 %v6453
    %6645 = vmatpush1.bf16.msra.mxu0 %v6452
    %6646 = vmatprep.subr.bf16.mxu0 %v6455
    %6647 = vmatpush1.bf16.msra.mxu0 %v6454
    %6648 = vmatprep.subr.bf16.mxu0 %v6457
    %6649 = vmatpush1.bf16.msra.mxu0 %v6456
    %6650 = vmatprep.subr.bf16.mxu0 %v6459
    %6651 = vmatpush1.bf16.msra.mxu0 %v6458
    %6652 = vmatprep.subr.bf16.mxu0 %v6461
    %6653 = vmatpush1.bf16.msra.mxu0 %v6460
    %6654 = vmatprep.subr.bf16.mxu0 %v6463
    %6655 = vmatpush1.bf16.msra.mxu0 %v6462
    %6656 = vmatprep.subr.bf16.mxu0 %v6465
    %6657 = vmatpush1.bf16.msra.mxu0 %v6464
    %6658 = vmatprep.subr.bf16.mxu0 %v6467
    %6659 = vmatpush1.bf16.msra.mxu0 %v6466
    %6660 = vmatprep.subr.bf16.mxu0 %v6469
    %6661 = vmatpush1.bf16.msra.mxu0 %v6468
    %6662 = vmatprep.mubr.bf16.mxu0 %v6031
    %6663 = vmatmul.mubr.bf16.gmra.mrb[0].mxu0 %v6030
    %v6664 = vpop.f32.mrb[0].mxu0
    %v6665 = vadd.f32 %v6143, %v6664
    %v6666 = vpop.f32.mrb[0].mxu0
    %v6667 = vadd.f32 %v6147, %v6666
    %v6668 = vpop.f32.mrb[0].mxu0
    %v6669 = vadd.f32 %v6143, %v6668
    %v6670 = vpop.f32.mrb[0].mxu0
    %v6671 = vadd.f32 %v6147, %v6670
    %6672 = vmatprep.mubr.bf16.mxu0 %v6037
    %6673 = vmatmul.mubr.bf16.gmra.mrb[0].mxu0 %v6036
    %v6674 = vpop.f32.mrb[0].mxu0
    %v6675 = vadd.f32 %v6143, %v6674
    %v6676 = vpop.f32.mrb[0].mxu0
    %v6677 = vadd.f32 %v6147, %v6676
    %v6678 = vpop.f32.mrb[0].mxu0
    %v6679 = vpop.f32.mrb[0].mxu0
    %6680 = vdwg.mxu0
    %6681 = vmatprep.subr.bf16.mxu0 %v6471
    %6682 = vmatpush1.bf16.msra.mxu0 %v6470
    %6683 = vmatprep.subr.bf16.mxu0 %v6473
    %6684 = vmatpush1.bf16.msra.mxu0 %v6472
    %6685 = vmatprep.subr.bf16.mxu0 %v6475
    %6686 = vmatpush1.bf16.msra.mxu0 %v6474
    %6687 = vmatprep.subr.bf16.mxu0 %v6477
    %6688 = vmatpush1.bf16.msra.mxu0 %v6476
    %6689 = vmatprep.subr.bf16.mxu0 %v6479
    %6690 = vmatpush1.bf16.msra.mxu0 %v6478
    %6691 = vmatprep.subr.bf16.mxu0 %v6481
    %6692 = vmatpush1.bf16.msra.mxu0 %v6480
    %6693 = vmatprep.subr.bf16.mxu0 %v6483
    %6694 = vmatpush1.bf16.msra.mxu0 %v6482
    %6695 = vmatprep.subr.bf16.mxu0 %v6485
    %6696 = vmatpush1.bf16.msra.mxu0 %v6484
    %6697 = vmatprep.subr.bf16.mxu0 %v6487
    %6698 = vmatpush1.bf16.msra.mxu0 %v6486
    %6699 = vmatprep.subr.bf16.mxu0 %v6489
    %6700 = vmatpush1.bf16.msra.mxu0 %v6488
    %6701 = vmatprep.subr.bf16.mxu0 %v6491
    %6702 = vmatpush1.bf16.msra.mxu0 %v6490
    %6703 = vmatprep.subr.bf16.mxu0 %v6493
    %6704 = vmatpush1.bf16.msra.mxu0 %v6492
    %6705 = vmatprep.subr.bf16.mxu0 %v6495
    %6706 = vmatpush1.bf16.msra.mxu0 %v6494
    %6707 = vmatprep.subr.bf16.mxu0 %v6497
    %6708 = vmatpush1.bf16.msra.mxu0 %v6496
    %6709 = vmatprep.subr.bf16.mxu0 %v6499
    %6710 = vmatpush1.bf16.msra.mxu0 %v6498
    %6711 = vmatprep.subr.bf16.mxu0 %v6501
    %6712 = vmatpush1.bf16.msra.mxu0 %v6500
    %6713 = vmatprep.mubr.bf16.mxu0 %v6033
    %6714 = vmatmul.mubr.bf16.gmra.mrb[0].mxu0 %v6032
    %v6715 = vpop.f32.mrb[0].mxu0
    %v6716 = vadd.f32 %v6665, %v6715
    %v6717 = vpop.f32.mrb[0].mxu0
    %v6718 = vadd.f32 %v6667, %v6717
    %v6719 = vpop.f32.mrb[0].mxu0
    %v6720 = vadd.f32 %v6669, %v6719
    %v6721 = vpop.f32.mrb[0].mxu0
    %v6722 = vadd.f32 %v6671, %v6721
    %6723 = vmatprep.mubr.bf16.mxu0 %v6039
    %6724 = vmatmul.mubr.bf16.gmra.mrb[0].mxu0 %v6038
    %v6725 = vpop.f32.mrb[0].mxu0
    %v6726 = vadd.f32 %v6675, %v6725
    %v6727 = vpop.f32.mrb[0].mxu0
    %v6728 = vadd.f32 %v6677, %v6727
    %v6729 = vpop.f32.mrb[0].mxu0
    %v6730 = vpop.f32.mrb[0].mxu0
    %6731 = vdwg.mxu0
    %6732 = vmatprep.subr.bf16.mxu0 %v6503
    %6733 = vmatpush1.bf16.msra.mxu0 %v6502
    %6734 = vmatprep.subr.bf16.mxu0 %v6505
    %6735 = vmatpush1.bf16.msra.mxu0 %v6504
    %6736 = vmatprep.subr.bf16.mxu0 %v6507
    %6737 = vmatpush1.bf16.msra.mxu0 %v6506
    %6738 = vmatprep.subr.bf16.mxu0 %v6509
    %6739 = vmatpush1.bf16.msra.mxu0 %v6508
    %6740 = vmatprep.subr.bf16.mxu0 %v6511
    %6741 = vmatpush1.bf16.msra.mxu0 %v6510
    %6742 = vmatprep.subr.bf16.mxu0 %v6513
    %6743 = vmatpush1.bf16.msra.mxu0 %v6512
    %6744 = vmatprep.subr.bf16.mxu0 %v6515
    %6745 = vmatpush1.bf16.msra.mxu0 %v6514
    %6746 = vmatprep.subr.bf16.mxu0 %v6517
    %6747 = vmatpush1.bf16.msra.mxu0 %v6516
    %6748 = vmatprep.subr.bf16.mxu0 %v6519
    %6749 = vmatpush1.bf16.msra.mxu0 %v6518
    %6750 = vmatprep.subr.bf16.mxu0 %v6521
    %6751 = vmatpush1.bf16.msra.mxu0 %v6520
    %6752 = vmatprep.subr.bf16.mxu0 %v6523
    %6753 = vmatpush1.bf16.msra.mxu0 %v6522
    %6754 = vmatprep.subr.bf16.mxu0 %v6525
    %6755 = vmatpush1.bf16.msra.mxu0 %v6524
    %6756 = vmatprep.subr.bf16.mxu0 %v6527
    %6757 = vmatpush1.bf16.msra.mxu0 %v6526
    %6758 = vmatprep.subr.bf16.mxu0 %v6529
    %6759 = vmatpush1.bf16.msra.mxu0 %v6528
    %6760 = vmatprep.subr.bf16.mxu0 %v6531
    %6761 = vmatpush1.bf16.msra.mxu0 %v6530
    %6762 = vmatprep.subr.bf16.mxu0 %v6533
    %6763 = vmatpush1.bf16.msra.mxu0 %v6532
    %6764 = vmatprep.mubr.bf16.mxu0 %v6035
    %6765 = vmatmul.mubr.bf16.gmra.mrb[0].mxu0 %v6034
    %v6766 = vpop.f32.mrb[0].mxu0
    %v6767 = vadd.f32 %v6716, %v6766
    %v6768 = vpop.f32.mrb[0].mxu0
    %v6769 = vadd.f32 %v6718, %v6768
    %v6770 = vpop.f32.mrb[0].mxu0
    %v6771 = vadd.f32 %v6720, %v6770
    %v6772 = vpop.f32.mrb[0].mxu0
    %v6773 = vadd.f32 %v6722, %v6772
    %6774 = vmatprep.mubr.bf16.mxu0 %v6041
    %6775 = vmatmul.mubr.bf16.gmra.mrb[0].mxu0 %v6040
    %v6776 = vpop.f32.mrb[0].mxu0
    %v6777 = vadd.f32 %v6726, %v6776
    %v6778 = vpop.f32.mrb[0].mxu0
    %v6779 = vadd.f32 %v6728, %v6778
    %v6780 = vpop.f32.mrb[0].mxu0
    %v6781 = vpop.f32.mrb[0].mxu0
    %6782 = vdwg.mxu0
    %v6783 = vmax.f32 %v6767, 0.0
    %v6784 = vmax.f32 %v6769, 0.0
    %v6785 = vmax.f32 %v6771, 0.0
    %v6786 = vmax.f32 %v6773, 0.0
    %v6787 = vmax.f32 %v6777, 0.0
    %v6788 = vmax.f32 %v6779, 0.0
    %v6789 = vld [vmem:[%s15] sm:$0xff]
    %v6790 = vld [vmem:[%s15 + $0x8] sm:$0xff]
    %v6791 = vld [vmem:[%s15 + $0x10] sm:$0xff]
    %v6792 = vld [vmem:[%s15 + $0x18] sm:$0xff]
    %v6793 = vld [vmem:[%s15 + $0x20] sm:$0xff]
    %v6794 = vld [vmem:[%s15 + $0x28] sm:$0xff]
    %v6795 = vld [vmem:[%s15 + $0x30] sm:$0xff]
    %v6796 = vld [vmem:[%s15 + $0x38] sm:$0xff]
    %v6797 = vld [vmem:[%s15 + $0x40] sm:$0xff]
    %v6798 = vld [vmem:[%s15 + $0x48] sm:$0xff]
    %v6799 = vld [vmem:[%s15 + $0x50] sm:$0xff]
    %v6800 = vld [vmem:[%s15 + $0x58] sm:$0xff]
    %v6801 = vld [vmem:[%s15 + $0x60] sm:$0xff]
    %v6802 = vld [vmem:[%s15 + $0x68] sm:$0xff]
    %v6803 = vld [vmem:[%s15 + $0x70] sm:$0xff]
    %v6804 = vld [vmem:[%s15 + $0x78] sm:$0xff]
    %v6805 = vld [vmem:[%s15 + $0x80] sm:$0xff]
    %v6806 = vld [vmem:[%s15 + $0x88] sm:$0xff]
    %v6807 = vld [vmem:[%s15 + $0x90] sm:$0xff]
    %v6808 = vld [vmem:[%s15 + $0x98] sm:$0xff]
    %v6809 = vld [vmem:[%s15 + $0xa0] sm:$0xff]
    %v6810 = vld [vmem:[%s15 + $0xa8] sm:$0xff]
    %v6811 = vld [vmem:[%s15 + $0xb0] sm:$0xff]
    %v6812 = vld [vmem:[%s15 + $0xb8] sm:$0xff]
    %v6813 = vld [vmem:[%s15 + $0xc0] sm:$0xff]
    %v6814 = vld [vmem:[%s15 + $0xc8] sm:$0xff]
    %v6815 = vld [vmem:[%s15 + $0xd0] sm:$0xff]
    %v6816 = vld [vmem:[%s15 + $0xd8] sm:$0xff]
    %v6817 = vld [vmem:[%s15 + $0xe0] sm:$0xff]
    %v6818 = vld [vmem:[%s15 + $0xe8] sm:$0xff]
    %v6819 = vld [vmem:[%s15 + $0xf0] sm:$0xff]
    %v6820 = vld [vmem:[%s15 + $0xf8] sm:$0xff]
    %6821 = vmatprep.subr.mxu0 0.0
    %6822 = vmatpush1.msra.mxu0 %v6789
    %6823 = vmatprep.subr.mxu0 0.0
    %6824 = vmatpush1.msra.mxu0 %v6790
    %6825 = vmatprep.subr.mxu0 0.0
    %6826 = vmatpush1.msra.mxu0 %v6791
    %6827 = vmatprep.subr.mxu0 0.0
    %6828 = vmatpush1.msra.mxu0 %v6792
    %6829 = vmatprep.subr.mxu0 0.0
    %6830 = vmatpush1.msra.mxu0 %v6793
    %6831 = vmatprep.subr.mxu0 0.0
    %6832 = vmatpush1.msra.mxu0 %v6794
    %6833 = vmatprep.subr.mxu0 0.0
    %6834 = vmatpush1.msra.mxu0 %v6795
    %6835 = vmatprep.subr.mxu0 0.0
    %6836 = vmatpush1.msra.mxu0 %v6796
    %6837 = vmatprep.subr.mxu0 0.0
    %6838 = vmatpush1.msra.mxu0 %v6797
    %6839 = vmatprep.subr.mxu0 0.0
    %6840 = vmatpush1.msra.mxu0 %v6798
    %6841 = vmatprep.subr.mxu0 0.0
    %6842 = vmatpush1.msra.mxu0 %v6799
    %6843 = vmatprep.subr.mxu0 0.0
    %6844 = vmatpush1.msra.mxu0 %v6800
    %6845 = vmatprep.subr.mxu0 0.0
    %6846 = vmatpush1.msra.mxu0 %v6801
    %6847 = vmatprep.subr.mxu0 0.0
    %6848 = vmatpush1.msra.mxu0 %v6802
    %6849 = vmatprep.subr.mxu0 0.0
    %6850 = vmatpush1.msra.mxu0 %v6803
    %6851 = vmatprep.subr.mxu0 0.0
    %6852 = vmatpush1.msra.mxu0 %v6804
    %6853 = vmatprep.subr.mxu0 0.0
    %6854 = vmatpush1.msra.mxu0 %v6805
    %6855 = vmatprep.subr.mxu0 0.0
    %6856 = vmatpush1.msra.mxu0 %v6806
    %6857 = vmatprep.subr.mxu0 0.0
    %6858 = vmatpush1.msra.mxu0 %v6807
    %6859 = vmatprep.subr.mxu0 0.0
    %6860 = vmatpush1.msra.mxu0 %v6808
    %6861 = vmatprep.subr.mxu0 0.0
    %6862 = vmatpush1.msra.mxu0 %v6809
    %6863 = vmatprep.subr.mxu0 0.0
    %6864 = vmatpush1.msra.mxu0 %v6810
    %6865 = vmatprep.subr.mxu0 0.0
    %6866 = vmatpush1.msra.mxu0 %v6811
    %6867 = vmatprep.subr.mxu0 0.0
    %6868 = vmatpush1.msra.mxu0 %v6812
    %6869 = vmatprep.subr.mxu0 0.0
    %6870 = vmatpush1.msra.mxu0 %v6813
    %6871 = vmatprep.subr.mxu0 0.0
    %6872 = vmatpush1.msra.mxu0 %v6814
    %6873 = vmatprep.subr.mxu0 0.0
    %6874 = vmatpush1.msra.mxu0 %v6815
    %6875 = vmatprep.subr.mxu0 0.0
    %6876 = vmatpush1.msra.mxu0 %v6816
    %6877 = vmatprep.subr.mxu0 0.0
    %6878 = vmatpush1.msra.mxu0 %v6817
    %6879 = vmatprep.subr.mxu0 0.0
    %6880 = vmatpush1.msra.mxu0 %v6818
    %6881 = vmatprep.subr.mxu0 0.0
    %6882 = vmatpush1.msra.mxu0 %v6819
    %6883 = vmatprep.subr.mxu0 0.0
    %6884 = vmatpush1.msra.mxu0 %v6820
    %6885 = vmatprep.mubr.f32.mxu0 %v6784
    %6886 = vmatmul.mubr.f32.gmra.mrb[0].mxu0 %v6783
    %v6887 = vpop.f32.mrb[0].mxu0
    %v6888 = vadd.f32 0.0, %v6887
    %v6889 = vpop.f32.mrb[0].mxu0
    %6890 = vmatprep.mubr.f32.mxu0 %v6786
    %6891 = vmatmul.mubr.f32.gmra.mrb[0].mxu0 %v6785
    %v6892 = vpop.f32.mrb[0].mxu0
    %v6893 = vadd.f32 0.0, %v6892
    %v6894 = vpop.f32.mrb[0].mxu0
    %6895 = vmatprep.mubr.f32.mxu0 %v6788
    %6896 = vmatmul.mubr.f32.gmra.mrb[0].mxu0 %v6787
    %v6897 = vpop.f32.mrb[0].mxu0
    %v6898 = vadd.f32 0.0, %v6897
    %v6899 = vpop.f32.mrb[0].mxu0
    %6900 = vdwg.mxu0
    %v6901 = vld [vmem:[%s16] sm:$0xff]
    %v6902 = vld [vmem:[%s17] sm:$0xff]
    %6904 = vset.pattern.permute.xlu0 0
    %6905 = vperm.xlu0 %6904, %v6902
    %v6906 = vpop.permute.xlu0 %6905
    %vm6908 = vcmask 187392
    %v6910 = vsel %vm6908, %v6901, 0
    %v6913 = vsel %vm441, %v6898, 0
    %6915 = vmatprep.subr.mxu0 0.0
    %6916 = vmatpush1.msra.mxu0 %v6888
    %6917 = vmatprep.subr.mxu0 0.0
    %6918 = vmatpush1.msra.mxu0 %v6893
    %6919 = vmatprep.subr.mxu0 0.0
    %6920 = vmatpush1.msra.mxu0 %v6913
    %6921 = vmatprep.subr.mxu0 0.0
    %6922 = vmatpush1.msra.mxu0 0.0
    %6923 = vmatprep.subr.mxu0 0.0
    %6924 = vmatpush1.msra.mxu0 0.0
    %6925 = vmatprep.subr.mxu0 0.0
    %6926 = vmatpush1.msra.mxu0 0.0
    %6927 = vmatprep.subr.mxu0 0.0
    %6928 = vmatpush1.msra.mxu0 0.0
    %6929 = vmatprep.subr.mxu0 0.0
    %6930 = vmatpush1.msra.mxu0 0.0
    %6931 = vmatprep.subr.mxu0 0.0
    %6932 = vmatpush1.msra.mxu0 0.0
    %6933 = vmatprep.subr.mxu0 0.0
    %6934 = vmatpush1.msra.mxu0 0.0
    %6935 = vmatprep.subr.mxu0 0.0
    %6936 = vmatpush1.msra.mxu0 0.0
    %6937 = vmatprep.subr.mxu0 0.0
    %6938 = vmatpush1.msra.mxu0 0.0
    %6939 = vmatprep.subr.mxu0 0.0
    %6940 = vmatpush1.msra.mxu0 0.0
    %6941 = vmatprep.subr.mxu0 0.0
    %6942 = vmatpush1.msra.mxu0 0.0
    %6943 = vmatprep.subr.mxu0 0.0
    %6944 = vmatpush1.msra.mxu0 0.0
    %6945 = vmatprep.subr.mxu0 0.0
    %6946 = vmatpush1.msra.mxu0 0.0
    %6947 = vmatprep.subr.mxu0 0.0
    %6948 = vmatpush1.msra.mxu0 0.0
    %6949 = vmatprep.subr.mxu0 0.0
    %6950 = vmatpush1.msra.mxu0 0.0
    %6951 = vmatprep.subr.mxu0 0.0
    %6952 = vmatpush1.msra.mxu0 0.0
    %6953 = vmatprep.subr.mxu0 0.0
    %6954 = vmatpush1.msra.mxu0 0.0
    %6955 = vmatprep.subr.mxu0 0.0
    %6956 = vmatpush1.msra.mxu0 0.0
    %6957 = vmatprep.subr.mxu0 0.0
    %6958 = vmatpush1.msra.mxu0 0.0
    %6959 = vmatprep.subr.mxu0 0.0
    %6960 = vmatpush1.msra.mxu0 0.0
    %6961 = vmatprep.subr.mxu0 0.0
    %6962 = vmatpush1.msra.mxu0 0.0
    %6963 = vmatprep.subr.mxu0 0.0
    %6964 = vmatpush1.msra.mxu0 0.0
    %6965 = vmatprep.subr.mxu0 0.0
    %6966 = vmatpush1.msra.mxu0 0.0
    %6967 = vmatprep.subr.mxu0 0.0
    %6968 = vmatpush1.msra.mxu0 0.0
    %6969 = vmatprep.subr.mxu0 0.0
    %6970 = vmatpush1.msra.mxu0 0.0
    %6971 = vmatprep.subr.mxu0 0.0
    %6972 = vmatpush1.msra.mxu0 0.0
    %6973 = vmatprep.subr.mxu0 0.0
    %6974 = vmatpush1.msra.mxu0 0.0
    %6975 = vmatprep.subr.mxu0 0.0
    %6976 = vmatpush1.msra.mxu0 0.0
    %6977 = vmatprep.subr.mxu0 0.0
    %6978 = vmatpush1.msra.mxu0 0.0
    %6979 = vmatprep.mubr.f32.mxu0 0.0
    %6980 = vmatmul.mubr.f32.gmra.mrb[0].mxu0 %v6910
    %v6981 = vpop.f32.mrb[0].mxu0
    %v6982 = vadd.f32 %v6906, %v6981
    %v6983 = vpop.f32.mrb[0].mxu0
    %6984 = vdwg.mxu0
    %vm6985 = vcmask 130048
    %6986 = vst.msk [vmem:[#allocation13] sm:$0xff] %vm6985, %v6982
    // Predicated region
    $region98: #{tpu_custom_call.1} parent=1 // pred_check
      _
    $region99: #{tpu_custom_call.1} parent=1 // pred_check_branch
      %6988 = sbr.rel (0) target = $region101
    $region100: #{tpu_custom_call.1} parent=1 // pred_region
      %s6990 = ssub.s32 128, 128
      %6991 = vsyncadd [#allocation4], %s6990
      %s6993 = sshll.u32 [#allocation13], 4
      %s6994 = int_to_ptr.vmem [resolvable:$true] %s6993
      %6996 = dma.vmem_to_hbm [thread:$0]  %s6994, 128, %s18, [#allocation4]
    $region101: #{tpu_custom_call.1} parent=1 // pred_fallthru
      _
    // Predicated region
    $region102: #{tpu_custom_call.1} parent=1 // pred_check
      _
    $region103: #{tpu_custom_call.1} parent=1 // pred_check_branch
      %6998 = sbr.rel (0) target = $region105
    $region104: #{tpu_custom_call.1} parent=1 // pred_region
      %6999 = dma.done [#allocation4], 128
    $region105: #{tpu_custom_call.1} parent=1 // pred_fallthru
      _
    %7000 = vsyncpa [#allocation3], 1
    %7001 = vsyncpa [#allocation6], 1
    %7002 = vsyncpa [#allocation9], 1
    %7003 = vsyncpa [#allocation12], 1
    %7004 = vsyncpa [#allocation4], 1

</llo_original>
